<compile_context>
chip_gen: v7x
topology: tpu7x:2x2x1
jax: 0.10.0
libtpu: 0.0.40
codegen_flags: <defaults>
</compile_context>

<pallas_src>
import functools
import math

import jax
import jax.numpy as jnp
from jax.experimental import pallas as pl
from jax.experimental.pallas import tpu as pltpu


# ----------------------------------------------------------------------------
# helpers
# ----------------------------------------------------------------------------
def _layer_norm(h, gamma, beta, eps):
    mu = jnp.mean(h, axis=-1, keepdims=True)
    var = jnp.mean((h - mu) ** 2, axis=-1, keepdims=True)
    return (h - mu) * jax.lax.rsqrt(var + eps) * gamma + beta


def _largest_divisor_leq(n, cap):
    d = max(1, min(n, cap))
    while n % d:
        d -= 1
    return d


def _default_vmem_limit_bytes():
    # ~75% of physical VMEM: ≈96 MiB on 128 MiB parts (v5e/v6e), ≈48 MiB on
    # 64 MiB parts (v7x); clamp to a sane range if the query is unavailable.
    try:
        cap = int(getattr(pltpu.get_tpu_info(), "vmem_capacity_bytes"))
    except Exception:  # pragma: no cover - conservative fallback
        cap = 64 * 1024 * 1024
    limit = (cap * 3) // 4
    return max(32 * 1024 * 1024, min(limit, 100 * 1024 * 1024))


# ----------------------------------------------------------------------------
# Pallas kernel
# ----------------------------------------------------------------------------
def _graph_transformer_kernel(
    # gridded tensors
    xq_ref, xkv_ref, rel_ref,
    # attention params (resident full blocks)
    wq_ref, bq_ref, wkv_ref, bkv_ref, wrab_ref, segsc_ref, wo_ref,
    # FFN params + packed (6, E) finalize vectors [bo, b2, g1, be1, g2, be2]
    w1_ref, b1_ref, w2_ref, lnpk_ref,
    # output
    out_ref,
    # scratch (persists across the src sweep of each tgt tile)
    q_scr, m_scr, l_scr, acc_scr,
    *, eps, compute_dtype,
):
    si = pl.program_id(1)
    n_src = pl.num_programs(1)

    tt, B, E = xq_ref.shape
    st = xkv_ref.shape[0]
    cdt = compute_dtype

    # ---- per-tgt-tile init (first src step): Q projection + softmax state ----
    @pl.when(si == 0)
    def _init():
        xq = xq_ref[...].astype(cdt).reshape(tt * B, E)
        q = jnp.dot(xq, wq_ref[...], preferred_element_type=jnp.float32) + bq_ref[...]
        q_scr[...] = q.reshape(tt, B, E)
        m_scr[...] = jnp.full_like(m_scr, -1e30)
        l_scr[...] = jnp.zeros_like(l_scr)
        acc_scr[...] = jnp.zeros_like(acc_scr)

    # ---- fused K|V projection for this src tile: one (st*B, E) @ (E, 2E) ----
    xkv = xkv_ref[...].astype(cdt).reshape(st * B, E)
    kv = jnp.dot(xkv, wkv_ref[...], preferred_element_type=jnp.float32) + bkv_ref[...]
    k3 = kv[:, :E].reshape(st, B, E)
    v3 = kv[:, E:].reshape(st, B, E)

    # ---- fused relation projection (ra | rb): the dominant MXU work ----
    # rel_ref[jj, ii] == relation[src_j, tgt_i]  (the (i, j) swap lives in the
    # BlockSpec index_map, reproducing the PyTorch transpose(0, 1) quirk).
    relf = rel_ref[...].astype(cdt).reshape(st * tt * B, E)
    rab = jnp.dot(relf, wrab_ref[...], preferred_element_type=jnp.float32)
    ra = rab[:, :E].reshape(st, tt, B, E)
    rb = rab[:, E:].reshape(st, tt, B, E)

    # ---- relation-aware scores (compute-dtype elementwise; f32 on v5e) ----
    #   qe[j,i,b,:] = q[i,b,:] + ra(relation[j,i]); ke[j,i,b,:] = k[j,b,:] + rb(relation[j,i])
    qe = q_scr[...].astype(cdt)[None, :, :, :] + ra.astype(cdt)   # (st, tt, B, E)
    ke = k3.astype(cdt)[:, None, :, :] + rb.astype(cdt)           # (st, tt, B, E)
    prod = qe * ke                                                # (st, tt, B, E), cdt

    # Per-head reduction over head_dim via a scaling-folded block-diagonal
    # (E, E) indicator matmul; logits come out replicated across each head's
    # lanes so everything downstream stays lane-dense at width E.
    logits = jnp.dot(
        prod.reshape(st * tt * B, E), segsc_ref[...],
        preferred_element_type=jnp.float32,
    ).reshape(st, tt, B, E)

    # ---- online softmax over the src axis (leading axis of the tile; f32) ----
    tile_max = jnp.max(logits, axis=0)                         # (tt, B, E)
    m_new = jnp.maximum(m_scr[...], tile_max)
    alpha = jnp.exp(m_scr[...] - m_new)
    p = jnp.exp(logits - m_new[None, :, :, :])                 # (st, tt, B, E), f32
    l_scr[...] = alpha * l_scr[...] + jnp.sum(p, axis=0)
    # attn @ V: bf16 multiply when compute_dtype=bf16, f32 accumulation.
    pv = jnp.sum(p.astype(cdt) * v3.astype(cdt)[:, None, :, :],
                 axis=0, dtype=jnp.float32)
    acc_scr[...] = alpha * acc_scr[...] + pv
    m_scr[...] = m_new

    # ---- finalize: out-proj + residual/LN + FFN + residual/LN ----
    @pl.when(si == n_src - 1)
    def _finalize():
        bo = lnpk_ref[0:1, :]
        b2 = lnpk_ref[1:2, :]
        g1 = lnpk_ref[2:3, :]
        be1 = lnpk_ref[3:4, :]
        g2 = lnpk_ref[4:5, :]
        be2 = lnpk_ref[5:6, :]

        attn = acc_scr[...] * pl.reciprocal(l_scr[...], approx=True)   # (tt, B, E)
        o = jnp.dot(attn.reshape(tt * B, E).astype(cdt), wo_ref[...],
                    preferred_element_type=jnp.float32) + bo
        xres = xq_ref[...].astype(jnp.float32).reshape(tt * B, E)
        h1 = _layer_norm(xres + o, g1, be1, eps)
        ff = jnp.maximum(
            jnp.dot(h1.astype(cdt), w1_ref[...], preferred_element_type=jnp.float32)
            + b1_ref[...], 0.0)
        ff = jnp.dot(ff.astype(cdt), w2_ref[...], preferred_element_type=jnp.float32) + b2
        h2 = _layer_norm(h1 + ff, g2, be2, eps)
        out_ref[...] = h2.reshape(tt, B, E).astype(out_ref.dtype)


# ----------------------------------------------------------------------------
# Wrapper
# ----------------------------------------------------------------------------
def graph_transformer_layer(x, relation, params, *, tgt_tile=None, src_tile=None,
                            compute_dtype=None, budget_bytes=2 << 20,
                            vmem_limit_bytes=None):
    T, B, E = x.shape
    S = relation.shape[1]
    assert relation.shape == (T, S, B, E)
    assert T == S, "self-attention (kv=None) only"  # TODO(synk): cross-attention
    H = params["num_heads"]
    hd = E // H
    scaling = float(hd) ** -0.5
    cdt = jnp.dtype(compute_dtype) if compute_dtype is not None else jnp.dtype(x.dtype)
    f32 = jnp.float32

    # ---- tile sizes: budget one (st, tt, B, E) f32 tile to ~budget_bytes so
    #      the live per-tile intermediates + double-buffered inputs fit VMEM;
    #      amortizes the ~0.35us grid-step overhead with bigger tiles.
    budget_elems = max(1, int(budget_bytes) // 4)
    cap = max(8, int(math.sqrt(max(1, budget_elems // (B * E)))))
    if tgt_tile is None:
        tgt_tile = _largest_divisor_leq(T, cap)
        # megacore guard: keep >=2 tiles on the "parallel" tgt axis (v7x 2 TCs)
        if T // tgt_tile < 2 and T > 1:
            tgt_tile = _largest_divisor_leq(T, max(1, T // 2))
    if src_tile is None:
        src_tile = _largest_divisor_leq(S, cap)
    tt, st = tgt_tile, src_tile
    assert T % tt == 0 and S % st == 0, "tile sizes must divide T and S"

    # ---- parameter prep (plain JAX; all tiny next to `relation`) ----
    in_w = params["in_proj_weight"].astype(f32)
    in_b = params["in_proj_bias"].astype(f32)
    wq = in_w[:E].T                                   # (E, E)
    wkv = in_w[E:].T                                  # (E, 2E)   fused K|V
    bq = in_b[:E].reshape(1, E)
    bkv = in_b[E:].reshape(1, 2 * E)

    wrab = params["relation_in_proj_weight"].astype(f32).T   # (E, 2E) fused ra|rb

    # block-diagonal head indicator with the attention scaling folded in
    head_of = jnp.arange(E) // hd
    segsc = (head_of[:, None] == head_of[None, :]).astype(f32) * scaling

    wo = params["out_proj_weight"].astype(f32).T
    bo = params["out_proj_bias"].astype(f32).reshape(1, E)
    w1 = params["fc1_weight"].astype(f32).T
    b1 = params["fc1_bias"].astype(f32).reshape(1, -1)
    w2 = params["fc2_weight"].astype(f32).T
    b2 = params["fc2_bias"].astype(f32).reshape(1, E)
    g1 = params["attn_ln_weight"].astype(f32).reshape(1, E)
    be1 = params["attn_ln_bias"].astype(f32).reshape(1, E)
    g2 = params["ff_ln_weight"].astype(f32).reshape(1, E)
    be2 = params["ff_ln_bias"].astype(f32).reshape(1, E)

    # pack the six (1, E) finalize-only vectors into one (6, E) ref
    lnpk = jnp.concatenate([bo, b2, g1, be1, g2, be2], axis=0)   # (6, E), f32

    # matmul operands in the compute dtype (bf16 on v6e/v7x: 2x MXU, 1/2 bytes);
    # biases / LN params stay f32 (added post f32 accumulation).
    wq, wkv, wrab, segsc, wo, w1, w2 = [
        a.astype(cdt) for a in (wq, wkv, wrab, segsc, wo, w1, w2)]

    weights = (wq, bq, wkv, bkv, wrab, segsc, wo, w1, b1, w2, lnpk)

    grid = (T // tt, S // st)

    def _full(a):
        nd = a.ndim
        return pl.BlockSpec(a.shape, lambda i, j, _nd=nd: (0,) * _nd)

    x_q_spec = pl.BlockSpec((tt, B, E), lambda i, j: (i, 0, 0))
    x_kv_spec = pl.BlockSpec((st, B, E), lambda i, j: (j, 0, 0))
    # (i, j) -> (j, i): the kernel sees relation[src, tgt] tiles, reproducing
    # the PyTorch ra/rb transpose(0,1) broadcasting with no HBM transpose.
    rel_spec = pl.BlockSpec((st, tt, B, E), lambda i, j: (j, i, 0, 0))
    # NOTE: on v5e, if xprof shows exposed DMA on the relation stream, add
    # pipeline_mode=pl.Buffered(3) to rel_spec (128 MiB VMEM makes the third
    # buffer cheap); keep depth 2 on v7x's 64 MiB.

    in_specs = [x_q_spec, x_kv_spec, rel_spec] + [_full(w) for w in weights]
    out_spec = pl.BlockSpec((tt, B, E), lambda i, j: (i, 0, 0))

    kernel = functools.partial(_graph_transformer_kernel, eps=1e-5, compute_dtype=cdt)

    if vmem_limit_bytes is None:
        vmem_limit_bytes = _default_vmem_limit_bytes()

    return pl.pallas_call(
        kernel,
        out_shape=jax.ShapeDtypeStruct((T, B, E), x.dtype),
        grid=grid,
        in_specs=in_specs,
        out_specs=out_spec,
        scratch_shapes=[
            pltpu.VMEM((tt, B, E), jnp.float32),   # Q (current tgt tile)
            pltpu.VMEM((tt, B, E), jnp.float32),   # running max  (lane-replicated per head)
            pltpu.VMEM((tt, B, E), jnp.float32),   # running denominator
            pltpu.VMEM((tt, B, E), jnp.float32),   # running numerator (sum p*v)
        ],
        compiler_params=pltpu.CompilerParams(
            dimension_semantics=("parallel", "arbitrary"),
            vmem_limit_bytes=int(vmem_limit_bytes),
        ),
    )(x, x, relation, *weights)


# ----------------------------------------------------------------------------
# Pure-JAX reference (mirrors the PyTorch ops exactly)
# ----------------------------------------------------------------------------
def reference_forward(x, relation, params):
    T, B, E = x.shape
    S = relation.shape[1]
    H = params["num_heads"]
    hd = E // H
    scaling = float(hd) ** -0.5

    def ln(h, g, b):
        mu = jnp.mean(h, axis=-1, keepdims=True)
        var = jnp.mean((h - mu) ** 2, axis=-1, keepdims=True)
        return (h - mu) / jnp.sqrt(var + 1e-5) * g + b

    qkv = x @ params["in_proj_weight"].T + params["in_proj_bias"]
    q, k, v = jnp.split(qkv, 3, axis=-1)
    q = q.reshape(T, B * H, hd)
    k = k.reshape(S, B * H, hd)
    v = v.reshape(S, B * H, hd)

    r = relation @ params["relation_in_proj_weight"].T
    ra, rb = jnp.split(r, 2, axis=-1)
    ra = jnp.transpose(ra.reshape(T, S, B * H, hd), (1, 0, 2, 3))
    rb = jnp.transpose(rb.reshape(T, S, B * H, hd), (1, 0, 2, 3))

    qe = (q[:, None] + ra) * scaling
    ke = k[None, :] + rb
    w = jnp.einsum("ijbn,ijbn->ijb", qe, ke)
    p = jax.nn.softmax(w, axis=1)
    attn = jnp.einsum("ijb,jbn->bin", p, v)
    attn = jnp.transpose(attn, (1, 0, 2)).reshape(T, B, E)
    attn = attn @ params["out_proj_weight"].T + params["out_proj_bias"]

    h1 = ln(x + attn, params["attn_ln_weight"], params["attn_ln_bias"])
    ff = jax.nn.relu(h1 @ params["fc1_weight"].T + params["fc1_bias"])
    ff = ff @ params["fc2_weight"].T + params["fc2_bias"]
    return ln(h1 + ff, params["ff_ln_weight"], params["ff_ln_bias"])


# ----------------------------------------------------------------------------
# Main
# ----------------------------------------------------------------------------
if __name__ == "__main__":
    EMBED, FF, HEADS = 32, 64, 4
    T = S = 8
    B = 2

    key = jax.random.PRNGKey(0)
    ks = jax.random.split(key, 16)

    params = {
        "num_heads": HEADS,
        "in_proj_weight": 0.02 * jax.random.normal(ks[0], (3 * EMBED, EMBED), jnp.float32),
        "in_proj_bias": 0.1 * jax.random.normal(ks[7], (3 * EMBED,), jnp.float32),
        "relation_in_proj_weight": 0.02 * jax.random.normal(ks[1], (2 * EMBED, EMBED), jnp.float32),
        "out_proj_weight": 0.02 * jax.random.normal(ks[2], (EMBED, EMBED), jnp.float32),
        "out_proj_bias": 0.1 * jax.random.normal(ks[8], (EMBED,), jnp.float32),
        "fc1_weight": 0.02 * jax.random.normal(ks[3], (FF, EMBED), jnp.float32),
        "fc1_bias": 0.1 * jax.random.normal(ks[9], (FF,), jnp.float32),
        "fc2_weight": 0.02 * jax.random.normal(ks[4], (EMBED, FF), jnp.float32),
        "fc2_bias": 0.1 * jax.random.normal(ks[10], (EMBED,), jnp.float32),
        "attn_ln_weight": 1.0 + 0.1 * jax.random.normal(ks[11], (EMBED,), jnp.float32),
        "attn_ln_bias": 0.1 * jax.random.normal(ks[12], (EMBED,), jnp.float32),
        "ff_ln_weight": 1.0 + 0.1 * jax.random.normal(ks[13], (EMBED,), jnp.float32),
        "ff_ln_bias": 0.1 * jax.random.normal(ks[14], (EMBED,), jnp.float32),
    }

    x = jax.random.normal(ks[5], (T, B, EMBED), jnp.float32)
    relation = jax.random.normal(ks[6], (T, S, B, EMBED), jnp.float32)

    ref = reference_forward(x, relation, params)

    # auto-tiled path (megacore guard keeps >=2 tgt tiles)
    out1 = jax.block_until_ready(graph_transformer_layer(x, relation, params))
    # explicit tiled multi-step online-softmax path (grid 2x2)
    out2 = jax.block_until_ready(
        graph_transformer_layer(x, relation, params, tgt_tile=4, src_tile=4))
    # bf16 fast path (v6e/v7x): bf16 relation on the wire + bf16 matmuls &
    # score-path temps; f32 accumulation / softmax / LayerNorm
    out3 = jax.block_until_ready(
        graph_transformer_layer(x, relation.astype(jnp.bfloat16), params,
                                tgt_tile=4, src_tile=4,
                                compute_dtype=jnp.bfloat16))

    assert out1.shape == (T, B, EMBED)
    err1 = float(jnp.max(jnp.abs(out1 - ref)))
    err2 = float(jnp.max(jnp.abs(out2 - ref)))
    err3 = float(jnp.max(jnp.abs(out3 - ref)))
    assert err1 < 2e-3, f"auto-tiled max abs err = {err1}"
    assert err2 < 2e-3, f"tiled max abs err = {err2}"
    assert err3 < 1.5e-1, f"bf16 max abs err = {err3}"

    print("KERNEL_OK")
</pallas_src>

<mosaic_0001>
module attributes {stable_mosaic.version = 11 : i64} {
  func.func @_graph_transformer_kernel(%arg0: i32, %arg1: i32, %arg2: memref<4x2x32xf32, #tpu.memory_space<vmem>>, %arg3: memref<8x2x32xf32, #tpu.memory_space<vmem>>, %arg4: memref<8x4x2x32xf32, #tpu.memory_space<vmem>>, %arg5: memref<32x32xf32, #tpu.memory_space<vmem>>, %arg6: memref<1x32xf32, #tpu.memory_space<vmem>>, %arg7: memref<32x64xf32, #tpu.memory_space<vmem>>, %arg8: memref<1x64xf32, #tpu.memory_space<vmem>>, %arg9: memref<32x64xf32, #tpu.memory_space<vmem>>, %arg10: memref<32x32xf32, #tpu.memory_space<vmem>>, %arg11: memref<32x32xf32, #tpu.memory_space<vmem>>, %arg12: memref<32x64xf32, #tpu.memory_space<vmem>>, %arg13: memref<1x64xf32, #tpu.memory_space<vmem>>, %arg14: memref<64x32xf32, #tpu.memory_space<vmem>>, %arg15: memref<6x32xf32, #tpu.memory_space<vmem>>, %arg16: memref<4x2x32xf32, #tpu.memory_space<vmem>>, %arg17: memref<4x2x32xf32, #tpu.memory_space<vmem>>, %arg18: memref<4x2x32xf32, #tpu.memory_space<vmem>>, %arg19: memref<4x2x32xf32, #tpu.memory_space<vmem>>, %arg20: memref<4x2x32xf32, #tpu.memory_space<vmem>>) attributes {dimension_semantics = [#tpu.dimension_semantics<parallel>, #tpu.dimension_semantics<arbitrary>], iteration_bounds = array<i64: 2, 1>, scalar_prefetch = 0 : i64, scratch_operands = 4 : i64, tpu.core_type = #tpu.core_type<tc>, window_params = [{transform_indices = @transform_0, window_bounds = array<i64: 4, 2, 32>}, {transform_indices = @transform_1, window_bounds = array<i64: 8, 2, 32>}, {transform_indices = @transform_2, window_bounds = array<i64: 8, 4, 2, 32>}, {pipeline_mode = #tpu.pipeline_mode<synchronous>, transform_indices = @transform_3, window_bounds = array<i64: 32, 32>}, {pipeline_mode = #tpu.pipeline_mode<synchronous>, transform_indices = @transform_4, window_bounds = array<i64: 1, 32>}, {pipeline_mode = #tpu.pipeline_mode<synchronous>, transform_indices = @transform_5, window_bounds = array<i64: 32, 64>}, {pipeline_mode = #tpu.pipeline_mode<synchronous>, transform_indices = @transform_6, window_bounds = array<i64: 1, 64>}, {pipeline_mode = #tpu.pipeline_mode<synchronous>, transform_indices = @transform_7, window_bounds = array<i64: 32, 64>}, {pipeline_mode = #tpu.pipeline_mode<synchronous>, transform_indices = @transform_8, window_bounds = array<i64: 32, 32>}, {pipeline_mode = #tpu.pipeline_mode<synchronous>, transform_indices = @transform_9, window_bounds = array<i64: 32, 32>}, {pipeline_mode = #tpu.pipeline_mode<synchronous>, transform_indices = @transform_10, window_bounds = array<i64: 32, 64>}, {pipeline_mode = #tpu.pipeline_mode<synchronous>, transform_indices = @transform_11, window_bounds = array<i64: 1, 64>}, {pipeline_mode = #tpu.pipeline_mode<synchronous>, transform_indices = @transform_12, window_bounds = array<i64: 64, 32>}, {pipeline_mode = #tpu.pipeline_mode<synchronous>, transform_indices = @transform_13, window_bounds = array<i64: 6, 32>}, {transform_indices = @transform_14, window_bounds = array<i64: 4, 2, 32>}]} {
    %c0_i32 = arith.constant 0 : i32
    %0 = arith.cmpi eq, %arg1, %c0_i32 : i32
    %1 = arith.extui %0 : i1 to i32
    %c0_i32_0 = arith.constant 0 : i32
    %2 = arith.cmpi ne, %1, %c0_i32_0 : i32
    scf.if %2 {
      %c0_46 = arith.constant 0 : index
      %c0_47 = arith.constant 0 : index
      %c0_48 = arith.constant 0 : index
      %61 = vector.load %arg2[%c0_46, %c0_47, %c0_48] : memref<4x2x32xf32, #tpu.memory_space<vmem>>, vector<4x2x32xf32>
      %62 = vector.shape_cast %61 : vector<4x2x32xf32> to vector<8x32xf32>
      %c0_49 = arith.constant 0 : index
      %c0_50 = arith.constant 0 : index
      %63 = vector.load %arg5[%c0_49, %c0_50] : memref<32x32xf32, #tpu.memory_space<vmem>>, vector<32x32xf32>
      %cst_51 = arith.constant dense<0.000000e+00> : vector<8x32xf32>
      %64 = tpu.matmul %62, %63, %cst_51 {dimension_numbers = #tpu.dot_dimension_numbers<[1], [0], [0], [1], [0, 0, 1, 1], [], []>} : vector<8x32xf32>, vector<32x32xf32>, vector<8x32xf32> -> vector<8x32xf32>
      %c0_52 = arith.constant 0 : index
      %c0_53 = arith.constant 0 : index
      %65 = vector.load %arg6[%c0_52, %c0_53] : memref<1x32xf32, #tpu.memory_space<vmem>>, vector<1x32xf32>
      %66 = vector.broadcast %65 : vector<1x32xf32> to vector<8x32xf32>
      %67 = arith.addf %64, %66 : vector<8x32xf32>
      %68 = vector.shape_cast %67 : vector<8x32xf32> to vector<4x2x32xf32>
      %c0_54 = arith.constant 0 : index
      %c0_55 = arith.constant 0 : index
      %c0_56 = arith.constant 0 : index
      %69 = vector.load %arg17[%c0_54, %c0_55, %c0_56] : memref<4x2x32xf32, #tpu.memory_space<vmem>>, vector<4x2x32xf32>
      tpu.vector_store %arg17[%c0_54, %c0_55, %c0_56], %68 {strides = array<i32>} : memref<4x2x32xf32, #tpu.memory_space<vmem>>, vector<4x2x32xf32>,
      %cst_57 = arith.constant -1.000000e+30 : f32
      %70 = vector.broadcast %cst_57 : f32 to vector<4x2x32xf32>
      %c0_58 = arith.constant 0 : index
      %c0_59 = arith.constant 0 : index
      %c0_60 = arith.constant 0 : index
      %71 = vector.load %arg18[%c0_58, %c0_59, %c0_60] : memref<4x2x32xf32, #tpu.memory_space<vmem>>, vector<4x2x32xf32>
      tpu.vector_store %arg18[%c0_58, %c0_59, %c0_60], %70 {strides = array<i32>} : memref<4x2x32xf32, #tpu.memory_space<vmem>>, vector<4x2x32xf32>,
      %cst_61 = arith.constant 0.000000e+00 : f32
      %72 = vector.broadcast %cst_61 : f32 to vector<4x2x32xf32>
      %c0_62 = arith.constant 0 : index
      %c0_63 = arith.constant 0 : index
      %c0_64 = arith.constant 0 : index
      %73 = vector.load %arg19[%c0_62, %c0_63, %c0_64] : memref<4x2x32xf32, #tpu.memory_space<vmem>>, vector<4x2x32xf32>
      tpu.vector_store %arg19[%c0_62, %c0_63, %c0_64], %72 {strides = array<i32>} : memref<4x2x32xf32, #tpu.memory_space<vmem>>, vector<4x2x32xf32>,
      %cst_65 = arith.constant 0.000000e+00 : f32
      %74 = vector.broadcast %cst_65 : f32 to vector<4x2x32xf32>
      %c0_66 = arith.constant 0 : index
      %c0_67 = arith.constant 0 : index
      %c0_68 = arith.constant 0 : index
      %75 = vector.load %arg20[%c0_66, %c0_67, %c0_68] : memref<4x2x32xf32, #tpu.memory_space<vmem>>, vector<4x2x32xf32>
      tpu.vector_store %arg20[%c0_66, %c0_67, %c0_68], %74 {strides = array<i32>} : memref<4x2x32xf32, #tpu.memory_space<vmem>>, vector<4x2x32xf32>,
    } else {
    }
    %c0 = arith.constant 0 : index
    %c0_1 = arith.constant 0 : index
    %c0_2 = arith.constant 0 : index
    %3 = vector.load %arg3[%c0, %c0_1, %c0_2] : memref<8x2x32xf32, #tpu.memory_space<vmem>>, vector<8x2x32xf32>
    %4 = vector.shape_cast %3 : vector<8x2x32xf32> to vector<16x32xf32>
    %c0_3 = arith.constant 0 : index
    %c0_4 = arith.constant 0 : index
    %5 = vector.load %arg7[%c0_3, %c0_4] : memref<32x64xf32, #tpu.memory_space<vmem>>, vector<32x64xf32>
    %cst = arith.constant dense<0.000000e+00> : vector<16x64xf32>
    %6 = tpu.matmul %4, %5, %cst {dimension_numbers = #tpu.dot_dimension_numbers<[1], [0], [0], [1], [0, 0, 1, 1], [], []>} : vector<16x32xf32>, vector<32x64xf32>, vector<16x64xf32> -> vector<16x64xf32>
    %c0_5 = arith.constant 0 : index
    %c0_6 = arith.constant 0 : index
    %7 = vector.load %arg8[%c0_5, %c0_6] : memref<1x64xf32, #tpu.memory_space<vmem>>, vector<1x64xf32>
    %8 = vector.broadcast %7 : vector<1x64xf32> to vector<16x64xf32>
    %9 = arith.addf %6, %8 : vector<16x64xf32>
    %10 = vector.extract_strided_slice %9 {offsets = [0, 0], sizes = [16, 32], strides = [1, 1]} : vector<16x64xf32> to vector<16x32xf32>
    %11 = vector.shape_cast %10 : vector<16x32xf32> to vector<8x2x32xf32>
    %12 = vector.extract_strided_slice %9 {offsets = [0, 32], sizes = [16, 32], strides = [1, 1]} : vector<16x64xf32> to vector<16x32xf32>
    %13 = vector.shape_cast %12 : vector<16x32xf32> to vector<8x2x32xf32>
    %c0_7 = arith.constant 0 : index
    %c0_8 = arith.constant 0 : index
    %c0_9 = arith.constant 0 : index
    %c0_10 = arith.constant 0 : index
    %14 = vector.load %arg4[%c0_7, %c0_8, %c0_9, %c0_10] : memref<8x4x2x32xf32, #tpu.memory_space<vmem>>, vector<8x4x2x32xf32>
    %15 = vector.shape_cast %14 : vector<8x4x2x32xf32> to vector<64x32xf32>
    %c0_11 = arith.constant 0 : index
    %c0_12 = arith.constant 0 : index
    %16 = vector.load %arg9[%c0_11, %c0_12] : memref<32x64xf32, #tpu.memory_space<vmem>>, vector<32x64xf32>
    %cst_13 = arith.constant dense<0.000000e+00> : vector<64x64xf32>
    %17 = tpu.matmul %15, %16, %cst_13 {dimension_numbers = #tpu.dot_dimension_numbers<[1], [0], [0], [1], [0, 0, 1, 1], [], []>} : vector<64x32xf32>, vector<32x64xf32>, vector<64x64xf32> -> vector<64x64xf32>
    %18 = vector.extract_strided_slice %17 {offsets = [0, 0], sizes = [64, 32], strides = [1, 1]} : vector<64x64xf32> to vector<64x32xf32>
    %19 = vector.shape_cast %18 : vector<64x32xf32> to vector<8x4x2x32xf32>
    %20 = vector.extract_strided_slice %17 {offsets = [0, 32], sizes = [64, 32], strides = [1, 1]} : vector<64x64xf32> to vector<64x32xf32>
    %21 = vector.shape_cast %20 : vector<64x32xf32> to vector<8x4x2x32xf32>
    %c0_14 = arith.constant 0 : index
    %c0_15 = arith.constant 0 : index
    %c0_16 = arith.constant 0 : index
    %22 = vector.load %arg17[%c0_14, %c0_15, %c0_16] : memref<4x2x32xf32, #tpu.memory_space<vmem>>, vector<4x2x32xf32>
    %23 = vector.shape_cast %22 : vector<4x2x32xf32> to vector<1x4x2x32xf32>
    %24 = vector.broadcast %23 : vector<1x4x2x32xf32> to vector<8x4x2x32xf32>
    %25 = arith.addf %24, %19 : vector<8x4x2x32xf32>
    %26 = vector.shape_cast %11 : vector<8x2x32xf32> to vector<8x1x2x32xf32>
    %27 = vector.broadcast %26 : vector<8x1x2x32xf32> to vector<8x4x2x32xf32>
    %28 = arith.addf %27, %21 : vector<8x4x2x32xf32>
    %29 = arith.mulf %25, %28 : vector<8x4x2x32xf32>
    %30 = vector.shape_cast %29 : vector<8x4x2x32xf32> to vector<64x32xf32>
    %c0_17 = arith.constant 0 : index
    %c0_18 = arith.constant 0 : index
    %31 = vector.load %arg10[%c0_17, %c0_18] : memref<32x32xf32, #tpu.memory_space<vmem>>, vector<32x32xf32>
    %cst_19 = arith.constant dense<0.000000e+00> : vector<64x32xf32>
    %32 = tpu.matmul %30, %31, %cst_19 {dimension_numbers = #tpu.dot_dimension_numbers<[1], [0], [0], [1], [0, 0, 1, 1], [], []>} : vector<64x32xf32>, vector<32x32xf32>, vector<64x32xf32> -> vector<64x32xf32>
    %33 = vector.shape_cast %32 : vector<64x32xf32> to vector<8x4x2x32xf32>
    %cst_20 = arith.constant dense<0xFF800000> : vector<4x2x32xf32>
    %34 = vector.multi_reduction <maximumf>, %33, %cst_20 [0] : vector<8x4x2x32xf32> to vector<4x2x32xf32>
    %c0_21 = arith.constant 0 : index
    %c0_22 = arith.constant 0 : index
    %c0_23 = arith.constant 0 : index
    %35 = vector.load %arg18[%c0_21, %c0_22, %c0_23] : memref<4x2x32xf32, #tpu.memory_space<vmem>>, vector<4x2x32xf32>
    %36 = arith.maximumf %35, %34 : vector<4x2x32xf32>
    %c0_24 = arith.constant 0 : index
    %c0_25 = arith.constant 0 : index
    %c0_26 = arith.constant 0 : index
    %37 = vector.load %arg18[%c0_24, %c0_25, %c0_26] : memref<4x2x32xf32, #tpu.memory_space<vmem>>, vector<4x2x32xf32>
    %38 = arith.subf %37, %36 : vector<4x2x32xf32>
    %39 = math.exp %38 : vector<4x2x32xf32>
    %40 = vector.shape_cast %36 : vector<4x2x32xf32> to vector<1x4x2x32xf32>
    %41 = vector.broadcast %40 : vector<1x4x2x32xf32> to vector<8x4x2x32xf32>
    %42 = arith.subf %33, %41 : vector<8x4x2x32xf32>
    %43 = math.exp %42 : vector<8x4x2x32xf32>
    %c0_27 = arith.constant 0 : index
    %c0_28 = arith.constant 0 : index
    %c0_29 = arith.constant 0 : index
    %44 = vector.load %arg19[%c0_27, %c0_28, %c0_29] : memref<4x2x32xf32, #tpu.memory_space<vmem>>, vector<4x2x32xf32>
    %45 = arith.mulf %39, %44 : vector<4x2x32xf32>
    %cst_30 = arith.constant dense<0.000000e+00> : vector<4x2x32xf32>
    %46 = vector.multi_reduction <add>, %43, %cst_30 [0] : vector<8x4x2x32xf32> to vector<4x2x32xf32>
    %47 = arith.addf %45, %46 : vector<4x2x32xf32>
    %c0_31 = arith.constant 0 : index
    %c0_32 = arith.constant 0 : index
    %c0_33 = arith.constant 0 : index
    %48 = vector.load %arg19[%c0_31, %c0_32, %c0_33] : memref<4x2x32xf32, #tpu.memory_space<vmem>>, vector<4x2x32xf32>
    tpu.vector_store %arg19[%c0_31, %c0_32, %c0_33], %47 {strides = array<i32>} : memref<4x2x32xf32, #tpu.memory_space<vmem>>, vector<4x2x32xf32>,
    %49 = vector.shape_cast %13 : vector<8x2x32xf32> to vector<8x1x2x32xf32>
    %50 = vector.broadcast %49 : vector<8x1x2x32xf32> to vector<8x4x2x32xf32>
    %51 = arith.mulf %43, %50 : vector<8x4x2x32xf32>
    %cst_34 = arith.constant dense<0.000000e+00> : vector<4x2x32xf32>
    %52 = vector.multi_reduction <add>, %51, %cst_34 [0] : vector<8x4x2x32xf32> to vector<4x2x32xf32>
    %c0_35 = arith.constant 0 : index
    %c0_36 = arith.constant 0 : index
    %c0_37 = arith.constant 0 : index
    %53 = vector.load %arg20[%c0_35, %c0_36, %c0_37] : memref<4x2x32xf32, #tpu.memory_space<vmem>>, vector<4x2x32xf32>
    %54 = arith.mulf %39, %53 : vector<4x2x32xf32>
    %55 = arith.addf %54, %52 : vector<4x2x32xf32>
    %c0_38 = arith.constant 0 : index
    %c0_39 = arith.constant 0 : index
    %c0_40 = arith.constant 0 : index
    %56 = vector.load %arg20[%c0_38, %c0_39, %c0_40] : memref<4x2x32xf32, #tpu.memory_space<vmem>>, vector<4x2x32xf32>
    tpu.vector_store %arg20[%c0_38, %c0_39, %c0_40], %55 {strides = array<i32>} : memref<4x2x32xf32, #tpu.memory_space<vmem>>, vector<4x2x32xf32>,
    %c0_41 = arith.constant 0 : index
    %c0_42 = arith.constant 0 : index
    %c0_43 = arith.constant 0 : index
    %57 = vector.load %arg18[%c0_41, %c0_42, %c0_43] : memref<4x2x32xf32, #tpu.memory_space<vmem>>, vector<4x2x32xf32>
    tpu.vector_store %arg18[%c0_41, %c0_42, %c0_43], %36 {strides = array<i32>} : memref<4x2x32xf32, #tpu.memory_space<vmem>>, vector<4x2x32xf32>,
    %c0_i32_44 = arith.constant 0 : i32
    %58 = arith.cmpi eq, %arg1, %c0_i32_44 : i32
    %59 = arith.extui %58 : i1 to i32
    %c0_i32_45 = arith.constant 0 : i32
    %60 = arith.cmpi ne, %59, %c0_i32_45 : i32
    scf.if %60 {
      %c0_46 = arith.constant 0 : index
      %c0_47 = arith.constant 0 : index
      %61 = vector.load %arg15[%c0_46, %c0_47] : memref<6x32xf32, #tpu.memory_space<vmem>>, vector<1x32xf32>
      %c1 = arith.constant 1 : index
      %c0_48 = arith.constant 0 : index
      %62 = vector.load %arg15[%c1, %c0_48] : memref<6x32xf32, #tpu.memory_space<vmem>>, vector<1x32xf32>
      %c2 = arith.constant 2 : index
      %c0_49 = arith.constant 0 : index
      %63 = vector.load %arg15[%c2, %c0_49] : memref<6x32xf32, #tpu.memory_space<vmem>>, vector<1x32xf32>
      %c3 = arith.constant 3 : index
      %c0_50 = arith.constant 0 : index
      %64 = vector.load %arg15[%c3, %c0_50] : memref<6x32xf32, #tpu.memory_space<vmem>>, vector<1x32xf32>
      %c4 = arith.constant 4 : index
      %c0_51 = arith.constant 0 : index
      %65 = vector.load %arg15[%c4, %c0_51] : memref<6x32xf32, #tpu.memory_space<vmem>>, vector<1x32xf32>
      %c5 = arith.constant 5 : index
      %c0_52 = arith.constant 0 : index
      %66 = vector.load %arg15[%c5, %c0_52] : memref<6x32xf32, #tpu.memory_space<vmem>>, vector<1x32xf32>
      %c0_53 = arith.constant 0 : index
      %c0_54 = arith.constant 0 : index
      %c0_55 = arith.constant 0 : index
      %67 = vector.load %arg20[%c0_53, %c0_54, %c0_55] : memref<4x2x32xf32, #tpu.memory_space<vmem>>, vector<4x2x32xf32>
      %c0_56 = arith.constant 0 : index
      %c0_57 = arith.constant 0 : index
      %c0_58 = arith.constant 0 : index
      %68 = vector.load %arg19[%c0_56, %c0_57, %c0_58] : memref<4x2x32xf32, #tpu.memory_space<vmem>>, vector<4x2x32xf32>
      %69 = tpu.reciprocal %68 {approx = true} : vector<4x2x32xf32> -> vector<4x2x32xf32>
      %70 = arith.mulf %67, %69 : vector<4x2x32xf32>
      %71 = vector.shape_cast %70 : vector<4x2x32xf32> to vector<8x32xf32>
      %c0_59 = arith.constant 0 : index
      %c0_60 = arith.constant 0 : index
      %72 = vector.load %arg11[%c0_59, %c0_60] : memref<32x32xf32, #tpu.memory_space<vmem>>, vector<32x32xf32>
      %cst_61 = arith.constant dense<0.000000e+00> : vector<8x32xf32>
      %73 = tpu.matmul %71, %72, %cst_61 {dimension_numbers = #tpu.dot_dimension_numbers<[1], [0], [0], [1], [0, 0, 1, 1], [], []>} : vector<8x32xf32>, vector<32x32xf32>, vector<8x32xf32> -> vector<8x32xf32>
      %74 = vector.broadcast %61 : vector<1x32xf32> to vector<8x32xf32>
      %75 = arith.addf %73, %74 : vector<8x32xf32>
      %c0_62 = arith.constant 0 : index
      %c0_63 = arith.constant 0 : index
      %c0_64 = arith.constant 0 : index
      %76 = vector.load %arg2[%c0_62, %c0_63, %c0_64] : memref<4x2x32xf32, #tpu.memory_space<vmem>>, vector<4x2x32xf32>
      %77 = vector.shape_cast %76 : vector<4x2x32xf32> to vector<8x32xf32>
      %78 = arith.addf %77, %75 : vector<8x32xf32>
      %cst_65 = arith.constant dense<0.000000e+00> : vector<8xf32>
      %79 = vector.multi_reduction <add>, %78, %cst_65 [1] : vector<8x32xf32> to vector<8xf32>
      %80 = vector.shape_cast %79 : vector<8xf32> to vector<8x1xf32>
      %cst_66 = arith.constant 3.200000e+01 : f32
      %81 = vector.broadcast %cst_66 : f32 to vector<8x1xf32>
      %82 = arith.divf %80, %81 : vector<8x1xf32>
      %83 = vector.broadcast %82 : vector<8x1xf32> to vector<8x32xf32>
      %84 = arith.subf %78, %83 : vector<8x32xf32>
      %85 = arith.mulf %84, %84 : vector<8x32xf32>
      %cst_67 = arith.constant dense<0.000000e+00> : vector<8xf32>
      %86 = vector.multi_reduction <add>, %85, %cst_67 [1] : vector<8x32xf32> to vector<8xf32>
      %87 = vector.shape_cast %86 : vector<8xf32> to vector<8x1xf32>
      %cst_68 = arith.constant 3.200000e+01 : f32
      %88 = vector.broadcast %cst_68 : f32 to vector<8x1xf32>
      %89 = arith.divf %87, %88 : vector<8x1xf32>
      %90 = vector.broadcast %82 : vector<8x1xf32> to vector<8x32xf32>
      %91 = arith.subf %78, %90 : vector<8x32xf32>
      %cst_69 = arith.constant 9.99999974E-6 : f32
      %92 = vector.broadcast %cst_69 : f32 to vector<8x1xf32>
      %93 = arith.addf %89, %92 : vector<8x1xf32>
      %94 = math.rsqrt %93 : vector<8x1xf32>
      %95 = vector.broadcast %94 : vector<8x1xf32> to vector<8x32xf32>
      %96 = arith.mulf %91, %95 : vector<8x32xf32>
      %97 = vector.broadcast %63 : vector<1x32xf32> to vector<8x32xf32>
      %98 = arith.mulf %96, %97 : vector<8x32xf32>
      %99 = vector.broadcast %64 : vector<1x32xf32> to vector<8x32xf32>
      %100 = arith.addf %98, %99 : vector<8x32xf32>
      %c0_70 = arith.constant 0 : index
      %c0_71 = arith.constant 0 : index
      %101 = vector.load %arg12[%c0_70, %c0_71] : memref<32x64xf32, #tpu.memory_space<vmem>>, vector<32x64xf32>
      %cst_72 = arith.constant dense<0.000000e+00> : vector<8x64xf32>
      %102 = tpu.matmul %100, %101, %cst_72 {dimension_numbers = #tpu.dot_dimension_numbers<[1], [0], [0], [1], [0, 0, 1, 1], [], []>} : vector<8x32xf32>, vector<32x64xf32>, vector<8x64xf32> -> vector<8x64xf32>
      %c0_73 = arith.constant 0 : index
      %c0_74 = arith.constant 0 : index
      %103 = vector.load %arg13[%c0_73, %c0_74] : memref<1x64xf32, #tpu.memory_space<vmem>>, vector<1x64xf32>
      %104 = vector.broadcast %103 : vector<1x64xf32> to vector<8x64xf32>
      %105 = arith.addf %102, %104 : vector<8x64xf32>
      %cst_75 = arith.constant 0.000000e+00 : f32
      %106 = vector.broadcast %cst_75 : f32 to vector<8x64xf32>
      %107 = arith.maximumf %105, %106 : vector<8x64xf32>
      %c0_76 = arith.constant 0 : index
      %c0_77 = arith.constant 0 : index
      %108 = vector.load %arg14[%c0_76, %c0_77] : memref<64x32xf32, #tpu.memory_space<vmem>>, vector<64x32xf32>
      %cst_78 = arith.constant dense<0.000000e+00> : vector<8x32xf32>
      %109 = tpu.matmul %107, %108, %cst_78 {dimension_numbers = #tpu.dot_dimension_numbers<[1], [0], [0], [1], [0, 0, 1, 1], [], []>} : vector<8x64xf32>, vector<64x32xf32>, vector<8x32xf32> -> vector<8x32xf32>
      %110 = vector.broadcast %62 : vector<1x32xf32> to vector<8x32xf32>
      %111 = arith.addf %109, %110 : vector<8x32xf32>
      %112 = arith.addf %100, %111 : vector<8x32xf32>
      %cst_79 = arith.constant dense<0.000000e+00> : vector<8xf32>
      %113 = vector.multi_reduction <add>, %112, %cst_79 [1] : vector<8x32xf32> to vector<8xf32>
      %114 = vector.shape_cast %113 : vector<8xf32> to vector<8x1xf32>
      %cst_80 = arith.constant 3.200000e+01 : f32
      %115 = vector.broadcast %cst_80 : f32 to vector<8x1xf32>
      %116 = arith.divf %114, %115 : vector<8x1xf32>
      %117 = vector.broadcast %116 : vector<8x1xf32> to vector<8x32xf32>
      %118 = arith.subf %112, %117 : vector<8x32xf32>
      %119 = arith.mulf %118, %118 : vector<8x32xf32>
      %cst_81 = arith.constant dense<0.000000e+00> : vector<8xf32>
      %120 = vector.multi_reduction <add>, %119, %cst_81 [1] : vector<8x32xf32> to vector<8xf32>
      %121 = vector.shape_cast %120 : vector<8xf32> to vector<8x1xf32>
      %cst_82 = arith.constant 3.200000e+01 : f32
      %122 = vector.broadcast %cst_82 : f32 to vector<8x1xf32>
      %123 = arith.divf %121, %122 : vector<8x1xf32>
      %124 = vector.broadcast %116 : vector<8x1xf32> to vector<8x32xf32>
      %125 = arith.subf %112, %124 : vector<8x32xf32>
      %cst_83 = arith.constant 9.99999974E-6 : f32
      %126 = vector.broadcast %cst_83 : f32 to vector<8x1xf32>
      %127 = arith.addf %123, %126 : vector<8x1xf32>
      %128 = math.rsqrt %127 : vector<8x1xf32>
      %129 = vector.broadcast %128 : vector<8x1xf32> to vector<8x32xf32>
      %130 = arith.mulf %125, %129 : vector<8x32xf32>
      %131 = vector.broadcast %65 : vector<1x32xf32> to vector<8x32xf32>
      %132 = arith.mulf %130, %131 : vector<8x32xf32>
      %133 = vector.broadcast %66 : vector<1x32xf32> to vector<8x32xf32>
      %134 = arith.addf %132, %133 : vector<8x32xf32>
      %135 = vector.shape_cast %134 : vector<8x32xf32> to vector<4x2x32xf32>
      %c0_84 = arith.constant 0 : index
      %c0_85 = arith.constant 0 : index
      %c0_86 = arith.constant 0 : index
      %136 = vector.load %arg16[%c0_84, %c0_85, %c0_86] : memref<4x2x32xf32, #tpu.memory_space<vmem>>, vector<4x2x32xf32>
      tpu.vector_store %arg16[%c0_84, %c0_85, %c0_86], %135 {strides = array<i32>} : memref<4x2x32xf32, #tpu.memory_space<vmem>>, vector<4x2x32xf32>,
    } else {
    }
    return
  }
  func.func @transform_0(%arg0: i32, %arg1: i32) -> (i32, i32, i32) {
    %c0_i32 = arith.constant 0 : i32
    %c0_i32_0 = arith.constant 0 : i32
    %c0_i32_1 = arith.constant 0 : i32
    return %arg0, %c0_i32, %c0_i32_0 : i32, i32, i32
  }
  func.func @transform_1(%arg0: i32, %arg1: i32) -> (i32, i32, i32) {
    %c0_i32 = arith.constant 0 : i32
    %c0_i32_0 = arith.constant 0 : i32
    %c0_i32_1 = arith.constant 0 : i32
    return %arg1, %c0_i32, %c0_i32_0 : i32, i32, i32
  }
  func.func @transform_2(%arg0: i32, %arg1: i32) -> (i32, i32, i32, i32) {
    %c0_i32 = arith.constant 0 : i32
    %c0_i32_0 = arith.constant 0 : i32
    %c0_i32_1 = arith.constant 0 : i32
    return %arg1, %arg0, %c0_i32, %c0_i32_0 : i32, i32, i32, i32
  }
  func.func @transform_3(%arg0: i32, %arg1: i32) -> (i32, i32) {
    %c0_i32 = arith.constant 0 : i32
    %c0_i32_0 = arith.constant 0 : i32
    %c0_i32_1 = arith.constant 0 : i32
    return %c0_i32, %c0_i32_0 : i32, i32
  }
  func.func @transform_4(%arg0: i32, %arg1: i32) -> (i32, i32) {
    %c0_i32 = arith.constant 0 : i32
    %c0_i32_0 = arith.constant 0 : i32
    %c0_i32_1 = arith.constant 0 : i32
    return %c0_i32, %c0_i32_0 : i32, i32
  }
  func.func @transform_5(%arg0: i32, %arg1: i32) -> (i32, i32) {
    %c0_i32 = arith.constant 0 : i32
    %c0_i32_0 = arith.constant 0 : i32
    %c0_i32_1 = arith.constant 0 : i32
    return %c0_i32, %c0_i32_0 : i32, i32
  }
  func.func @transform_6(%arg0: i32, %arg1: i32) -> (i32, i32) {
    %c0_i32 = arith.constant 0 : i32
    %c0_i32_0 = arith.constant 0 : i32
    %c0_i32_1 = arith.constant 0 : i32
    return %c0_i32, %c0_i32_0 : i32, i32
  }
  func.func @transform_7(%arg0: i32, %arg1: i32) -> (i32, i32) {
    %c0_i32 = arith.constant 0 : i32
    %c0_i32_0 = arith.constant 0 : i32
    %c0_i32_1 = arith.constant 0 : i32
    return %c0_i32, %c0_i32_0 : i32, i32
  }
  func.func @transform_8(%arg0: i32, %arg1: i32) -> (i32, i32) {
    %c0_i32 = arith.constant 0 : i32
    %c0_i32_0 = arith.constant 0 : i32
    %c0_i32_1 = arith.constant 0 : i32
    return %c0_i32, %c0_i32_0 : i32, i32
  }
  func.func @transform_9(%arg0: i32, %arg1: i32) -> (i32, i32) {
    %c0_i32 = arith.constant 0 : i32
    %c0_i32_0 = arith.constant 0 : i32
    %c0_i32_1 = arith.constant 0 : i32
    return %c0_i32, %c0_i32_0 : i32, i32
  }
  func.func @transform_10(%arg0: i32, %arg1: i32) -> (i32, i32) {
    %c0_i32 = arith.constant 0 : i32
    %c0_i32_0 = arith.constant 0 : i32
    %c0_i32_1 = arith.constant 0 : i32
    return %c0_i32, %c0_i32_0 : i32, i32
  }
  func.func @transform_11(%arg0: i32, %arg1: i32) -> (i32, i32) {
    %c0_i32 = arith.constant 0 : i32
    %c0_i32_0 = arith.constant 0 : i32
    %c0_i32_1 = arith.constant 0 : i32
    return %c0_i32, %c0_i32_0 : i32, i32
  }
  func.func @transform_12(%arg0: i32, %arg1: i32) -> (i32, i32) {
    %c0_i32 = arith.constant 0 : i32
    %c0_i32_0 = arith.constant 0 : i32
    %c0_i32_1 = arith.constant 0 : i32
    return %c0_i32, %c0_i32_0 : i32, i32
  }
  func.func @transform_13(%arg0: i32, %arg1: i32) -> (i32, i32) {
    %c0_i32 = arith.constant 0 : i32
    %c0_i32_0 = arith.constant 0 : i32
    %c0_i32_1 = arith.constant 0 : i32
    return %c0_i32, %c0_i32_0 : i32, i32
  }
  func.func @transform_14(%arg0: i32, %arg1: i32) -> (i32, i32, i32) {
    %c0_i32 = arith.constant 0 : i32
    %c0_i32_0 = arith.constant 0 : i32
    %c0_i32_1 = arith.constant 0 : i32
    return %arg0, %c0_i32, %c0_i32_0 : i32, i32, i32
  }
}

</mosaic_0001>

<llo_original>
// kernel: tpu_custom_call.1
$region0: #{tpu_custom_call.1}
  #allocation0 [shape = 'u32[]', space=smem, size = 0x4, offset = 0x4, fixed_abs, tag = 'smem constant byte address 0x4 - core index']
  #allocation1 [shape = 'u32[144,128]{1,0:T(1,128)}', space=vmem, size = 0x12000, scoped, tag = 'internal scratch']
  #allocation2 [shape = 'f32[4,2,32]{2,1,0:T(2,128)}', space=vmem, size = 0x1000, scoped, tag = 'scratch operand']
  #allocation3 [shape = 'f32[4,2,32]{2,1,0:T(2,128)}', space=vmem, size = 0x1000, scoped, tag = 'scratch operand']
  #allocation4 [shape = 'f32[4,2,32]{2,1,0:T(2,128)}', space=vmem, size = 0x1000, scoped, tag = 'scratch operand']
  #allocation5 [shape = 'f32[4,2,32]{2,1,0:T(2,128)}', space=vmem, size = 0x1000, scoped, tag = 'scratch operand']
  #allocation17 [shape = 's32[]', space=sflag, size = 0x4, offset = 0, fixed_abs, tag = 'sflag constant byte address 0x0 - dummy sync flag']
  %s0 = inlined_call_operand.hbm [shape: f32[8,2,32], index: 0, kind: input, shape index: {}]
  %s1 = inlined_call_operand.hbm [shape: f32[8,2,32], index: 1, kind: input, shape index: {}]
  %s2 = inlined_call_operand.hbm [shape: f32[8,8,2,32], index: 2, kind: input, shape index: {}]
  %s3 = inlined_call_operand.vmem [shape: f32[32,32], index: 3, kind: input, shape index: {}]
  %s4 = inlined_call_operand.vmem [shape: f32[1,32], index: 4, kind: input, shape index: {}]
  %s5 = inlined_call_operand.vmem [shape: f32[32,64], index: 5, kind: input, shape index: {}]
  %s6 = inlined_call_operand.vmem [shape: f32[1,64], index: 6, kind: input, shape index: {}]
  %s7 = inlined_call_operand.vmem [shape: f32[32,64], index: 7, kind: input, shape index: {}]
  %s8 = inlined_call_operand.hbm [shape: f32[32,32], index: 8, kind: input, shape index: {}]
  %s9 = inlined_call_operand.hbm [shape: f32[32,32], index: 9, kind: input, shape index: {}]
  %s10 = inlined_call_operand.hbm [shape: f32[32,64], index: 10, kind: input, shape index: {}]
  %s11 = inlined_call_operand.vmem [shape: f32[1,64], index: 11, kind: input, shape index: {}]
  %s12 = inlined_call_operand.vmem [shape: f32[64,32], index: 12, kind: input, shape index: {}]
  %s13 = inlined_call_operand.vmem [shape: f32[6,32], index: 13, kind: input, shape index: {}]
  %s14 = inlined_call_operand.hbm [shape: f32[8,2,32], index: 14, kind: output, shape index: {}]
  %s15 = sld [smem:[#allocation0]]
  $region121: #{tpu_custom_call.1} parent=0
    _
  %s17 = ssub.s32 1, %s15
  %s18 = scalar_select 0, %s17, %s15
  $region1: #{tpu_custom_call.1} parent=0
    #allocation6 [shape = 'u8[8192]{0}', space=vmem, size = 0x2000, scoped, tag = 'input window, operand 0']
    #allocation7 [shape = 's32[2]{0}', space=sflag, size = 0x8, scoped, tag = 'scoped memory for tpu_custom_call.1']
    #allocation8 [shape = 's32[2]{0}', space=sflag, size = 0x8, scoped, tag = 'scoped memory for tpu_custom_call.1']
    #allocation9 [shape = 'u8[8192]{0}', space=vmem, size = 0x2000, scoped, tag = 'input window, operand 1, single buffered']
    #allocation10 [shape = 's32[1]{0}', space=sflag, size = 0x4, scoped, tag = 'scoped memory for tpu_custom_call.1']
    #allocation11 [shape = 'u8[65536]{0}', space=vmem, size = 0x10000, scoped, tag = 'input window, operand 2']
    #allocation12 [shape = 'u8[16384]{0}', space=vmem, size = 0x4000, scoped, tag = 'input window, operand 8, single buffered']
    #allocation13 [shape = 'u8[16384]{0}', space=vmem, size = 0x4000, scoped, tag = 'input window, operand 9, single buffered']
    #allocation14 [shape = 's32[1]{0}', space=sflag, size = 0x4, scoped, tag = 'scoped memory for tpu_custom_call.1']
    #allocation15 [shape = 'u8[16384]{0}', space=vmem, size = 0x4000, scoped, tag = 'input window, operand 10, single buffered']
    #allocation16 [shape = 'u8[8192]{0}', space=vmem, size = 0x2000, scoped, tag = 'output window, operand 0']
    %19 = vsyncpa [#allocation7], 0
    %s20 = scalar_lea.sflag [#allocation7], 1
    %21 = vsyncpa %s20, 0
    %22 = vsyncpa [#allocation10], 0
    %23 = vsyncpa [#allocation14], 0
    %24 = vsyncpa [#allocation8], 0
    %s25 = scalar_lea.sflag [#allocation8], 1
    %26 = vsyncpa %s25, 0
    loop: start=0, step=1, limit=4
    $region2: #{tpu_custom_call.1} parent=1 // loop_pre_header
      _
    $region3: #{tpu_custom_call.1} parent=1 // loop_header
      %s28 = sphi 0, %s32
      %p29 = scmp.ge.s32.totalorder %s28, 4
      %s35 = sphi 0, %s47
      %s36 = sphi 0, %s43
      %s37 = sphi 0, %s35
      %s38 = sphi 0, %s36
      %s39 = sphi 0, %s37
      %s40 = sphi 0, %s38
      %s50 = sphi 0, %s52
      %s53 = sphi 0, %s50
      %s54 = sphi 0, %s53
      %s70 = sphi 0, %s54
      %s76 = sphi 0, %s78
      %s79 = sphi 0, %s76
      %s80 = sphi 0, %s79
      %s96 = sphi 0, %s80
      %s104 = sphi 0, %s106
      %s107 = sphi 0, %s104
      %s108 = sphi 0, %s107
      %s124 = sphi 0, %s108
      %s128 = sphi 0, %s128
      %s130 = sphi 0, %s128
      %s131 = sphi 0, %s130
      %s145 = sphi 0, %s131
      %s149 = sphi 0, %s149
      %s151 = sphi 0, %s149
      %s152 = sphi 0, %s151
      %s166 = sphi 0, %s152
      %s170 = sphi 0, %s170
      %s172 = sphi 0, %s170
      %s173 = sphi 0, %s172
      %s187 = sphi 0, %s173
      %s191 = sphi 0, %s191
      %s193 = sphi 0, %s191
      %s194 = sphi 0, %s193
      %s208 = sphi 0, %s194
      %s212 = sphi 0, %s212
      %s214 = sphi 0, %s212
      %s215 = sphi 0, %s214
      %s229 = sphi 0, %s215
      %s233 = sphi 0, %s233
      %s235 = sphi 0, %s233
      %s236 = sphi 0, %s235
      %s250 = sphi 0, %s236
      %s254 = sphi 0, %s254
      %s256 = sphi 0, %s254
      %s257 = sphi 0, %s256
      %s271 = sphi 0, %s257
      %s275 = sphi 0, %s275
      %s277 = sphi 0, %s275
      %s278 = sphi 0, %s277
      %s292 = sphi 0, %s278
      %s296 = sphi 0, %s296
      %s298 = sphi 0, %s296
      %s299 = sphi 0, %s298
      %s313 = sphi 0, %s299
      %s317 = sphi 0, %s317
      %s319 = sphi 0, %s317
      %s320 = sphi 0, %s319
      %s334 = sphi 0, %s320
      %s338 = sphi 0, %s338
      %s340 = sphi 0, %s338
      %s341 = sphi 0, %s340
      %s355 = sphi 0, %s341
      %s361 = sphi 0, %s363
      %s364 = sphi 0, %s361
      %s365 = sphi 0, %s364
      %s381 = sphi 0, %s365
    $region4: #{tpu_custom_call.1} parent=1 // loop_header_branch
      %31 = sbr.rel (%p29) target = $region8
    $region5: #{tpu_custom_call.1} parent=1 // loop_body
      %s33 = ssub.s32 %s28, 1
      %s34 = ssub.s32 %s28, 2
      %s41 = sadd.s32 1, %s36
      %p42 = scmp.ge.s32.totalorder %s41, 1
      %s43 = scalar_select %p42, 0, %s41
      %s44 = sadd.s32 1, %s35
      %s45 = scalar_select %p42, %s44, %s35
      %p46 = scmp.ge.s32.totalorder %s45, 2
      %s47 = scalar_select %p46, 0, %s45
      %s48 = ssub.s32 %s35, %s47
      %p49 = scmp.eq.s32.totalorder %s48, 0
      %s51 = sadd.s32 %s50, 1
      %s52 = scalar_select %p49, %s50, %s51
      %p55 = pneg %p49
      %p56 = scmp.eq.s32.totalorder %s28, 1
      %p57 = por %p55, %p56
      %p58 = scmp.ne.s32.totalorder %s50, %s53
      %p59 = scmp.eq.s32.totalorder %s28, 0
      %p60 = por %p58, %p59
      %p61 = scmp.ne.s32.totalorder %s50, %s53
      %p62 = scmp.eq.s32.totalorder %s33, 1
      %p63 = por %p61, %p62
      %p64 = scmp.ne.s32.totalorder %s53, %s54
      %p65 = scmp.eq.s32.totalorder %s33, 0
      %p66 = por %p64, %p65
      %p67 = scmp.ne.s32.totalorder %s53, %s54
      %p68 = scmp.eq.s32.totalorder %s34, 1
      %p69 = por %p67, %p68
      %p71 = scmp.ne.s32.totalorder %s54, %s70
      %p72 = scmp.eq.s32.totalorder %s34, 0
      %p73 = por %p71, %p72
      %s74 = ssub.s32 %s36, %s43
      %p75 = scmp.eq.s32.totalorder %s74, 0
      %s77 = sadd.s32 %s76, 1
      %s78 = scalar_select %p75, %s76, %s77
      %p81 = pneg %p75
      %p82 = scmp.eq.s32.totalorder %s28, 1
      %p83 = por %p81, %p82
      %p84 = scmp.ne.s32.totalorder %s76, %s79
      %p85 = scmp.eq.s32.totalorder %s28, 0
      %p86 = por %p84, %p85
      %p87 = scmp.ne.s32.totalorder %s76, %s79
      %p88 = scmp.eq.s32.totalorder %s33, 1
      %p89 = por %p87, %p88
      %p90 = scmp.ne.s32.totalorder %s79, %s80
      %p91 = scmp.eq.s32.totalorder %s33, 0
      %p92 = por %p90, %p91
      %p93 = scmp.ne.s32.totalorder %s79, %s80
      %p94 = scmp.eq.s32.totalorder %s34, 1
      %p95 = por %p93, %p94
      %p97 = scmp.ne.s32.totalorder %s80, %s96
      %p98 = scmp.eq.s32.totalorder %s34, 0
      %p99 = por %p97, %p98
      %s100 = ssub.s32 %s36, %s43
      %s101 = ssub.s32 %s35, %s47
      %s102 = sor.u32 %s100, %s101
      %p103 = scmp.eq.s32.totalorder %s102, 0
      %s105 = sadd.s32 %s104, 1
      %s106 = scalar_select %p103, %s104, %s105
      %p109 = pneg %p103
      %p110 = scmp.eq.s32.totalorder %s28, 1
      %p111 = por %p109, %p110
      %p112 = scmp.ne.s32.totalorder %s104, %s107
      %p113 = scmp.eq.s32.totalorder %s28, 0
      %p114 = por %p112, %p113
      %p115 = scmp.ne.s32.totalorder %s104, %s107
      %p116 = scmp.eq.s32.totalorder %s33, 1
      %p117 = por %p115, %p116
      %p118 = scmp.ne.s32.totalorder %s107, %s108
      %p119 = scmp.eq.s32.totalorder %s33, 0
      %p120 = por %p118, %p119
      %p121 = scmp.ne.s32.totalorder %s107, %s108
      %p122 = scmp.eq.s32.totalorder %s34, 1
      %p123 = por %p121, %p122
      %p125 = scmp.ne.s32.totalorder %s108, %s124
      %p126 = scmp.eq.s32.totalorder %s34, 0
      %p127 = por %p125, %p126
      %s129 = sadd.s32 %s128, 1
      %p132 = scmp.eq.s32.totalorder %s28, 1
      %p133 = scmp.ne.s32.totalorder %s128, %s130
      %p134 = scmp.eq.s32.totalorder %s28, 0
      %p135 = por %p133, %p134
      %p136 = scmp.ne.s32.totalorder %s128, %s130
      %p137 = scmp.eq.s32.totalorder %s33, 1
      %p138 = por %p136, %p137
      %p139 = scmp.ne.s32.totalorder %s130, %s131
      %p140 = scmp.eq.s32.totalorder %s33, 0
      %p141 = por %p139, %p140
      %p142 = scmp.ne.s32.totalorder %s130, %s131
      %p143 = scmp.eq.s32.totalorder %s34, 1
      %p144 = por %p142, %p143
      %p146 = scmp.ne.s32.totalorder %s131, %s145
      %p147 = scmp.eq.s32.totalorder %s34, 0
      %p148 = por %p146, %p147
      %s150 = sadd.s32 %s149, 1
      %p153 = scmp.eq.s32.totalorder %s28, 1
      %p154 = scmp.ne.s32.totalorder %s149, %s151
      %p155 = scmp.eq.s32.totalorder %s28, 0
      %p156 = por %p154, %p155
      %p157 = scmp.ne.s32.totalorder %s149, %s151
      %p158 = scmp.eq.s32.totalorder %s33, 1
      %p159 = por %p157, %p158
      %p160 = scmp.ne.s32.totalorder %s151, %s152
      %p161 = scmp.eq.s32.totalorder %s33, 0
      %p162 = por %p160, %p161
      %p163 = scmp.ne.s32.totalorder %s151, %s152
      %p164 = scmp.eq.s32.totalorder %s34, 1
      %p165 = por %p163, %p164
      %p167 = scmp.ne.s32.totalorder %s152, %s166
      %p168 = scmp.eq.s32.totalorder %s34, 0
      %p169 = por %p167, %p168
      %s171 = sadd.s32 %s170, 1
      %p174 = scmp.eq.s32.totalorder %s28, 1
      %p175 = scmp.ne.s32.totalorder %s170, %s172
      %p176 = scmp.eq.s32.totalorder %s28, 0
      %p177 = por %p175, %p176
      %p178 = scmp.ne.s32.totalorder %s170, %s172
      %p179 = scmp.eq.s32.totalorder %s33, 1
      %p180 = por %p178, %p179
      %p181 = scmp.ne.s32.totalorder %s172, %s173
      %p182 = scmp.eq.s32.totalorder %s33, 0
      %p183 = por %p181, %p182
      %p184 = scmp.ne.s32.totalorder %s172, %s173
      %p185 = scmp.eq.s32.totalorder %s34, 1
      %p186 = por %p184, %p185
      %p188 = scmp.ne.s32.totalorder %s173, %s187
      %p189 = scmp.eq.s32.totalorder %s34, 0
      %p190 = por %p188, %p189
      %s192 = sadd.s32 %s191, 1
      %p195 = scmp.eq.s32.totalorder %s28, 1
      %p196 = scmp.ne.s32.totalorder %s191, %s193
      %p197 = scmp.eq.s32.totalorder %s28, 0
      %p198 = por %p196, %p197
      %p199 = scmp.ne.s32.totalorder %s191, %s193
      %p200 = scmp.eq.s32.totalorder %s33, 1
      %p201 = por %p199, %p200
      %p202 = scmp.ne.s32.totalorder %s193, %s194
      %p203 = scmp.eq.s32.totalorder %s33, 0
      %p204 = por %p202, %p203
      %p205 = scmp.ne.s32.totalorder %s193, %s194
      %p206 = scmp.eq.s32.totalorder %s34, 1
      %p207 = por %p205, %p206
      %p209 = scmp.ne.s32.totalorder %s194, %s208
      %p210 = scmp.eq.s32.totalorder %s34, 0
      %p211 = por %p209, %p210
      %s213 = sadd.s32 %s212, 1
      %p216 = scmp.eq.s32.totalorder %s28, 1
      %p217 = scmp.ne.s32.totalorder %s212, %s214
      %p218 = scmp.eq.s32.totalorder %s28, 0
      %p219 = por %p217, %p218
      %p220 = scmp.ne.s32.totalorder %s212, %s214
      %p221 = scmp.eq.s32.totalorder %s33, 1
      %p222 = por %p220, %p221
      %p223 = scmp.ne.s32.totalorder %s214, %s215
      %p224 = scmp.eq.s32.totalorder %s33, 0
      %p225 = por %p223, %p224
      %p226 = scmp.ne.s32.totalorder %s214, %s215
      %p227 = scmp.eq.s32.totalorder %s34, 1
      %p228 = por %p226, %p227
      %p230 = scmp.ne.s32.totalorder %s215, %s229
      %p231 = scmp.eq.s32.totalorder %s34, 0
      %p232 = por %p230, %p231
      %s234 = sadd.s32 %s233, 1
      %p237 = scmp.eq.s32.totalorder %s28, 1
      %p238 = scmp.ne.s32.totalorder %s233, %s235
      %p239 = scmp.eq.s32.totalorder %s28, 0
      %p240 = por %p238, %p239
      %p241 = scmp.ne.s32.totalorder %s233, %s235
      %p242 = scmp.eq.s32.totalorder %s33, 1
      %p243 = por %p241, %p242
      %p244 = scmp.ne.s32.totalorder %s235, %s236
      %p245 = scmp.eq.s32.totalorder %s33, 0
      %p246 = por %p244, %p245
      %p247 = scmp.ne.s32.totalorder %s235, %s236
      %p248 = scmp.eq.s32.totalorder %s34, 1
      %p249 = por %p247, %p248
      %p251 = scmp.ne.s32.totalorder %s236, %s250
      %p252 = scmp.eq.s32.totalorder %s34, 0
      %p253 = por %p251, %p252
      %s255 = sadd.s32 %s254, 1
      %p258 = scmp.eq.s32.totalorder %s28, 1
      %p259 = scmp.ne.s32.totalorder %s254, %s256
      %p260 = scmp.eq.s32.totalorder %s28, 0
      %p261 = por %p259, %p260
      %p262 = scmp.ne.s32.totalorder %s254, %s256
      %p263 = scmp.eq.s32.totalorder %s33, 1
      %p264 = por %p262, %p263
      %p265 = scmp.ne.s32.totalorder %s256, %s257
      %p266 = scmp.eq.s32.totalorder %s33, 0
      %p267 = por %p265, %p266
      %p268 = scmp.ne.s32.totalorder %s256, %s257
      %p269 = scmp.eq.s32.totalorder %s34, 1
      %p270 = por %p268, %p269
      %p272 = scmp.ne.s32.totalorder %s257, %s271
      %p273 = scmp.eq.s32.totalorder %s34, 0
      %p274 = por %p272, %p273
      %s276 = sadd.s32 %s275, 1
      %p279 = scmp.eq.s32.totalorder %s28, 1
      %p280 = scmp.ne.s32.totalorder %s275, %s277
      %p281 = scmp.eq.s32.totalorder %s28, 0
      %p282 = por %p280, %p281
      %p283 = scmp.ne.s32.totalorder %s275, %s277
      %p284 = scmp.eq.s32.totalorder %s33, 1
      %p285 = por %p283, %p284
      %p286 = scmp.ne.s32.totalorder %s277, %s278
      %p287 = scmp.eq.s32.totalorder %s33, 0
      %p288 = por %p286, %p287
      %p289 = scmp.ne.s32.totalorder %s277, %s278
      %p290 = scmp.eq.s32.totalorder %s34, 1
      %p291 = por %p289, %p290
      %p293 = scmp.ne.s32.totalorder %s278, %s292
      %p294 = scmp.eq.s32.totalorder %s34, 0
      %p295 = por %p293, %p294
      %s297 = sadd.s32 %s296, 1
      %p300 = scmp.eq.s32.totalorder %s28, 1
      %p301 = scmp.ne.s32.totalorder %s296, %s298
      %p302 = scmp.eq.s32.totalorder %s28, 0
      %p303 = por %p301, %p302
      %p304 = scmp.ne.s32.totalorder %s296, %s298
      %p305 = scmp.eq.s32.totalorder %s33, 1
      %p306 = por %p304, %p305
      %p307 = scmp.ne.s32.totalorder %s298, %s299
      %p308 = scmp.eq.s32.totalorder %s33, 0
      %p309 = por %p307, %p308
      %p310 = scmp.ne.s32.totalorder %s298, %s299
      %p311 = scmp.eq.s32.totalorder %s34, 1
      %p312 = por %p310, %p311
      %p314 = scmp.ne.s32.totalorder %s299, %s313
      %p315 = scmp.eq.s32.totalorder %s34, 0
      %p316 = por %p314, %p315
      %s318 = sadd.s32 %s317, 1
      %p321 = scmp.eq.s32.totalorder %s28, 1
      %p322 = scmp.ne.s32.totalorder %s317, %s319
      %p323 = scmp.eq.s32.totalorder %s28, 0
      %p324 = por %p322, %p323
      %p325 = scmp.ne.s32.totalorder %s317, %s319
      %p326 = scmp.eq.s32.totalorder %s33, 1
      %p327 = por %p325, %p326
      %p328 = scmp.ne.s32.totalorder %s319, %s320
      %p329 = scmp.eq.s32.totalorder %s33, 0
      %p330 = por %p328, %p329
      %p331 = scmp.ne.s32.totalorder %s319, %s320
      %p332 = scmp.eq.s32.totalorder %s34, 1
      %p333 = por %p331, %p332
      %p335 = scmp.ne.s32.totalorder %s320, %s334
      %p336 = scmp.eq.s32.totalorder %s34, 0
      %p337 = por %p335, %p336
      %s339 = sadd.s32 %s338, 1
      %p342 = scmp.eq.s32.totalorder %s28, 1
      %p343 = scmp.ne.s32.totalorder %s338, %s340
      %p344 = scmp.eq.s32.totalorder %s28, 0
      %p345 = por %p343, %p344
      %p346 = scmp.ne.s32.totalorder %s338, %s340
      %p347 = scmp.eq.s32.totalorder %s33, 1
      %p348 = por %p346, %p347
      %p349 = scmp.ne.s32.totalorder %s340, %s341
      %p350 = scmp.eq.s32.totalorder %s33, 0
      %p351 = por %p349, %p350
      %p352 = scmp.ne.s32.totalorder %s340, %s341
      %p353 = scmp.eq.s32.totalorder %s34, 1
      %p354 = por %p352, %p353
      %p356 = scmp.ne.s32.totalorder %s341, %s355
      %p357 = scmp.eq.s32.totalorder %s34, 0
      %p358 = por %p356, %p357
      %s359 = ssub.s32 %s35, %s47
      %p360 = scmp.eq.s32.totalorder %s359, 0
      %s362 = sadd.s32 %s361, 1
      %s363 = scalar_select %p360, %s361, %s362
      %p366 = pneg %p360
      %p367 = scmp.eq.s32.totalorder %s28, 1
      %p368 = por %p366, %p367
      %p369 = scmp.ne.s32.totalorder %s361, %s364
      %p370 = scmp.eq.s32.totalorder %s28, 0
      %p371 = por %p369, %p370
      %p372 = scmp.ne.s32.totalorder %s361, %s364
      %p373 = scmp.eq.s32.totalorder %s33, 1
      %p374 = por %p372, %p373
      %p375 = scmp.ne.s32.totalorder %s364, %s365
      %p376 = scmp.eq.s32.totalorder %s33, 0
      %p377 = por %p375, %p376
      %p378 = scmp.ne.s32.totalorder %s364, %s365
      %p379 = scmp.eq.s32.totalorder %s34, 1
      %p380 = por %p378, %p379
      %p382 = scmp.ne.s32.totalorder %s365, %s381
      %p383 = scmp.eq.s32.totalorder %s34, 0
      %p384 = por %p382, %p383
      %p385 = scmp.le.s32.totalorder 1, %s28
      %p386 = scmp.lt.s32.totalorder %s28, 3
      %p387 = pnand %p385, %p386
      %p388 = pneg %p387
      // Predicated region
      $region9: #{tpu_custom_call.1} parent=5 // pred_check
        _
      $region10: #{tpu_custom_call.1} parent=5 // pred_check_branch
        %390 = sbr.rel (%p387) target = $region12
      $region11: #{tpu_custom_call.1} parent=5 // pred_region
        %s391 = ssub.s32 %s28, 1
        // Predicated region
        $region13: #{tpu_custom_call.1} parent=11 // pred_check
          %p392 = pneg %p92
        $region14: #{tpu_custom_call.1} parent=11 // pred_check_branch
          %394 = sbr.rel (%p392) target = $region16
        $region15: #{tpu_custom_call.1} parent=11 // pred_region
          %s395 = smul.u32 8, %s38
          %s397 = ssub.s32 256, 256
          %398 = vsyncadd [#allocation10], %s397
          %s399 = smul.addr %s395, 32
          %s400 = scalar_lea.hbm %s1, %s399
          %s401 = sshll.u32 [#allocation9], 4
          %s402 = int_to_ptr.vmem [resolvable:$true] %s401
          %407 = dma.hbm_to_vmem [thread:$0]  %s400, 256, %s402, [#allocation10], 32, 32, 2
        $region16: #{tpu_custom_call.1} parent=11 // pred_fallthru
          _
        // Predicated region
        $region17: #{tpu_custom_call.1} parent=11 // pred_check
          %p408 = pneg %p141
        $region18: #{tpu_custom_call.1} parent=11 // pred_check_branch
          %410 = sbr.rel (%p408) target = $region20
        $region19: #{tpu_custom_call.1} parent=11 // pred_region
          _
        $region20: #{tpu_custom_call.1} parent=11 // pred_fallthru
          _
        // Predicated region
        $region21: #{tpu_custom_call.1} parent=11 // pred_check
          %p411 = pneg %p162
        $region22: #{tpu_custom_call.1} parent=11 // pred_check_branch
          %413 = sbr.rel (%p411) target = $region24
        $region23: #{tpu_custom_call.1} parent=11 // pred_region
          _
        $region24: #{tpu_custom_call.1} parent=11 // pred_fallthru
          _
        // Predicated region
        $region25: #{tpu_custom_call.1} parent=11 // pred_check
          %p414 = pneg %p183
        $region26: #{tpu_custom_call.1} parent=11 // pred_check_branch
          %416 = sbr.rel (%p414) target = $region28
        $region27: #{tpu_custom_call.1} parent=11 // pred_region
          _
        $region28: #{tpu_custom_call.1} parent=11 // pred_fallthru
          _
        // Predicated region
        $region29: #{tpu_custom_call.1} parent=11 // pred_check
          %p417 = pneg %p204
        $region30: #{tpu_custom_call.1} parent=11 // pred_check_branch
          %419 = sbr.rel (%p417) target = $region32
        $region31: #{tpu_custom_call.1} parent=11 // pred_region
          _
        $region32: #{tpu_custom_call.1} parent=11 // pred_fallthru
          _
        // Predicated region
        $region33: #{tpu_custom_call.1} parent=11 // pred_check
          %p420 = pneg %p225
        $region34: #{tpu_custom_call.1} parent=11 // pred_check_branch
          %422 = sbr.rel (%p420) target = $region36
        $region35: #{tpu_custom_call.1} parent=11 // pred_region
          _
        $region36: #{tpu_custom_call.1} parent=11 // pred_fallthru
          _
        // Predicated region
        $region37: #{tpu_custom_call.1} parent=11 // pred_check
          %p423 = pneg %p246
        $region38: #{tpu_custom_call.1} parent=11 // pred_check_branch
          %425 = sbr.rel (%p423) target = $region40
        $region39: #{tpu_custom_call.1} parent=11 // pred_region
          %s427 = ssub.s32 512, 512
          %428 = vsyncadd [#allocation10], %s427
          %s429 = sshll.u32 [#allocation12], 4
          %s430 = int_to_ptr.vmem [resolvable:$true] %s429
          %435 = dma.hbm_to_vmem [thread:$0]  %s8, 512, %s430, [#allocation10], 128, 128, 8
        $region40: #{tpu_custom_call.1} parent=11 // pred_fallthru
          _
        // Predicated region
        $region41: #{tpu_custom_call.1} parent=11 // pred_check
          %p436 = pneg %p267
        $region42: #{tpu_custom_call.1} parent=11 // pred_check_branch
          %438 = sbr.rel (%p436) target = $region44
        $region43: #{tpu_custom_call.1} parent=11 // pred_region
          %s440 = ssub.s32 512, 512
          %441 = vsyncadd [#allocation14], %s440
          %s442 = sshll.u32 [#allocation13], 4
          %s443 = int_to_ptr.vmem [resolvable:$true] %s442
          %448 = dma.hbm_to_vmem [thread:$0]  %s9, 512, %s443, [#allocation14], 128, 128, 8
        $region44: #{tpu_custom_call.1} parent=11 // pred_fallthru
          _
        // Predicated region
        $region45: #{tpu_custom_call.1} parent=11 // pred_check
          %p449 = pneg %p288
        $region46: #{tpu_custom_call.1} parent=11 // pred_check_branch
          %451 = sbr.rel (%p449) target = $region48
        $region47: #{tpu_custom_call.1} parent=11 // pred_region
          %s453 = ssub.s32 512, 512
          %454 = vsyncadd [#allocation14], %s453
          %s455 = sshll.u32 [#allocation15], 4
          %s456 = int_to_ptr.vmem [resolvable:$true] %s455
          %461 = dma.hbm_to_vmem [thread:$0]  %s10, 512, %s456, [#allocation14], 128, 128, 8
        $region48: #{tpu_custom_call.1} parent=11 // pred_fallthru
          _
        // Predicated region
        $region49: #{tpu_custom_call.1} parent=11 // pred_check
          %p462 = pneg %p309
        $region50: #{tpu_custom_call.1} parent=11 // pred_check_branch
          %464 = sbr.rel (%p462) target = $region52
        $region51: #{tpu_custom_call.1} parent=11 // pred_region
          _
        $region52: #{tpu_custom_call.1} parent=11 // pred_fallthru
          _
        // Predicated region
        $region53: #{tpu_custom_call.1} parent=11 // pred_check
          %p465 = pneg %p330
        $region54: #{tpu_custom_call.1} parent=11 // pred_check_branch
          %467 = sbr.rel (%p465) target = $region56
        $region55: #{tpu_custom_call.1} parent=11 // pred_region
          _
        $region56: #{tpu_custom_call.1} parent=11 // pred_fallthru
          _
        // Predicated region
        $region57: #{tpu_custom_call.1} parent=11 // pred_check
          %p468 = pneg %p351
        $region58: #{tpu_custom_call.1} parent=11 // pred_check_branch
          %470 = sbr.rel (%p468) target = $region60
        $region59: #{tpu_custom_call.1} parent=11 // pred_region
          _
        $region60: #{tpu_custom_call.1} parent=11 // pred_fallthru
          _
      $region12: #{tpu_custom_call.1} parent=5 // pred_fallthru
        _
      %p471 = scmp.lt.s32.totalorder %s28, 2
      // Predicated region
      $region61: #{tpu_custom_call.1} parent=5 // pred_check
        %p472 = pneg %p471
      $region62: #{tpu_custom_call.1} parent=5 // pred_check_branch
        %474 = sbr.rel (%p472) target = $region64
      $region63: #{tpu_custom_call.1} parent=5 // pred_region
        // Predicated region
        $region65: #{tpu_custom_call.1} parent=63 // pred_check
          %p475 = pneg %p60
        $region66: #{tpu_custom_call.1} parent=63 // pred_check_branch
          %477 = sbr.rel (%p475) target = $region68
        $region67: #{tpu_custom_call.1} parent=63 // pred_region
          %s478 = sand.u32 %s28, 1
          %s479 = scalar_lea.sflag [#allocation7], %s478
          %s480 = sand.u32 %s50, 1
          %s481 = smul.addr %s480, 8
          %s482 = scalar_lea.vmem [#allocation6], %s481
          %s483 = smul.u32 4, %s35
          %s485 = ssub.s32 128, 128
          %486 = vsyncadd %s479, %s485
          %s487 = smul.addr %s483, 32
          %s488 = scalar_lea.hbm %s0, %s487
          %s489 = sshll.u32 %s482, 4
          %s490 = int_to_ptr.vmem [resolvable:$true] %s489
          %495 = dma.hbm_to_vmem [thread:$0]  %s488, 128, %s490, %s479, 32, 32, 2
        $region68: #{tpu_custom_call.1} parent=63 // pred_fallthru
          _
        // Predicated region
        $region69: #{tpu_custom_call.1} parent=63 // pred_check
          %p496 = pneg %p114
        $region70: #{tpu_custom_call.1} parent=63 // pred_check_branch
          %498 = sbr.rel (%p496) target = $region72
        $region71: #{tpu_custom_call.1} parent=63 // pred_region
          #allocation18 [shape = 'u32[6]{0}', space=smem, size = 0x18, scoped, tag = 'DMA stride descriptor']
          %s499 = sand.u32 %s28, 1
          %s500 = scalar_lea.sflag [#allocation7], %s499
          %s501 = sand.u32 %s104, 1
          %s502 = smul.addr %s501, 64
          %s503 = scalar_lea.vmem [#allocation11], %s502
          %s504 = smul.u32 8, %s36
          %s505 = smul.u32 4, %s35
          %s507 = ssub.s32 1024, 1024
          %508 = vsyncadd %s500, %s507
          %s509 = smul.addr %s504, 8
          %s510 = sadd.s32 %s505, %s509
          %s511 = smul.addr %s510, 32
          %s512 = scalar_lea.hbm %s2, %s511
          %s514 = sshll.u32 1, 14
          %s515 = sxor.u32 4294967295, %s514
          %s517 = sld [smem:[#allocation0]]
          %s518 = sadd.s32 2, %s517
          %s520 = sshll.u32 7, 26
          %s521 = sxor.u32 4294967295, %s520
          %s522 = sand.u32 0, %s521
          %s523 = sshll.u32 %s518, 26
          %s524 = sor.u32 %s522, %s523
          %s525 = sshll.u32 %s503, 4
          %s526 = int_to_ptr.vmem [resolvable:$true] %s525
          %532 = sst [smem:[#allocation18]] 256
          %s533 = scalar_lea.smem [#allocation18], 1
          %534 = sst [smem:[%s533]] 128
          %s535 = scalar_lea.smem [#allocation18], 2
          %536 = sst [smem:[%s535]] 4
          %s537 = scalar_lea.smem [#allocation18], 3
          %538 = sst [smem:[%s537]] 32
          %s539 = scalar_lea.smem [#allocation18], 4
          %540 = sst [smem:[%s539]] 32
          %s541 = scalar_lea.smem [#allocation18], 5
          %542 = sst [smem:[%s541]] 2
          %544 = dma.general %s512, 1024, %s526, %s500, [#allocation17], [#allocation18], %s524, 0
        $region72: #{tpu_custom_call.1} parent=63 // pred_fallthru
          _
      $region64: #{tpu_custom_call.1} parent=5 // pred_fallthru
        _
      %p545 = scmp.le.s32.totalorder 1, %s28
      %p546 = scmp.lt.s32.totalorder %s28, 3
      %p547 = pnand %p545, %p546
      %p548 = pneg %p547
      // Predicated region
      $region73: #{tpu_custom_call.1} parent=5 // pred_check
        _
      $region74: #{tpu_custom_call.1} parent=5 // pred_check_branch
        %550 = sbr.rel (%p547) target = $region76
      $region75: #{tpu_custom_call.1} parent=5 // pred_region
        %s551 = ssub.s32 %s28, 1
        %s552 = sand.u32 %s33, 1
        %s553 = scalar_lea.sflag [#allocation7], %s552
        %s554 = sand.u32 %s53, 1
        %s555 = smul.addr %s554, 8
        %s556 = scalar_lea.vmem [#allocation6], %s555
        // Predicated region
        $region77: #{tpu_custom_call.1} parent=75 // pred_check
          %p557 = pneg %p66
        $region78: #{tpu_custom_call.1} parent=75 // pred_check_branch
          %559 = sbr.rel (%p557) target = $region80
        $region79: #{tpu_custom_call.1} parent=75 // pred_region
          %560 = dma.done %s553, 128
        $region80: #{tpu_custom_call.1} parent=75 // pred_fallthru
          _
        // Predicated region
        $region81: #{tpu_custom_call.1} parent=75 // pred_check
          %p561 = pneg %p92
        $region82: #{tpu_custom_call.1} parent=75 // pred_check_branch
          %563 = sbr.rel (%p561) target = $region84
        $region83: #{tpu_custom_call.1} parent=75 // pred_region
          %564 = dma.done [#allocation10], 256
        $region84: #{tpu_custom_call.1} parent=75 // pred_fallthru
          _
        %s565 = sand.u32 %s33, 1
        %s566 = scalar_lea.sflag [#allocation7], %s565
        %s567 = sand.u32 %s107, 1
        %s568 = smul.addr %s567, 64
        %s569 = scalar_lea.vmem [#allocation11], %s568
        // Predicated region
        $region85: #{tpu_custom_call.1} parent=75 // pred_check
          %p570 = pneg %p120
        $region86: #{tpu_custom_call.1} parent=75 // pred_check_branch
          %572 = sbr.rel (%p570) target = $region88
        $region87: #{tpu_custom_call.1} parent=75 // pred_region
          %573 = dma.done %s566, 1024
        $region88: #{tpu_custom_call.1} parent=75 // pred_fallthru
          _
        // Predicated region
        $region89: #{tpu_custom_call.1} parent=75 // pred_check
          %p574 = pneg %p246
        $region90: #{tpu_custom_call.1} parent=75 // pred_check_branch
          %576 = sbr.rel (%p574) target = $region92
        $region91: #{tpu_custom_call.1} parent=75 // pred_region
          %577 = dma.done [#allocation10], 512
        $region92: #{tpu_custom_call.1} parent=75 // pred_fallthru
          _
        // Predicated region
        $region93: #{tpu_custom_call.1} parent=75 // pred_check
          %p578 = pneg %p267
        $region94: #{tpu_custom_call.1} parent=75 // pred_check_branch
          %580 = sbr.rel (%p578) target = $region96
        $region95: #{tpu_custom_call.1} parent=75 // pred_region
          %581 = dma.done [#allocation14], 512
        $region96: #{tpu_custom_call.1} parent=75 // pred_fallthru
          _
        // Predicated region
        $region97: #{tpu_custom_call.1} parent=75 // pred_check
          %p582 = pneg %p288
        $region98: #{tpu_custom_call.1} parent=75 // pred_check_branch
          %584 = sbr.rel (%p582) target = $region100
        $region99: #{tpu_custom_call.1} parent=75 // pred_region
          %585 = dma.done [#allocation14], 512
        $region100: #{tpu_custom_call.1} parent=75 // pred_fallthru
          _
        %s586 = sand.u32 %s33, 1
        %s587 = scalar_lea.sflag [#allocation7], %s586
        %s588 = sand.u32 %s53, 1
        %s589 = smul.addr %s588, 8
        %s590 = scalar_lea.vmem [#allocation6], %s589
        %p591 = pneg %p66
        %p592 = pneg %p63
        %p593 = pneg %p92
        %p594 = pneg %p89
        %s595 = sand.u32 %s33, 1
        %s596 = scalar_lea.sflag [#allocation7], %s595
        %s597 = sand.u32 %s107, 1
        %s598 = smul.addr %s597, 64
        %s599 = scalar_lea.vmem [#allocation11], %s598
        %p600 = pneg %p120
        %p601 = pneg %p117
        %p602 = pneg %p141
        %p603 = pneg %p138
        %p604 = pneg %p162
        %p605 = pneg %p159
        %p606 = pneg %p183
        %p607 = pneg %p180
        %p608 = pneg %p204
        %p609 = pneg %p201
        %p610 = pneg %p225
        %p611 = pneg %p222
        %p612 = pneg %p246
        %p613 = pneg %p243
        %p614 = pneg %p267
        %p615 = pneg %p264
        %p616 = pneg %p288
        %p617 = pneg %p285
        %p618 = pneg %p309
        %p619 = pneg %p306
        %p620 = pneg %p330
        %p621 = pneg %p327
        %p622 = pneg %p351
        %p623 = pneg %p348
        %p624 = pneg %p377
        %p625 = pneg %p374
        %s626 = sand.u32 %s364, 1
        %s627 = scalar_lea.sflag [#allocation8], %s626
        %s628 = sand.u32 %s364, 1
        %s629 = smul.addr %s628, 8
        %s630 = scalar_lea.vmem [#allocation16], %s629
        %s631 = smul.u32 4, %s37
        %s632 = smul.u32 8, %s38
        %s633 = smul.u32 8, %s38
        %s634 = smul.u32 4, %s37
        %s635 = smul.u32 4, %s37
        %p636 = scmp.eq.s32.totalorder %s38, 0
        // Predicated region
        $region101: #{tpu_custom_call.1} parent=75 // pred_check
          %p637 = pneg %p636
        $region102: #{tpu_custom_call.1} parent=75 // pred_check_branch
          %639 = sbr.rel (%p637) target = $region104
        $region103: #{tpu_custom_call.1} parent=75 // pred_region
          %v640 = vld [vmem:[%s556] sm:$0x3]
          %v641 = vld [vmem:[%s556 + $0x2] sm:$0x3]
          %v642 = vld [vmem:[%s556 + $0x4] sm:$0x3]
          %v643 = vld [vmem:[%s556 + $0x6] sm:$0x3]
          %v644 = vld [vmem:[%s3] sm:$0xff]
          %v645 = vld [vmem:[%s3 + $0x8] sm:$0xff]
          %v646 = vld [vmem:[%s3 + $0x10] sm:$0xff]
          %v647 = vld [vmem:[%s3 + $0x18] sm:$0xff]
          %v648 = vld [vmem:[%s4] sm:$0x1]
          %v650 = vlaneseq
          %v651 = vshrl.u32 %v650, 7
          %v652 = vsub.s32 0, %v651
          %v653 = vrot.slane %v648, %v652
          %v659 = vcombine.low %v640, %v641
          %v660 = vcombine.low %v642, %v643
          %v662 = vunpack.c.l.s4 1983009808
          %v663 = vunpack.c.0.s8 %v662
          %v664 = vlaneseq
          %v665 = vshrl.u32 %v664, 7
          %v666 = vsub.s32 %v663, %v665
          %v667 = vrot.slane %v659, %v666
          %v669 = vunpack.c.l.s4 1983009808
          %v670 = vunpack.c.0.s8 %v669
          %v671 = vlaneseq
          %v672 = vshrl.u32 %v671, 7
          %v673 = vsub.s32 %v670, %v672
          %v674 = vrot.slane %v660, %v673
          %v675 = vcombine.low %v667, %v674
          %vm676 = vcmask 261120
          %v677 = vsel %vm676, %v675, 0
          %679 = vmatprep.subr.mxu0 0.0
          %680 = vmatpush1.msra.mxu0 %v644
          %681 = vmatprep.subr.mxu0 0.0
          %682 = vmatpush1.msra.mxu0 %v645
          %683 = vmatprep.subr.mxu0 0.0
          %684 = vmatpush1.msra.mxu0 %v646
          %685 = vmatprep.subr.mxu0 0.0
          %686 = vmatpush1.msra.mxu0 %v647
          %687 = vmatprep.subr.mxu0 0.0
          %688 = vmatpush1.msra.mxu0 0.0
          %689 = vmatprep.subr.mxu0 0.0
          %690 = vmatpush1.msra.mxu0 0.0
          %691 = vmatprep.subr.mxu0 0.0
          %692 = vmatpush1.msra.mxu0 0.0
          %693 = vmatprep.subr.mxu0 0.0
          %694 = vmatpush1.msra.mxu0 0.0
          %695 = vmatprep.subr.mxu0 0.0
          %696 = vmatpush1.msra.mxu0 0.0
          %697 = vmatprep.subr.mxu0 0.0
          %698 = vmatpush1.msra.mxu0 0.0
          %699 = vmatprep.subr.mxu0 0.0
          %700 = vmatpush1.msra.mxu0 0.0
          %701 = vmatprep.subr.mxu0 0.0
          %702 = vmatpush1.msra.mxu0 0.0
          %703 = vmatprep.subr.mxu0 0.0
          %704 = vmatpush1.msra.mxu0 0.0
          %705 = vmatprep.subr.mxu0 0.0
          %706 = vmatpush1.msra.mxu0 0.0
          %707 = vmatprep.subr.mxu0 0.0
          %708 = vmatpush1.msra.mxu0 0.0
          %709 = vmatprep.subr.mxu0 0.0
          %710 = vmatpush1.msra.mxu0 0.0
          %711 = vmatprep.subr.mxu0 0.0
          %712 = vmatpush1.msra.mxu0 0.0
          %713 = vmatprep.subr.mxu0 0.0
          %714 = vmatpush1.msra.mxu0 0.0
          %715 = vmatprep.subr.mxu0 0.0
          %716 = vmatpush1.msra.mxu0 0.0
          %717 = vmatprep.subr.mxu0 0.0
          %718 = vmatpush1.msra.mxu0 0.0
          %719 = vmatprep.subr.mxu0 0.0
          %720 = vmatpush1.msra.mxu0 0.0
          %721 = vmatprep.subr.mxu0 0.0
          %722 = vmatpush1.msra.mxu0 0.0
          %723 = vmatprep.subr.mxu0 0.0
          %724 = vmatpush1.msra.mxu0 0.0
          %725 = vmatprep.subr.mxu0 0.0
          %726 = vmatpush1.msra.mxu0 0.0
          %727 = vmatprep.subr.mxu0 0.0
          %728 = vmatpush1.msra.mxu0 0.0
          %729 = vmatprep.subr.mxu0 0.0
          %730 = vmatpush1.msra.mxu0 0.0
          %731 = vmatprep.subr.mxu0 0.0
          %732 = vmatpush1.msra.mxu0 0.0
          %733 = vmatprep.subr.mxu0 0.0
          %734 = vmatpush1.msra.mxu0 0.0
          %735 = vmatprep.subr.mxu0 0.0
          %736 = vmatpush1.msra.mxu0 0.0
          %737 = vmatprep.subr.mxu0 0.0
          %738 = vmatpush1.msra.mxu0 0.0
          %739 = vmatprep.subr.mxu0 0.0
          %740 = vmatpush1.msra.mxu0 0.0
          %741 = vmatprep.subr.mxu0 0.0
          %742 = vmatpush1.msra.mxu0 0.0
          %743 = vmatprep.mubr.f32.mxu0 0.0
          %744 = vmatmul.mubr.f32.gmra.mrb[0].mxu0 %v677
          %v745 = vpop.f32.mrb[0].mxu0
          %v746 = vadd.f32 %v653, %v745
          %v747 = vpop.f32.mrb[0].mxu0
          %748 = vdwg.mxu0
          %v750 = vcombine.high %v746, %v746
          %v752 = vunpack.c.l.s4 1983009808
          %v753 = vunpack.c.0.s8 %v752
          %v754 = vlaneseq
          %v755 = vshrl.u32 %v754, 7
          %v756 = vsub.s32 %v753, %v755
          %v757 = vrot.slane %v746, %v756
          %v759 = vunpack.c.l.s4 1983009808
          %v760 = vunpack.c.0.s8 %v759
          %v761 = vlaneseq
          %v762 = vshrl.u32 %v761, 7
          %v763 = vsub.s32 %v760, %v762
          %v764 = vrot.slane %v750, %v763
          %v765 = vcombine.high %v757, %v757
          %v766 = vcombine.high %v764, %v764
          %vm771 = vcmask 254976
          %772 = vst.msk [vmem:[#allocation2] sm:$0x3] %vm771, %v757
          %773 = vst.msk [vmem:[#allocation2 + $0x2] sm:$0x3] %vm771, %v765
          %774 = vst.msk [vmem:[#allocation2 + $0x4] sm:$0x3] %vm771, %v764
          %775 = vst.msk [vmem:[#allocation2 + $0x6] sm:$0x3] %vm771, %v766
          %776 = vst.msk [vmem:[#allocation3] sm:$0x3] %vm771, -1e+30
          %777 = vst.msk [vmem:[#allocation3 + $0x2] sm:$0x3] %vm771, -1e+30
          %778 = vst.msk [vmem:[#allocation3 + $0x4] sm:$0x3] %vm771, -1e+30
          %779 = vst.msk [vmem:[#allocation3 + $0x6] sm:$0x3] %vm771, -1e+30
          %780 = vst.msk [vmem:[#allocation4] sm:$0x3] %vm771, 0.0
          %781 = vst.msk [vmem:[#allocation4 + $0x2] sm:$0x3] %vm771, 0.0
          %782 = vst.msk [vmem:[#allocation4 + $0x4] sm:$0x3] %vm771, 0.0
          %783 = vst.msk [vmem:[#allocation4 + $0x6] sm:$0x3] %vm771, 0.0
          %784 = vst.msk [vmem:[#allocation5] sm:$0x3] %vm771, 0.0
          %785 = vst.msk [vmem:[#allocation5 + $0x2] sm:$0x3] %vm771, 0.0
          %786 = vst.msk [vmem:[#allocation5 + $0x4] sm:$0x3] %vm771, 0.0
          %787 = vst.msk [vmem:[#allocation5 + $0x6] sm:$0x3] %vm771, 0.0
        $region104: #{tpu_custom_call.1} parent=75 // pred_fallthru
          _
        %v788 = vld [vmem:[#allocation9] sm:$0x3]
        %v789 = vld [vmem:[#allocation9 + $0x2] sm:$0x3]
        %v790 = vld [vmem:[#allocation9 + $0x4] sm:$0x3]
        %v791 = vld [vmem:[#allocation9 + $0x6] sm:$0x3]
        %v792 = vld [vmem:[#allocation9 + $0x8] sm:$0x3]
        %v793 = vld [vmem:[#allocation9 + $0xa] sm:$0x3]
        %v794 = vld [vmem:[#allocation9 + $0xc] sm:$0x3]
        %v795 = vld [vmem:[#allocation9 + $0xe] sm:$0x3]
        %v796 = vld [vmem:[%s5] sm:$0xff]
        %v797 = vld [vmem:[%s5 + $0x8] sm:$0xff]
        %v798 = vld [vmem:[%s5 + $0x10] sm:$0xff]
        %v799 = vld [vmem:[%s5 + $0x18] sm:$0xff]
        %v800 = vld [vmem:[%s6] sm:$0x1]
        %v802 = vlaneseq
        %v803 = vshrl.u32 %v802, 7
        %v804 = vsub.s32 0, %v803
        %v805 = vrot.slane %v800, %v804
        %v815 = vcombine.low %v788, %v789
        %v816 = vcombine.low %v790, %v791
        %v818 = vunpack.c.l.s4 1983009808
        %v819 = vunpack.c.0.s8 %v818
        %v820 = vlaneseq
        %v821 = vshrl.u32 %v820, 7
        %v822 = vsub.s32 %v819, %v821
        %v823 = vrot.slane %v815, %v822
        %v825 = vunpack.c.l.s4 1983009808
        %v826 = vunpack.c.0.s8 %v825
        %v827 = vlaneseq
        %v828 = vshrl.u32 %v827, 7
        %v829 = vsub.s32 %v826, %v828
        %v830 = vrot.slane %v816, %v829
        %v831 = vcombine.low %v823, %v830
        %v832 = vcombine.low %v792, %v793
        %v833 = vcombine.low %v794, %v795
        %v835 = vunpack.c.l.s4 1983009808
        %v836 = vunpack.c.0.s8 %v835
        %v837 = vlaneseq
        %v838 = vshrl.u32 %v837, 7
        %v839 = vsub.s32 %v836, %v838
        %v840 = vrot.slane %v832, %v839
        %v842 = vunpack.c.l.s4 1983009808
        %v843 = vunpack.c.0.s8 %v842
        %v844 = vlaneseq
        %v845 = vshrl.u32 %v844, 7
        %v846 = vsub.s32 %v843, %v845
        %v847 = vrot.slane %v833, %v846
        %v848 = vcombine.low %v840, %v847
        %vm849 = vcmask 261120
        %v850 = vsel %vm849, %v831, 0
        %v852 = vsel %vm849, %v848, 0
        %854 = vmatprep.subr.mxu0 0.0
        %855 = vmatpush1.msra.mxu0 %v796
        %856 = vmatprep.subr.mxu0 0.0
        %857 = vmatpush1.msra.mxu0 %v797
        %858 = vmatprep.subr.mxu0 0.0
        %859 = vmatpush1.msra.mxu0 %v798
        %860 = vmatprep.subr.mxu0 0.0
        %861 = vmatpush1.msra.mxu0 %v799
        %862 = vmatprep.subr.mxu0 0.0
        %863 = vmatpush1.msra.mxu0 0.0
        %864 = vmatprep.subr.mxu0 0.0
        %865 = vmatpush1.msra.mxu0 0.0
        %866 = vmatprep.subr.mxu0 0.0
        %867 = vmatpush1.msra.mxu0 0.0
        %868 = vmatprep.subr.mxu0 0.0
        %869 = vmatpush1.msra.mxu0 0.0
        %870 = vmatprep.subr.mxu0 0.0
        %871 = vmatpush1.msra.mxu0 0.0
        %872 = vmatprep.subr.mxu0 0.0
        %873 = vmatpush1.msra.mxu0 0.0
        %874 = vmatprep.subr.mxu0 0.0
        %875 = vmatpush1.msra.mxu0 0.0
        %876 = vmatprep.subr.mxu0 0.0
        %877 = vmatpush1.msra.mxu0 0.0
        %878 = vmatprep.subr.mxu0 0.0
        %879 = vmatpush1.msra.mxu0 0.0
        %880 = vmatprep.subr.mxu0 0.0
        %881 = vmatpush1.msra.mxu0 0.0
        %882 = vmatprep.subr.mxu0 0.0
        %883 = vmatpush1.msra.mxu0 0.0
        %884 = vmatprep.subr.mxu0 0.0
        %885 = vmatpush1.msra.mxu0 0.0
        %886 = vmatprep.subr.mxu0 0.0
        %887 = vmatpush1.msra.mxu0 0.0
        %888 = vmatprep.subr.mxu0 0.0
        %889 = vmatpush1.msra.mxu0 0.0
        %890 = vmatprep.subr.mxu0 0.0
        %891 = vmatpush1.msra.mxu0 0.0
        %892 = vmatprep.subr.mxu0 0.0
        %893 = vmatpush1.msra.mxu0 0.0
        %894 = vmatprep.subr.mxu0 0.0
        %895 = vmatpush1.msra.mxu0 0.0
        %896 = vmatprep.subr.mxu0 0.0
        %897 = vmatpush1.msra.mxu0 0.0
        %898 = vmatprep.subr.mxu0 0.0
        %899 = vmatpush1.msra.mxu0 0.0
        %900 = vmatprep.subr.mxu0 0.0
        %901 = vmatpush1.msra.mxu0 0.0
        %902 = vmatprep.subr.mxu0 0.0
        %903 = vmatpush1.msra.mxu0 0.0
        %904 = vmatprep.subr.mxu0 0.0
        %905 = vmatpush1.msra.mxu0 0.0
        %906 = vmatprep.subr.mxu0 0.0
        %907 = vmatpush1.msra.mxu0 0.0
        %908 = vmatprep.subr.mxu0 0.0
        %909 = vmatpush1.msra.mxu0 0.0
        %910 = vmatprep.subr.mxu0 0.0
        %911 = vmatpush1.msra.mxu0 0.0
        %912 = vmatprep.subr.mxu0 0.0
        %913 = vmatpush1.msra.mxu0 0.0
        %914 = vmatprep.subr.mxu0 0.0
        %915 = vmatpush1.msra.mxu0 0.0
        %916 = vmatprep.subr.mxu0 0.0
        %917 = vmatpush1.msra.mxu0 0.0
        %918 = vmatprep.mubr.f32.mxu0 0.0
        %919 = vmatmul.mubr.f32.gmra.mrb[0].mxu0 %v850
        %v920 = vpop.f32.mrb[0].mxu0
        %v921 = vadd.f32 %v805, %v920
        %v922 = vpop.f32.mrb[0].mxu0
        %923 = vmatprep.mubr.f32.mxu0 0.0
        %924 = vmatmul.mubr.f32.gmra.mrb[0].mxu0 %v852
        %v925 = vpop.f32.mrb[0].mxu0
        %v926 = vadd.f32 %v805, %v925
        %v927 = vpop.f32.mrb[0].mxu0
        %928 = vdwg.mxu0
        %v929 = vld [vmem:[%s569] sm:$0x3]
        %v930 = vld [vmem:[%s569 + $0x2] sm:$0x3]
        %v931 = vld [vmem:[%s569 + $0x4] sm:$0x3]
        %v932 = vld [vmem:[%s569 + $0x6] sm:$0x3]
        %v933 = vld [vmem:[%s569 + $0x8] sm:$0x3]
        %v934 = vld [vmem:[%s569 + $0xa] sm:$0x3]
        %v935 = vld [vmem:[%s569 + $0xc] sm:$0x3]
        %v936 = vld [vmem:[%s569 + $0xe] sm:$0x3]
        %v937 = vld [vmem:[%s569 + $0x10] sm:$0x3]
        %v938 = vld [vmem:[%s569 + $0x12] sm:$0x3]
        %v939 = vld [vmem:[%s569 + $0x14] sm:$0x3]
        %v940 = vld [vmem:[%s569 + $0x16] sm:$0x3]
        %v941 = vld [vmem:[%s569 + $0x18] sm:$0x3]
        %v942 = vld [vmem:[%s569 + $0x1a] sm:$0x3]
        %v943 = vld [vmem:[%s569 + $0x1c] sm:$0x3]
        %v944 = vld [vmem:[%s569 + $0x1e] sm:$0x3]
        %v945 = vld [vmem:[%s569 + $0x20] sm:$0x3]
        %v946 = vld [vmem:[%s569 + $0x22] sm:$0x3]
        %v947 = vld [vmem:[%s569 + $0x24] sm:$0x3]
        %v948 = vld [vmem:[%s569 + $0x26] sm:$0x3]
        %v949 = vld [vmem:[%s569 + $0x28] sm:$0x3]
        %v950 = vld [vmem:[%s569 + $0x2a] sm:$0x3]
        %v951 = vld [vmem:[%s569 + $0x2c] sm:$0x3]
        %v952 = vld [vmem:[%s569 + $0x2e] sm:$0x3]
        %v953 = vld [vmem:[%s569 + $0x30] sm:$0x3]
        %v954 = vld [vmem:[%s569 + $0x32] sm:$0x3]
        %v955 = vld [vmem:[%s569 + $0x34] sm:$0x3]
        %v956 = vld [vmem:[%s569 + $0x36] sm:$0x3]
        %v957 = vld [vmem:[%s569 + $0x38] sm:$0x3]
        %v958 = vld [vmem:[%s569 + $0x3a] sm:$0x3]
        %v959 = vld [vmem:[%s569 + $0x3c] sm:$0x3]
        %v960 = vld [vmem:[%s569 + $0x3e] sm:$0x3]
        %v961 = vld [vmem:[%s7] sm:$0xff]
        %v962 = vld [vmem:[%s7 + $0x8] sm:$0xff]
        %v963 = vld [vmem:[%s7 + $0x10] sm:$0xff]
        %v964 = vld [vmem:[%s7 + $0x18] sm:$0xff]
        %v997 = vcombine.low %v929, %v930
        %v998 = vcombine.low %v931, %v932
        %v1000 = vunpack.c.l.s4 1983009808
        %v1001 = vunpack.c.0.s8 %v1000
        %v1002 = vlaneseq
        %v1003 = vshrl.u32 %v1002, 7
        %v1004 = vsub.s32 %v1001, %v1003
        %v1005 = vrot.slane %v997, %v1004
        %v1007 = vunpack.c.l.s4 1983009808
        %v1008 = vunpack.c.0.s8 %v1007
        %v1009 = vlaneseq
        %v1010 = vshrl.u32 %v1009, 7
        %v1011 = vsub.s32 %v1008, %v1010
        %v1012 = vrot.slane %v998, %v1011
        %v1013 = vcombine.low %v1005, %v1012
        %v1014 = vcombine.low %v933, %v934
        %v1015 = vcombine.low %v935, %v936
        %v1017 = vunpack.c.l.s4 1983009808
        %v1018 = vunpack.c.0.s8 %v1017
        %v1019 = vlaneseq
        %v1020 = vshrl.u32 %v1019, 7
        %v1021 = vsub.s32 %v1018, %v1020
        %v1022 = vrot.slane %v1014, %v1021
        %v1024 = vunpack.c.l.s4 1983009808
        %v1025 = vunpack.c.0.s8 %v1024
        %v1026 = vlaneseq
        %v1027 = vshrl.u32 %v1026, 7
        %v1028 = vsub.s32 %v1025, %v1027
        %v1029 = vrot.slane %v1015, %v1028
        %v1030 = vcombine.low %v1022, %v1029
        %v1031 = vcombine.low %v937, %v938
        %v1032 = vcombine.low %v939, %v940
        %v1034 = vunpack.c.l.s4 1983009808
        %v1035 = vunpack.c.0.s8 %v1034
        %v1036 = vlaneseq
        %v1037 = vshrl.u32 %v1036, 7
        %v1038 = vsub.s32 %v1035, %v1037
        %v1039 = vrot.slane %v1031, %v1038
        %v1041 = vunpack.c.l.s4 1983009808
        %v1042 = vunpack.c.0.s8 %v1041
        %v1043 = vlaneseq
        %v1044 = vshrl.u32 %v1043, 7
        %v1045 = vsub.s32 %v1042, %v1044
        %v1046 = vrot.slane %v1032, %v1045
        %v1047 = vcombine.low %v1039, %v1046
        %v1048 = vcombine.low %v941, %v942
        %v1049 = vcombine.low %v943, %v944
        %v1051 = vunpack.c.l.s4 1983009808
        %v1052 = vunpack.c.0.s8 %v1051
        %v1053 = vlaneseq
        %v1054 = vshrl.u32 %v1053, 7
        %v1055 = vsub.s32 %v1052, %v1054
        %v1056 = vrot.slane %v1048, %v1055
        %v1058 = vunpack.c.l.s4 1983009808
        %v1059 = vunpack.c.0.s8 %v1058
        %v1060 = vlaneseq
        %v1061 = vshrl.u32 %v1060, 7
        %v1062 = vsub.s32 %v1059, %v1061
        %v1063 = vrot.slane %v1049, %v1062
        %v1064 = vcombine.low %v1056, %v1063
        %v1065 = vcombine.low %v945, %v946
        %v1066 = vcombine.low %v947, %v948
        %v1068 = vunpack.c.l.s4 1983009808
        %v1069 = vunpack.c.0.s8 %v1068
        %v1070 = vlaneseq
        %v1071 = vshrl.u32 %v1070, 7
        %v1072 = vsub.s32 %v1069, %v1071
        %v1073 = vrot.slane %v1065, %v1072
        %v1075 = vunpack.c.l.s4 1983009808
        %v1076 = vunpack.c.0.s8 %v1075
        %v1077 = vlaneseq
        %v1078 = vshrl.u32 %v1077, 7
        %v1079 = vsub.s32 %v1076, %v1078
        %v1080 = vrot.slane %v1066, %v1079
        %v1081 = vcombine.low %v1073, %v1080
        %v1082 = vcombine.low %v949, %v950
        %v1083 = vcombine.low %v951, %v952
        %v1085 = vunpack.c.l.s4 1983009808
        %v1086 = vunpack.c.0.s8 %v1085
        %v1087 = vlaneseq
        %v1088 = vshrl.u32 %v1087, 7
        %v1089 = vsub.s32 %v1086, %v1088
        %v1090 = vrot.slane %v1082, %v1089
        %v1092 = vunpack.c.l.s4 1983009808
        %v1093 = vunpack.c.0.s8 %v1092
        %v1094 = vlaneseq
        %v1095 = vshrl.u32 %v1094, 7
        %v1096 = vsub.s32 %v1093, %v1095
        %v1097 = vrot.slane %v1083, %v1096
        %v1098 = vcombine.low %v1090, %v1097
        %v1099 = vcombine.low %v953, %v954
        %v1100 = vcombine.low %v955, %v956
        %v1102 = vunpack.c.l.s4 1983009808
        %v1103 = vunpack.c.0.s8 %v1102
        %v1104 = vlaneseq
        %v1105 = vshrl.u32 %v1104, 7
        %v1106 = vsub.s32 %v1103, %v1105
        %v1107 = vrot.slane %v1099, %v1106
        %v1109 = vunpack.c.l.s4 1983009808
        %v1110 = vunpack.c.0.s8 %v1109
        %v1111 = vlaneseq
        %v1112 = vshrl.u32 %v1111, 7
        %v1113 = vsub.s32 %v1110, %v1112
        %v1114 = vrot.slane %v1100, %v1113
        %v1115 = vcombine.low %v1107, %v1114
        %v1116 = vcombine.low %v957, %v958
        %v1117 = vcombine.low %v959, %v960
        %v1119 = vunpack.c.l.s4 1983009808
        %v1120 = vunpack.c.0.s8 %v1119
        %v1121 = vlaneseq
        %v1122 = vshrl.u32 %v1121, 7
        %v1123 = vsub.s32 %v1120, %v1122
        %v1124 = vrot.slane %v1116, %v1123
        %v1126 = vunpack.c.l.s4 1983009808
        %v1127 = vunpack.c.0.s8 %v1126
        %v1128 = vlaneseq
        %v1129 = vshrl.u32 %v1128, 7
        %v1130 = vsub.s32 %v1127, %v1129
        %v1131 = vrot.slane %v1117, %v1130
        %v1132 = vcombine.low %v1124, %v1131
        %v1133 = vsel %vm849, %v1013, 0
        %v1135 = vsel %vm849, %v1030, 0
        %v1137 = vsel %vm849, %v1047, 0
        %v1139 = vsel %vm849, %v1064, 0
        %v1141 = vsel %vm849, %v1081, 0
        %v1143 = vsel %vm849, %v1098, 0
        %v1145 = vsel %vm849, %v1115, 0
        %v1147 = vsel %vm849, %v1132, 0
        %1149 = vmatprep.subr.mxu0 0.0
        %1150 = vmatpush1.msra.mxu0 %v961
        %1151 = vmatprep.subr.mxu0 0.0
        %1152 = vmatpush1.msra.mxu0 %v962
        %1153 = vmatprep.subr.mxu0 0.0
        %1154 = vmatpush1.msra.mxu0 %v963
        %1155 = vmatprep.subr.mxu0 0.0
        %1156 = vmatpush1.msra.mxu0 %v964
        %1157 = vmatprep.subr.mxu0 0.0
        %1158 = vmatpush1.msra.mxu0 0.0
        %1159 = vmatprep.subr.mxu0 0.0
        %1160 = vmatpush1.msra.mxu0 0.0
        %1161 = vmatprep.subr.mxu0 0.0
        %1162 = vmatpush1.msra.mxu0 0.0
        %1163 = vmatprep.subr.mxu0 0.0
        %1164 = vmatpush1.msra.mxu0 0.0
        %1165 = vmatprep.subr.mxu0 0.0
        %1166 = vmatpush1.msra.mxu0 0.0
        %1167 = vmatprep.subr.mxu0 0.0
        %1168 = vmatpush1.msra.mxu0 0.0
        %1169 = vmatprep.subr.mxu0 0.0
        %1170 = vmatpush1.msra.mxu0 0.0
        %1171 = vmatprep.subr.mxu0 0.0
        %1172 = vmatpush1.msra.mxu0 0.0
        %1173 = vmatprep.subr.mxu0 0.0
        %1174 = vmatpush1.msra.mxu0 0.0
        %1175 = vmatprep.subr.mxu0 0.0
        %1176 = vmatpush1.msra.mxu0 0.0
        %1177 = vmatprep.subr.mxu0 0.0
        %1178 = vmatpush1.msra.mxu0 0.0
        %1179 = vmatprep.subr.mxu0 0.0
        %1180 = vmatpush1.msra.mxu0 0.0
        %1181 = vmatprep.subr.mxu0 0.0
        %1182 = vmatpush1.msra.mxu0 0.0
        %1183 = vmatprep.subr.mxu0 0.0
        %1184 = vmatpush1.msra.mxu0 0.0
        %1185 = vmatprep.subr.mxu0 0.0
        %1186 = vmatpush1.msra.mxu0 0.0
        %1187 = vmatprep.subr.mxu0 0.0
        %1188 = vmatpush1.msra.mxu0 0.0
        %1189 = vmatprep.subr.mxu0 0.0
        %1190 = vmatpush1.msra.mxu0 0.0
        %1191 = vmatprep.subr.mxu0 0.0
        %1192 = vmatpush1.msra.mxu0 0.0
        %1193 = vmatprep.subr.mxu0 0.0
        %1194 = vmatpush1.msra.mxu0 0.0
        %1195 = vmatprep.subr.mxu0 0.0
        %1196 = vmatpush1.msra.mxu0 0.0
        %1197 = vmatprep.subr.mxu0 0.0
        %1198 = vmatpush1.msra.mxu0 0.0
        %1199 = vmatprep.subr.mxu0 0.0
        %1200 = vmatpush1.msra.mxu0 0.0
        %1201 = vmatprep.subr.mxu0 0.0
        %1202 = vmatpush1.msra.mxu0 0.0
        %1203 = vmatprep.subr.mxu0 0.0
        %1204 = vmatpush1.msra.mxu0 0.0
        %1205 = vmatprep.subr.mxu0 0.0
        %1206 = vmatpush1.msra.mxu0 0.0
        %1207 = vmatprep.subr.mxu0 0.0
        %1208 = vmatpush1.msra.mxu0 0.0
        %1209 = vmatprep.subr.mxu0 0.0
        %1210 = vmatpush1.msra.mxu0 0.0
        %1211 = vmatprep.subr.mxu0 0.0
        %1212 = vmatpush1.msra.mxu0 0.0
        %1213 = vmatprep.mubr.f32.mxu0 0.0
        %1214 = vmatmul.mubr.f32.gmra.mrb[0].mxu0 %v1133
        %v1215 = vpop.f32.mrb[0].mxu0
        %v1216 = vadd.f32 0.0, %v1215
        %v1217 = vpop.f32.mrb[0].mxu0
        %1218 = vmatprep.mubr.f32.mxu0 0.0
        %1219 = vmatmul.mubr.f32.gmra.mrb[0].mxu0 %v1135
        %v1220 = vpop.f32.mrb[0].mxu0
        %v1221 = vadd.f32 0.0, %v1220
        %v1222 = vpop.f32.mrb[0].mxu0
        %1223 = vmatprep.mubr.f32.mxu0 0.0
        %1224 = vmatmul.mubr.f32.gmra.mrb[0].mxu0 %v1137
        %v1225 = vpop.f32.mrb[0].mxu0
        %v1226 = vadd.f32 0.0, %v1225
        %v1227 = vpop.f32.mrb[0].mxu0
        %1228 = vmatprep.mubr.f32.mxu0 0.0
        %1229 = vmatmul.mubr.f32.gmra.mrb[0].mxu0 %v1139
        %v1230 = vpop.f32.mrb[0].mxu0
        %v1231 = vadd.f32 0.0, %v1230
        %v1232 = vpop.f32.mrb[0].mxu0
        %1233 = vmatprep.mubr.f32.mxu0 0.0
        %1234 = vmatmul.mubr.f32.gmra.mrb[0].mxu0 %v1141
        %v1235 = vpop.f32.mrb[0].mxu0
        %v1236 = vadd.f32 0.0, %v1235
        %v1237 = vpop.f32.mrb[0].mxu0
        %1238 = vmatprep.mubr.f32.mxu0 0.0
        %1239 = vmatmul.mubr.f32.gmra.mrb[0].mxu0 %v1143
        %v1240 = vpop.f32.mrb[0].mxu0
        %v1241 = vadd.f32 0.0, %v1240
        %v1242 = vpop.f32.mrb[0].mxu0
        %1243 = vmatprep.mubr.f32.mxu0 0.0
        %1244 = vmatmul.mubr.f32.gmra.mrb[0].mxu0 %v1145
        %v1245 = vpop.f32.mrb[0].mxu0
        %v1246 = vadd.f32 0.0, %v1245
        %v1247 = vpop.f32.mrb[0].mxu0
        %1248 = vmatprep.mubr.f32.mxu0 0.0
        %1249 = vmatmul.mubr.f32.gmra.mrb[0].mxu0 %v1147
        %v1250 = vpop.f32.mrb[0].mxu0
        %v1251 = vadd.f32 0.0, %v1250
        %v1252 = vpop.f32.mrb[0].mxu0
        %1253 = vdwg.mxu0
        %v1262 = vcombine.high %v1216, %v1216
        %v1264 = vunpack.c.l.s4 1983009808
        %v1265 = vunpack.c.0.s8 %v1264
        %v1266 = vlaneseq
        %v1267 = vshrl.u32 %v1266, 7
        %v1268 = vsub.s32 %v1265, %v1267
        %v1269 = vrot.slane %v1216, %v1268
        %v1271 = vunpack.c.l.s4 1983009808
        %v1272 = vunpack.c.0.s8 %v1271
        %v1273 = vlaneseq
        %v1274 = vshrl.u32 %v1273, 7
        %v1275 = vsub.s32 %v1272, %v1274
        %v1276 = vrot.slane %v1262, %v1275
        %v1277 = vcombine.high %v1269, %v1269
        %v1278 = vcombine.high %v1276, %v1276
        %v1279 = vcombine.high %v1221, %v1221
        %v1281 = vunpack.c.l.s4 1983009808
        %v1282 = vunpack.c.0.s8 %v1281
        %v1283 = vlaneseq
        %v1284 = vshrl.u32 %v1283, 7
        %v1285 = vsub.s32 %v1282, %v1284
        %v1286 = vrot.slane %v1221, %v1285
        %v1288 = vunpack.c.l.s4 1983009808
        %v1289 = vunpack.c.0.s8 %v1288
        %v1290 = vlaneseq
        %v1291 = vshrl.u32 %v1290, 7
        %v1292 = vsub.s32 %v1289, %v1291
        %v1293 = vrot.slane %v1279, %v1292
        %v1294 = vcombine.high %v1286, %v1286
        %v1295 = vcombine.high %v1293, %v1293
        %v1296 = vcombine.high %v1226, %v1226
        %v1298 = vunpack.c.l.s4 1983009808
        %v1299 = vunpack.c.0.s8 %v1298
        %v1300 = vlaneseq
        %v1301 = vshrl.u32 %v1300, 7
        %v1302 = vsub.s32 %v1299, %v1301
        %v1303 = vrot.slane %v1226, %v1302
        %v1305 = vunpack.c.l.s4 1983009808
        %v1306 = vunpack.c.0.s8 %v1305
        %v1307 = vlaneseq
        %v1308 = vshrl.u32 %v1307, 7
        %v1309 = vsub.s32 %v1306, %v1308
        %v1310 = vrot.slane %v1296, %v1309
        %v1311 = vcombine.high %v1303, %v1303
        %v1312 = vcombine.high %v1310, %v1310
        %v1313 = vcombine.high %v1231, %v1231
        %v1315 = vunpack.c.l.s4 1983009808
        %v1316 = vunpack.c.0.s8 %v1315
        %v1317 = vlaneseq
        %v1318 = vshrl.u32 %v1317, 7
        %v1319 = vsub.s32 %v1316, %v1318
        %v1320 = vrot.slane %v1231, %v1319
        %v1322 = vunpack.c.l.s4 1983009808
        %v1323 = vunpack.c.0.s8 %v1322
        %v1324 = vlaneseq
        %v1325 = vshrl.u32 %v1324, 7
        %v1326 = vsub.s32 %v1323, %v1325
        %v1327 = vrot.slane %v1313, %v1326
        %v1328 = vcombine.high %v1320, %v1320
        %v1329 = vcombine.high %v1327, %v1327
        %v1330 = vcombine.high %v1236, %v1236
        %v1332 = vunpack.c.l.s4 1983009808
        %v1333 = vunpack.c.0.s8 %v1332
        %v1334 = vlaneseq
        %v1335 = vshrl.u32 %v1334, 7
        %v1336 = vsub.s32 %v1333, %v1335
        %v1337 = vrot.slane %v1236, %v1336
        %v1339 = vunpack.c.l.s4 1983009808
        %v1340 = vunpack.c.0.s8 %v1339
        %v1341 = vlaneseq
        %v1342 = vshrl.u32 %v1341, 7
        %v1343 = vsub.s32 %v1340, %v1342
        %v1344 = vrot.slane %v1330, %v1343
        %v1345 = vcombine.high %v1337, %v1337
        %v1346 = vcombine.high %v1344, %v1344
        %v1347 = vcombine.high %v1241, %v1241
        %v1349 = vunpack.c.l.s4 1983009808
        %v1350 = vunpack.c.0.s8 %v1349
        %v1351 = vlaneseq
        %v1352 = vshrl.u32 %v1351, 7
        %v1353 = vsub.s32 %v1350, %v1352
        %v1354 = vrot.slane %v1241, %v1353
        %v1356 = vunpack.c.l.s4 1983009808
        %v1357 = vunpack.c.0.s8 %v1356
        %v1358 = vlaneseq
        %v1359 = vshrl.u32 %v1358, 7
        %v1360 = vsub.s32 %v1357, %v1359
        %v1361 = vrot.slane %v1347, %v1360
        %v1362 = vcombine.high %v1354, %v1354
        %v1363 = vcombine.high %v1361, %v1361
        %v1364 = vcombine.high %v1246, %v1246
        %v1366 = vunpack.c.l.s4 1983009808
        %v1367 = vunpack.c.0.s8 %v1366
        %v1368 = vlaneseq
        %v1369 = vshrl.u32 %v1368, 7
        %v1370 = vsub.s32 %v1367, %v1369
        %v1371 = vrot.slane %v1246, %v1370
        %v1373 = vunpack.c.l.s4 1983009808
        %v1374 = vunpack.c.0.s8 %v1373
        %v1375 = vlaneseq
        %v1376 = vshrl.u32 %v1375, 7
        %v1377 = vsub.s32 %v1374, %v1376
        %v1378 = vrot.slane %v1364, %v1377
        %v1379 = vcombine.high %v1371, %v1371
        %v1380 = vcombine.high %v1378, %v1378
        %v1381 = vcombine.high %v1251, %v1251
        %v1383 = vunpack.c.l.s4 1983009808
        %v1384 = vunpack.c.0.s8 %v1383
        %v1385 = vlaneseq
        %v1386 = vshrl.u32 %v1385, 7
        %v1387 = vsub.s32 %v1384, %v1386
        %v1388 = vrot.slane %v1251, %v1387
        %v1390 = vunpack.c.l.s4 1983009808
        %v1391 = vunpack.c.0.s8 %v1390
        %v1392 = vlaneseq
        %v1393 = vshrl.u32 %v1392, 7
        %v1394 = vsub.s32 %v1391, %v1393
        %v1395 = vrot.slane %v1381, %v1394
        %v1396 = vcombine.high %v1388, %v1388
        %v1397 = vcombine.high %v1395, %v1395
        %v1430 = vld [vmem:[#allocation2] sm:$0x3]
        %v1431 = vld [vmem:[#allocation2 + $0x2] sm:$0x3]
        %v1432 = vld [vmem:[#allocation2 + $0x4] sm:$0x3]
        %v1433 = vld [vmem:[#allocation2 + $0x6] sm:$0x3]
        %v1434 = vadd.f32 %v1430, %v1269
        %v1435 = vadd.f32 %v1431, %v1277
        %v1436 = vadd.f32 %v1432, %v1276
        %v1437 = vadd.f32 %v1433, %v1278
        %v1438 = vadd.f32 %v1430, %v1286
        %v1439 = vadd.f32 %v1431, %v1294
        %v1440 = vadd.f32 %v1432, %v1293
        %v1441 = vadd.f32 %v1433, %v1295
        %v1442 = vadd.f32 %v1430, %v1303
        %v1443 = vadd.f32 %v1431, %v1311
        %v1444 = vadd.f32 %v1432, %v1310
        %v1445 = vadd.f32 %v1433, %v1312
        %v1446 = vadd.f32 %v1430, %v1320
        %v1447 = vadd.f32 %v1431, %v1328
        %v1448 = vadd.f32 %v1432, %v1327
        %v1449 = vadd.f32 %v1433, %v1329
        %v1450 = vadd.f32 %v1430, %v1337
        %v1451 = vadd.f32 %v1431, %v1345
        %v1452 = vadd.f32 %v1432, %v1344
        %v1453 = vadd.f32 %v1433, %v1346
        %v1454 = vadd.f32 %v1430, %v1354
        %v1455 = vadd.f32 %v1431, %v1362
        %v1456 = vadd.f32 %v1432, %v1361
        %v1457 = vadd.f32 %v1433, %v1363
        %v1458 = vadd.f32 %v1430, %v1371
        %v1459 = vadd.f32 %v1431, %v1379
        %v1460 = vadd.f32 %v1432, %v1378
        %v1461 = vadd.f32 %v1433, %v1380
        %v1462 = vadd.f32 %v1430, %v1388
        %v1463 = vadd.f32 %v1431, %v1396
        %v1464 = vadd.f32 %v1432, %v1395
        %v1465 = vadd.f32 %v1433, %v1397
        %v1468 = vcombine.high %v921, %v921
        %v1470 = vunpack.c.l.s4 1983009808
        %v1471 = vunpack.c.0.s8 %v1470
        %v1472 = vlaneseq
        %v1473 = vshrl.u32 %v1472, 7
        %v1474 = vsub.s32 %v1471, %v1473
        %v1475 = vrot.slane %v921, %v1474
        %v1477 = vunpack.c.l.s4 1983009808
        %v1478 = vunpack.c.0.s8 %v1477
        %v1479 = vlaneseq
        %v1480 = vshrl.u32 %v1479, 7
        %v1481 = vsub.s32 %v1478, %v1480
        %v1482 = vrot.slane %v1468, %v1481
        %v1483 = vcombine.high %v1475, %v1475
        %v1484 = vcombine.high %v1482, %v1482
        %v1485 = vcombine.high %v926, %v926
        %v1487 = vunpack.c.l.s4 1983009808
        %v1488 = vunpack.c.0.s8 %v1487
        %v1489 = vlaneseq
        %v1490 = vshrl.u32 %v1489, 7
        %v1491 = vsub.s32 %v1488, %v1490
        %v1492 = vrot.slane %v926, %v1491
        %v1494 = vunpack.c.l.s4 1983009808
        %v1495 = vunpack.c.0.s8 %v1494
        %v1496 = vlaneseq
        %v1497 = vshrl.u32 %v1496, 7
        %v1498 = vsub.s32 %v1495, %v1497
        %v1499 = vrot.slane %v1485, %v1498
        %v1500 = vcombine.high %v1492, %v1492
        %v1501 = vcombine.high %v1499, %v1499
        %1510 = vrot.lane.b32.xlu0 %v1269, 96
        %v1511 = vpop.permute.xlu0 %1510
        %1512 = vrot.lane.b32.xlu0 %v1277, 96
        %v1513 = vpop.permute.xlu0 %1512
        %1514 = vrot.lane.b32.xlu0 %v1276, 96
        %v1515 = vpop.permute.xlu0 %1514
        %1516 = vrot.lane.b32.xlu0 %v1278, 96
        %v1517 = vpop.permute.xlu0 %1516
        %1518 = vrot.lane.b32.xlu0 %v1286, 96
        %v1519 = vpop.permute.xlu0 %1518
        %1520 = vrot.lane.b32.xlu0 %v1294, 96
        %v1521 = vpop.permute.xlu0 %1520
        %1522 = vrot.lane.b32.xlu0 %v1293, 96
        %v1523 = vpop.permute.xlu0 %1522
        %1524 = vrot.lane.b32.xlu0 %v1295, 96
        %v1525 = vpop.permute.xlu0 %1524
        %1526 = vrot.lane.b32.xlu0 %v1303, 96
        %v1527 = vpop.permute.xlu0 %1526
        %1528 = vrot.lane.b32.xlu0 %v1311, 96
        %v1529 = vpop.permute.xlu0 %1528
        %1530 = vrot.lane.b32.xlu0 %v1310, 96
        %v1531 = vpop.permute.xlu0 %1530
        %1532 = vrot.lane.b32.xlu0 %v1312, 96
        %v1533 = vpop.permute.xlu0 %1532
        %1534 = vrot.lane.b32.xlu0 %v1320, 96
        %v1535 = vpop.permute.xlu0 %1534
        %1536 = vrot.lane.b32.xlu0 %v1328, 96
        %v1537 = vpop.permute.xlu0 %1536
        %1538 = vrot.lane.b32.xlu0 %v1327, 96
        %v1539 = vpop.permute.xlu0 %1538
        %1540 = vrot.lane.b32.xlu0 %v1329, 96
        %v1541 = vpop.permute.xlu0 %1540
        %1542 = vrot.lane.b32.xlu0 %v1337, 96
        %v1543 = vpop.permute.xlu0 %1542
        %1544 = vrot.lane.b32.xlu0 %v1345, 96
        %v1545 = vpop.permute.xlu0 %1544
        %1546 = vrot.lane.b32.xlu0 %v1344, 96
        %v1547 = vpop.permute.xlu0 %1546
        %1548 = vrot.lane.b32.xlu0 %v1346, 96
        %v1549 = vpop.permute.xlu0 %1548
        %1550 = vrot.lane.b32.xlu0 %v1354, 96
        %v1551 = vpop.permute.xlu0 %1550
        %1552 = vrot.lane.b32.xlu0 %v1362, 96
        %v1553 = vpop.permute.xlu0 %1552
        %1554 = vrot.lane.b32.xlu0 %v1361, 96
        %v1555 = vpop.permute.xlu0 %1554
        %1556 = vrot.lane.b32.xlu0 %v1363, 96
        %v1557 = vpop.permute.xlu0 %1556
        %1558 = vrot.lane.b32.xlu0 %v1371, 96
        %v1559 = vpop.permute.xlu0 %1558
        %1560 = vrot.lane.b32.xlu0 %v1379, 96
        %v1561 = vpop.permute.xlu0 %1560
        %1562 = vrot.lane.b32.xlu0 %v1378, 96
        %v1563 = vpop.permute.xlu0 %1562
        %1564 = vrot.lane.b32.xlu0 %v1380, 96
        %v1565 = vpop.permute.xlu0 %1564
        %1566 = vrot.lane.b32.xlu0 %v1388, 96
        %v1567 = vpop.permute.xlu0 %1566
        %1568 = vrot.lane.b32.xlu0 %v1396, 96
        %v1569 = vpop.permute.xlu0 %1568
        %1570 = vrot.lane.b32.xlu0 %v1395, 96
        %v1571 = vpop.permute.xlu0 %1570
        %1572 = vrot.lane.b32.xlu0 %v1397, 96
        %v1573 = vpop.permute.xlu0 %1572
        %v1606 = vadd.f32 %v1475, %v1511
        %v1607 = vadd.f32 %v1475, %v1513
        %v1608 = vadd.f32 %v1475, %v1515
        %v1609 = vadd.f32 %v1475, %v1517
        %v1610 = vadd.f32 %v1483, %v1519
        %v1611 = vadd.f32 %v1483, %v1521
        %v1612 = vadd.f32 %v1483, %v1523
        %v1613 = vadd.f32 %v1483, %v1525
        %v1614 = vadd.f32 %v1482, %v1527
        %v1615 = vadd.f32 %v1482, %v1529
        %v1616 = vadd.f32 %v1482, %v1531
        %v1617 = vadd.f32 %v1482, %v1533
        %v1618 = vadd.f32 %v1484, %v1535
        %v1619 = vadd.f32 %v1484, %v1537
        %v1620 = vadd.f32 %v1484, %v1539
        %v1621 = vadd.f32 %v1484, %v1541
        %v1622 = vadd.f32 %v1492, %v1543
        %v1623 = vadd.f32 %v1492, %v1545
        %v1624 = vadd.f32 %v1492, %v1547
        %v1625 = vadd.f32 %v1492, %v1549
        %v1626 = vadd.f32 %v1500, %v1551
        %v1627 = vadd.f32 %v1500, %v1553
        %v1628 = vadd.f32 %v1500, %v1555
        %v1629 = vadd.f32 %v1500, %v1557
        %v1630 = vadd.f32 %v1499, %v1559
        %v1631 = vadd.f32 %v1499, %v1561
        %v1632 = vadd.f32 %v1499, %v1563
        %v1633 = vadd.f32 %v1499, %v1565
        %v1634 = vadd.f32 %v1501, %v1567
        %v1635 = vadd.f32 %v1501, %v1569
        %v1636 = vadd.f32 %v1501, %v1571
        %v1637 = vadd.f32 %v1501, %v1573
        %v1638 = vmul.f32 %v1434, %v1606
        %v1639 = vmul.f32 %v1435, %v1607
        %v1640 = vmul.f32 %v1436, %v1608
        %v1641 = vmul.f32 %v1437, %v1609
        %v1642 = vmul.f32 %v1438, %v1610
        %v1643 = vmul.f32 %v1439, %v1611
        %v1644 = vmul.f32 %v1440, %v1612
        %v1645 = vmul.f32 %v1441, %v1613
        %v1646 = vmul.f32 %v1442, %v1614
        %v1647 = vmul.f32 %v1443, %v1615
        %v1648 = vmul.f32 %v1444, %v1616
        %v1649 = vmul.f32 %v1445, %v1617
        %v1650 = vmul.f32 %v1446, %v1618
        %v1651 = vmul.f32 %v1447, %v1619
        %v1652 = vmul.f32 %v1448, %v1620
        %v1653 = vmul.f32 %v1449, %v1621
        %v1654 = vmul.f32 %v1450, %v1622
        %v1655 = vmul.f32 %v1451, %v1623
        %v1656 = vmul.f32 %v1452, %v1624
        %v1657 = vmul.f32 %v1453, %v1625
        %v1658 = vmul.f32 %v1454, %v1626
        %v1659 = vmul.f32 %v1455, %v1627
        %v1660 = vmul.f32 %v1456, %v1628
        %v1661 = vmul.f32 %v1457, %v1629
        %v1662 = vmul.f32 %v1458, %v1630
        %v1663 = vmul.f32 %v1459, %v1631
        %v1664 = vmul.f32 %v1460, %v1632
        %v1665 = vmul.f32 %v1461, %v1633
        %v1666 = vmul.f32 %v1462, %v1634
        %v1667 = vmul.f32 %v1463, %v1635
        %v1668 = vmul.f32 %v1464, %v1636
        %v1669 = vmul.f32 %v1465, %v1637
        %v1670 = vld [vmem:[#allocation12] sm:$0xff]
        %v1671 = vld [vmem:[#allocation12 + $0x8] sm:$0xff]
        %v1672 = vld [vmem:[#allocation12 + $0x10] sm:$0xff]
        %v1673 = vld [vmem:[#allocation12 + $0x18] sm:$0xff]
        %v1706 = vcombine.low %v1638, %v1639
        %v1707 = vcombine.low %v1640, %v1641
        %v1709 = vunpack.c.l.s4 1983009808
        %v1710 = vunpack.c.0.s8 %v1709
        %v1711 = vlaneseq
        %v1712 = vshrl.u32 %v1711, 7
        %v1713 = vsub.s32 %v1710, %v1712
        %v1714 = vrot.slane %v1706, %v1713
        %v1716 = vunpack.c.l.s4 1983009808
        %v1717 = vunpack.c.0.s8 %v1716
        %v1718 = vlaneseq
        %v1719 = vshrl.u32 %v1718, 7
        %v1720 = vsub.s32 %v1717, %v1719
        %v1721 = vrot.slane %v1707, %v1720
        %v1722 = vcombine.low %v1714, %v1721
        %v1723 = vcombine.low %v1642, %v1643
        %v1724 = vcombine.low %v1644, %v1645
        %v1726 = vunpack.c.l.s4 1983009808
        %v1727 = vunpack.c.0.s8 %v1726
        %v1728 = vlaneseq
        %v1729 = vshrl.u32 %v1728, 7
        %v1730 = vsub.s32 %v1727, %v1729
        %v1731 = vrot.slane %v1723, %v1730
        %v1733 = vunpack.c.l.s4 1983009808
        %v1734 = vunpack.c.0.s8 %v1733
        %v1735 = vlaneseq
        %v1736 = vshrl.u32 %v1735, 7
        %v1737 = vsub.s32 %v1734, %v1736
        %v1738 = vrot.slane %v1724, %v1737
        %v1739 = vcombine.low %v1731, %v1738
        %v1740 = vcombine.low %v1646, %v1647
        %v1741 = vcombine.low %v1648, %v1649
        %v1743 = vunpack.c.l.s4 1983009808
        %v1744 = vunpack.c.0.s8 %v1743
        %v1745 = vlaneseq
        %v1746 = vshrl.u32 %v1745, 7
        %v1747 = vsub.s32 %v1744, %v1746
        %v1748 = vrot.slane %v1740, %v1747
        %v1750 = vunpack.c.l.s4 1983009808
        %v1751 = vunpack.c.0.s8 %v1750
        %v1752 = vlaneseq
        %v1753 = vshrl.u32 %v1752, 7
        %v1754 = vsub.s32 %v1751, %v1753
        %v1755 = vrot.slane %v1741, %v1754
        %v1756 = vcombine.low %v1748, %v1755
        %v1757 = vcombine.low %v1650, %v1651
        %v1758 = vcombine.low %v1652, %v1653
        %v1760 = vunpack.c.l.s4 1983009808
        %v1761 = vunpack.c.0.s8 %v1760
        %v1762 = vlaneseq
        %v1763 = vshrl.u32 %v1762, 7
        %v1764 = vsub.s32 %v1761, %v1763
        %v1765 = vrot.slane %v1757, %v1764
        %v1767 = vunpack.c.l.s4 1983009808
        %v1768 = vunpack.c.0.s8 %v1767
        %v1769 = vlaneseq
        %v1770 = vshrl.u32 %v1769, 7
        %v1771 = vsub.s32 %v1768, %v1770
        %v1772 = vrot.slane %v1758, %v1771
        %v1773 = vcombine.low %v1765, %v1772
        %v1774 = vcombine.low %v1654, %v1655
        %v1775 = vcombine.low %v1656, %v1657
        %v1777 = vunpack.c.l.s4 1983009808
        %v1778 = vunpack.c.0.s8 %v1777
        %v1779 = vlaneseq
        %v1780 = vshrl.u32 %v1779, 7
        %v1781 = vsub.s32 %v1778, %v1780
        %v1782 = vrot.slane %v1774, %v1781
        %v1784 = vunpack.c.l.s4 1983009808
        %v1785 = vunpack.c.0.s8 %v1784
        %v1786 = vlaneseq
        %v1787 = vshrl.u32 %v1786, 7
        %v1788 = vsub.s32 %v1785, %v1787
        %v1789 = vrot.slane %v1775, %v1788
        %v1790 = vcombine.low %v1782, %v1789
        %v1791 = vcombine.low %v1658, %v1659
        %v1792 = vcombine.low %v1660, %v1661
        %v1794 = vunpack.c.l.s4 1983009808
        %v1795 = vunpack.c.0.s8 %v1794
        %v1796 = vlaneseq
        %v1797 = vshrl.u32 %v1796, 7
        %v1798 = vsub.s32 %v1795, %v1797
        %v1799 = vrot.slane %v1791, %v1798
        %v1801 = vunpack.c.l.s4 1983009808
        %v1802 = vunpack.c.0.s8 %v1801
        %v1803 = vlaneseq
        %v1804 = vshrl.u32 %v1803, 7
        %v1805 = vsub.s32 %v1802, %v1804
        %v1806 = vrot.slane %v1792, %v1805
        %v1807 = vcombine.low %v1799, %v1806
        %v1808 = vcombine.low %v1662, %v1663
        %v1809 = vcombine.low %v1664, %v1665
        %v1811 = vunpack.c.l.s4 1983009808
        %v1812 = vunpack.c.0.s8 %v1811
        %v1813 = vlaneseq
        %v1814 = vshrl.u32 %v1813, 7
        %v1815 = vsub.s32 %v1812, %v1814
        %v1816 = vrot.slane %v1808, %v1815
        %v1818 = vunpack.c.l.s4 1983009808
        %v1819 = vunpack.c.0.s8 %v1818
        %v1820 = vlaneseq
        %v1821 = vshrl.u32 %v1820, 7
        %v1822 = vsub.s32 %v1819, %v1821
        %v1823 = vrot.slane %v1809, %v1822
        %v1824 = vcombine.low %v1816, %v1823
        %v1825 = vcombine.low %v1666, %v1667
        %v1826 = vcombine.low %v1668, %v1669
        %v1828 = vunpack.c.l.s4 1983009808
        %v1829 = vunpack.c.0.s8 %v1828
        %v1830 = vlaneseq
        %v1831 = vshrl.u32 %v1830, 7
        %v1832 = vsub.s32 %v1829, %v1831
        %v1833 = vrot.slane %v1825, %v1832
        %v1835 = vunpack.c.l.s4 1983009808
        %v1836 = vunpack.c.0.s8 %v1835
        %v1837 = vlaneseq
        %v1838 = vshrl.u32 %v1837, 7
        %v1839 = vsub.s32 %v1836, %v1838
        %v1840 = vrot.slane %v1826, %v1839
        %v1841 = vcombine.low %v1833, %v1840
        %v1842 = vsel %vm849, %v1722, 0
        %v1844 = vsel %vm849, %v1739, 0
        %v1846 = vsel %vm849, %v1756, 0
        %v1848 = vsel %vm849, %v1773, 0
        %v1850 = vsel %vm849, %v1790, 0
        %v1852 = vsel %vm849, %v1807, 0
        %v1854 = vsel %vm849, %v1824, 0
        %v1856 = vsel %vm849, %v1841, 0
        %1858 = vmatprep.subr.mxu0 0.0
        %1859 = vmatpush1.msra.mxu0 %v1670
        %1860 = vmatprep.subr.mxu0 0.0
        %1861 = vmatpush1.msra.mxu0 %v1671
        %1862 = vmatprep.subr.mxu0 0.0
        %1863 = vmatpush1.msra.mxu0 %v1672
        %1864 = vmatprep.subr.mxu0 0.0
        %1865 = vmatpush1.msra.mxu0 %v1673
        %1866 = vmatprep.subr.mxu0 0.0
        %1867 = vmatpush1.msra.mxu0 0.0
        %1868 = vmatprep.subr.mxu0 0.0
        %1869 = vmatpush1.msra.mxu0 0.0
        %1870 = vmatprep.subr.mxu0 0.0
        %1871 = vmatpush1.msra.mxu0 0.0
        %1872 = vmatprep.subr.mxu0 0.0
        %1873 = vmatpush1.msra.mxu0 0.0
        %1874 = vmatprep.subr.mxu0 0.0
        %1875 = vmatpush1.msra.mxu0 0.0
        %1876 = vmatprep.subr.mxu0 0.0
        %1877 = vmatpush1.msra.mxu0 0.0
        %1878 = vmatprep.subr.mxu0 0.0
        %1879 = vmatpush1.msra.mxu0 0.0
        %1880 = vmatprep.subr.mxu0 0.0
        %1881 = vmatpush1.msra.mxu0 0.0
        %1882 = vmatprep.subr.mxu0 0.0
        %1883 = vmatpush1.msra.mxu0 0.0
        %1884 = vmatprep.subr.mxu0 0.0
        %1885 = vmatpush1.msra.mxu0 0.0
        %1886 = vmatprep.subr.mxu0 0.0
        %1887 = vmatpush1.msra.mxu0 0.0
        %1888 = vmatprep.subr.mxu0 0.0
        %1889 = vmatpush1.msra.mxu0 0.0
        %1890 = vmatprep.subr.mxu0 0.0
        %1891 = vmatpush1.msra.mxu0 0.0
        %1892 = vmatprep.subr.mxu0 0.0
        %1893 = vmatpush1.msra.mxu0 0.0
        %1894 = vmatprep.subr.mxu0 0.0
        %1895 = vmatpush1.msra.mxu0 0.0
        %1896 = vmatprep.subr.mxu0 0.0
        %1897 = vmatpush1.msra.mxu0 0.0
        %1898 = vmatprep.subr.mxu0 0.0
        %1899 = vmatpush1.msra.mxu0 0.0
        %1900 = vmatprep.subr.mxu0 0.0
        %1901 = vmatpush1.msra.mxu0 0.0
        %1902 = vmatprep.subr.mxu0 0.0
        %1903 = vmatpush1.msra.mxu0 0.0
        %1904 = vmatprep.subr.mxu0 0.0
        %1905 = vmatpush1.msra.mxu0 0.0
        %1906 = vmatprep.subr.mxu0 0.0
        %1907 = vmatpush1.msra.mxu0 0.0
        %1908 = vmatprep.subr.mxu0 0.0
        %1909 = vmatpush1.msra.mxu0 0.0
        %1910 = vmatprep.subr.mxu0 0.0
        %1911 = vmatpush1.msra.mxu0 0.0
        %1912 = vmatprep.subr.mxu0 0.0
        %1913 = vmatpush1.msra.mxu0 0.0
        %1914 = vmatprep.subr.mxu0 0.0
        %1915 = vmatpush1.msra.mxu0 0.0
        %1916 = vmatprep.subr.mxu0 0.0
        %1917 = vmatpush1.msra.mxu0 0.0
        %1918 = vmatprep.subr.mxu0 0.0
        %1919 = vmatpush1.msra.mxu0 0.0
        %1920 = vmatprep.subr.mxu0 0.0
        %1921 = vmatpush1.msra.mxu0 0.0
        %1922 = vmatprep.mubr.f32.mxu0 0.0
        %1923 = vmatmul.mubr.f32.gmra.mrb[0].mxu0 %v1842
        %v1924 = vpop.f32.mrb[0].mxu0
        %v1925 = vadd.f32 0.0, %v1924
        %v1926 = vpop.f32.mrb[0].mxu0
        %1927 = vmatprep.mubr.f32.mxu0 0.0
        %1928 = vmatmul.mubr.f32.gmra.mrb[0].mxu0 %v1844
        %v1929 = vpop.f32.mrb[0].mxu0
        %v1930 = vadd.f32 0.0, %v1929
        %v1931 = vpop.f32.mrb[0].mxu0
        %1932 = vmatprep.mubr.f32.mxu0 0.0
        %1933 = vmatmul.mubr.f32.gmra.mrb[0].mxu0 %v1846
        %v1934 = vpop.f32.mrb[0].mxu0
        %v1935 = vadd.f32 0.0, %v1934
        %v1936 = vpop.f32.mrb[0].mxu0
        %1937 = vmatprep.mubr.f32.mxu0 0.0
        %1938 = vmatmul.mubr.f32.gmra.mrb[0].mxu0 %v1848
        %v1939 = vpop.f32.mrb[0].mxu0
        %v1940 = vadd.f32 0.0, %v1939
        %v1941 = vpop.f32.mrb[0].mxu0
        %1942 = vmatprep.mubr.f32.mxu0 0.0
        %1943 = vmatmul.mubr.f32.gmra.mrb[0].mxu0 %v1850
        %v1944 = vpop.f32.mrb[0].mxu0
        %v1945 = vadd.f32 0.0, %v1944
        %v1946 = vpop.f32.mrb[0].mxu0
        %1947 = vmatprep.mubr.f32.mxu0 0.0
        %1948 = vmatmul.mubr.f32.gmra.mrb[0].mxu0 %v1852
        %v1949 = vpop.f32.mrb[0].mxu0
        %v1950 = vadd.f32 0.0, %v1949
        %v1951 = vpop.f32.mrb[0].mxu0
        %1952 = vmatprep.mubr.f32.mxu0 0.0
        %1953 = vmatmul.mubr.f32.gmra.mrb[0].mxu0 %v1854
        %v1954 = vpop.f32.mrb[0].mxu0
        %v1955 = vadd.f32 0.0, %v1954
        %v1956 = vpop.f32.mrb[0].mxu0
        %1957 = vmatprep.mubr.f32.mxu0 0.0
        %1958 = vmatmul.mubr.f32.gmra.mrb[0].mxu0 %v1856
        %v1959 = vpop.f32.mrb[0].mxu0
        %v1960 = vadd.f32 0.0, %v1959
        %v1961 = vpop.f32.mrb[0].mxu0
        %1962 = vdwg.mxu0
        %v1971 = vcombine.high %v1925, %v1925
        %v1973 = vunpack.c.l.s4 1983009808
        %v1974 = vunpack.c.0.s8 %v1973
        %v1975 = vlaneseq
        %v1976 = vshrl.u32 %v1975, 7
        %v1977 = vsub.s32 %v1974, %v1976
        %v1978 = vrot.slane %v1925, %v1977
        %v1980 = vunpack.c.l.s4 1983009808
        %v1981 = vunpack.c.0.s8 %v1980
        %v1982 = vlaneseq
        %v1983 = vshrl.u32 %v1982, 7
        %v1984 = vsub.s32 %v1981, %v1983
        %v1985 = vrot.slane %v1971, %v1984
        %v1986 = vcombine.high %v1978, %v1978
        %v1987 = vcombine.high %v1985, %v1985
        %v1988 = vcombine.high %v1930, %v1930
        %v1990 = vunpack.c.l.s4 1983009808
        %v1991 = vunpack.c.0.s8 %v1990
        %v1992 = vlaneseq
        %v1993 = vshrl.u32 %v1992, 7
        %v1994 = vsub.s32 %v1991, %v1993
        %v1995 = vrot.slane %v1930, %v1994
        %v1997 = vunpack.c.l.s4 1983009808
        %v1998 = vunpack.c.0.s8 %v1997
        %v1999 = vlaneseq
        %v2000 = vshrl.u32 %v1999, 7
        %v2001 = vsub.s32 %v1998, %v2000
        %v2002 = vrot.slane %v1988, %v2001
        %v2003 = vcombine.high %v1995, %v1995
        %v2004 = vcombine.high %v2002, %v2002
        %v2005 = vcombine.high %v1935, %v1935
        %v2007 = vunpack.c.l.s4 1983009808
        %v2008 = vunpack.c.0.s8 %v2007
        %v2009 = vlaneseq
        %v2010 = vshrl.u32 %v2009, 7
        %v2011 = vsub.s32 %v2008, %v2010
        %v2012 = vrot.slane %v1935, %v2011
        %v2014 = vunpack.c.l.s4 1983009808
        %v2015 = vunpack.c.0.s8 %v2014
        %v2016 = vlaneseq
        %v2017 = vshrl.u32 %v2016, 7
        %v2018 = vsub.s32 %v2015, %v2017
        %v2019 = vrot.slane %v2005, %v2018
        %v2020 = vcombine.high %v2012, %v2012
        %v2021 = vcombine.high %v2019, %v2019
        %v2022 = vcombine.high %v1940, %v1940
        %v2024 = vunpack.c.l.s4 1983009808
        %v2025 = vunpack.c.0.s8 %v2024
        %v2026 = vlaneseq
        %v2027 = vshrl.u32 %v2026, 7
        %v2028 = vsub.s32 %v2025, %v2027
        %v2029 = vrot.slane %v1940, %v2028
        %v2031 = vunpack.c.l.s4 1983009808
        %v2032 = vunpack.c.0.s8 %v2031
        %v2033 = vlaneseq
        %v2034 = vshrl.u32 %v2033, 7
        %v2035 = vsub.s32 %v2032, %v2034
        %v2036 = vrot.slane %v2022, %v2035
        %v2037 = vcombine.high %v2029, %v2029
        %v2038 = vcombine.high %v2036, %v2036
        %v2039 = vcombine.high %v1945, %v1945
        %v2041 = vunpack.c.l.s4 1983009808
        %v2042 = vunpack.c.0.s8 %v2041
        %v2043 = vlaneseq
        %v2044 = vshrl.u32 %v2043, 7
        %v2045 = vsub.s32 %v2042, %v2044
        %v2046 = vrot.slane %v1945, %v2045
        %v2048 = vunpack.c.l.s4 1983009808
        %v2049 = vunpack.c.0.s8 %v2048
        %v2050 = vlaneseq
        %v2051 = vshrl.u32 %v2050, 7
        %v2052 = vsub.s32 %v2049, %v2051
        %v2053 = vrot.slane %v2039, %v2052
        %v2054 = vcombine.high %v2046, %v2046
        %v2055 = vcombine.high %v2053, %v2053
        %v2056 = vcombine.high %v1950, %v1950
        %v2058 = vunpack.c.l.s4 1983009808
        %v2059 = vunpack.c.0.s8 %v2058
        %v2060 = vlaneseq
        %v2061 = vshrl.u32 %v2060, 7
        %v2062 = vsub.s32 %v2059, %v2061
        %v2063 = vrot.slane %v1950, %v2062
        %v2065 = vunpack.c.l.s4 1983009808
        %v2066 = vunpack.c.0.s8 %v2065
        %v2067 = vlaneseq
        %v2068 = vshrl.u32 %v2067, 7
        %v2069 = vsub.s32 %v2066, %v2068
        %v2070 = vrot.slane %v2056, %v2069
        %v2071 = vcombine.high %v2063, %v2063
        %v2072 = vcombine.high %v2070, %v2070
        %v2073 = vcombine.high %v1955, %v1955
        %v2075 = vunpack.c.l.s4 1983009808
        %v2076 = vunpack.c.0.s8 %v2075
        %v2077 = vlaneseq
        %v2078 = vshrl.u32 %v2077, 7
        %v2079 = vsub.s32 %v2076, %v2078
        %v2080 = vrot.slane %v1955, %v2079
        %v2082 = vunpack.c.l.s4 1983009808
        %v2083 = vunpack.c.0.s8 %v2082
        %v2084 = vlaneseq
        %v2085 = vshrl.u32 %v2084, 7
        %v2086 = vsub.s32 %v2083, %v2085
        %v2087 = vrot.slane %v2073, %v2086
        %v2088 = vcombine.high %v2080, %v2080
        %v2089 = vcombine.high %v2087, %v2087
        %v2090 = vcombine.high %v1960, %v1960
        %v2092 = vunpack.c.l.s4 1983009808
        %v2093 = vunpack.c.0.s8 %v2092
        %v2094 = vlaneseq
        %v2095 = vshrl.u32 %v2094, 7
        %v2096 = vsub.s32 %v2093, %v2095
        %v2097 = vrot.slane %v1960, %v2096
        %v2099 = vunpack.c.l.s4 1983009808
        %v2100 = vunpack.c.0.s8 %v2099
        %v2101 = vlaneseq
        %v2102 = vshrl.u32 %v2101, 7
        %v2103 = vsub.s32 %v2100, %v2102
        %v2104 = vrot.slane %v2090, %v2103
        %v2105 = vcombine.high %v2097, %v2097
        %v2106 = vcombine.high %v2104, %v2104
        %vm2139 = vcmask 254976
        %v2140 = vsel %vm2139, %v1978, -inf
        %v2141 = vsel %vm2139, %v1995, -inf
        %v2142 = vmax.f32 %v2140, %v2141
        %v2143 = vsel %vm2139, %v2012, -inf
        %v2144 = vmax.f32 %v2142, %v2143
        %v2145 = vsel %vm2139, %v2029, -inf
        %v2146 = vmax.f32 %v2144, %v2145
        %v2147 = vsel %vm2139, %v2046, -inf
        %v2148 = vmax.f32 %v2146, %v2147
        %v2149 = vsel %vm2139, %v2063, -inf
        %v2150 = vmax.f32 %v2148, %v2149
        %v2151 = vsel %vm2139, %v2080, -inf
        %v2152 = vmax.f32 %v2150, %v2151
        %v2153 = vsel %vm2139, %v2097, -inf
        %v2154 = vmax.f32 %v2152, %v2153
        %v2155 = vsel %vm2139, %v1986, -inf
        %v2156 = vsel %vm2139, %v2003, -inf
        %v2157 = vmax.f32 %v2155, %v2156
        %v2158 = vsel %vm2139, %v2020, -inf
        %v2159 = vmax.f32 %v2157, %v2158
        %v2160 = vsel %vm2139, %v2037, -inf
        %v2161 = vmax.f32 %v2159, %v2160
        %v2162 = vsel %vm2139, %v2054, -inf
        %v2163 = vmax.f32 %v2161, %v2162
        %v2164 = vsel %vm2139, %v2071, -inf
        %v2165 = vmax.f32 %v2163, %v2164
        %v2166 = vsel %vm2139, %v2088, -inf
        %v2167 = vmax.f32 %v2165, %v2166
        %v2168 = vsel %vm2139, %v2105, -inf
        %v2169 = vmax.f32 %v2167, %v2168
        %v2170 = vsel %vm2139, %v1985, -inf
        %v2171 = vsel %vm2139, %v2002, -inf
        %v2172 = vmax.f32 %v2170, %v2171
        %v2173 = vsel %vm2139, %v2019, -inf
        %v2174 = vmax.f32 %v2172, %v2173
        %v2175 = vsel %vm2139, %v2036, -inf
        %v2176 = vmax.f32 %v2174, %v2175
        %v2177 = vsel %vm2139, %v2053, -inf
        %v2178 = vmax.f32 %v2176, %v2177
        %v2179 = vsel %vm2139, %v2070, -inf
        %v2180 = vmax.f32 %v2178, %v2179
        %v2181 = vsel %vm2139, %v2087, -inf
        %v2182 = vmax.f32 %v2180, %v2181
        %v2183 = vsel %vm2139, %v2104, -inf
        %v2184 = vmax.f32 %v2182, %v2183
        %v2185 = vsel %vm2139, %v1987, -inf
        %v2186 = vsel %vm2139, %v2004, -inf
        %v2187 = vmax.f32 %v2185, %v2186
        %v2188 = vsel %vm2139, %v2021, -inf
        %v2189 = vmax.f32 %v2187, %v2188
        %v2190 = vsel %vm2139, %v2038, -inf
        %v2191 = vmax.f32 %v2189, %v2190
        %v2192 = vsel %vm2139, %v2055, -inf
        %v2193 = vmax.f32 %v2191, %v2192
        %v2194 = vsel %vm2139, %v2072, -inf
        %v2195 = vmax.f32 %v2193, %v2194
        %v2196 = vsel %vm2139, %v2089, -inf
        %v2197 = vmax.f32 %v2195, %v2196
        %v2198 = vsel %vm2139, %v2106, -inf
        %v2199 = vmax.f32 %v2197, %v2198
        %v2200 = vld [vmem:[#allocation3] sm:$0x3]
        %v2201 = vld [vmem:[#allocation3 + $0x2] sm:$0x3]
        %v2202 = vld [vmem:[#allocation3 + $0x4] sm:$0x3]
        %v2203 = vld [vmem:[#allocation3 + $0x6] sm:$0x3]
        %v2204 = vmax.f32 %v2200, %v2154
        %v2205 = vmax.f32 %v2201, %v2169
        %v2206 = vmax.f32 %v2202, %v2184
        %v2207 = vmax.f32 %v2203, %v2199
        %v2208 = vsub.f32 %v2200, %v2204
        %v2209 = vsub.f32 %v2201, %v2205
        %v2210 = vsub.f32 %v2202, %v2206
        %v2211 = vsub.f32 %v2203, %v2207
        %v2212 = vmul.f32 %v2208, 1.442695
        %v2213 = vpow.pop %v2212
        %v2214 = vmul.f32 %v2209, 1.442695
        %v2215 = vpow.pop %v2214
        %v2216 = vmul.f32 %v2210, 1.442695
        %v2217 = vpow.pop %v2216
        %v2218 = vmul.f32 %v2211, 1.442695
        %v2219 = vpow.pop %v2218
        %v2220 = vsub.f32 %v1978, %v2204
        %v2221 = vsub.f32 %v1986, %v2205
        %v2222 = vsub.f32 %v1985, %v2206
        %v2223 = vsub.f32 %v1987, %v2207
        %v2224 = vsub.f32 %v1995, %v2204
        %v2225 = vsub.f32 %v2003, %v2205
        %v2226 = vsub.f32 %v2002, %v2206
        %v2227 = vsub.f32 %v2004, %v2207
        %v2228 = vsub.f32 %v2012, %v2204
        %v2229 = vsub.f32 %v2020, %v2205
        %v2230 = vsub.f32 %v2019, %v2206
        %v2231 = vsub.f32 %v2021, %v2207
        %v2232 = vsub.f32 %v2029, %v2204
        %v2233 = vsub.f32 %v2037, %v2205
        %v2234 = vsub.f32 %v2036, %v2206
        %v2235 = vsub.f32 %v2038, %v2207
        %v2236 = vsub.f32 %v2046, %v2204
        %v2237 = vsub.f32 %v2054, %v2205
        %v2238 = vsub.f32 %v2053, %v2206
        %v2239 = vsub.f32 %v2055, %v2207
        %v2240 = vsub.f32 %v2063, %v2204
        %v2241 = vsub.f32 %v2071, %v2205
        %v2242 = vsub.f32 %v2070, %v2206
        %v2243 = vsub.f32 %v2072, %v2207
        %v2244 = vsub.f32 %v2080, %v2204
        %v2245 = vsub.f32 %v2088, %v2205
        %v2246 = vsub.f32 %v2087, %v2206
        %v2247 = vsub.f32 %v2089, %v2207
        %v2248 = vsub.f32 %v2097, %v2204
        %v2249 = vsub.f32 %v2105, %v2205
        %v2250 = vsub.f32 %v2104, %v2206
        %v2251 = vsub.f32 %v2106, %v2207
        %v2252 = vmul.f32 %v2220, 1.442695
        %v2253 = vpow.pop %v2252
        %v2254 = vmul.f32 %v2221, 1.442695
        %v2255 = vpow.pop %v2254
        %v2256 = vmul.f32 %v2222, 1.442695
        %v2257 = vpow.pop %v2256
        %v2258 = vmul.f32 %v2223, 1.442695
        %v2259 = vpow.pop %v2258
        %v2260 = vmul.f32 %v2224, 1.442695
        %v2261 = vpow.pop %v2260
        %v2262 = vmul.f32 %v2225, 1.442695
        %v2263 = vpow.pop %v2262
        %v2264 = vmul.f32 %v2226, 1.442695
        %v2265 = vpow.pop %v2264
        %v2266 = vmul.f32 %v2227, 1.442695
        %v2267 = vpow.pop %v2266
        %v2268 = vmul.f32 %v2228, 1.442695
        %v2269 = vpow.pop %v2268
        %v2270 = vmul.f32 %v2229, 1.442695
        %v2271 = vpow.pop %v2270
        %v2272 = vmul.f32 %v2230, 1.442695
        %v2273 = vpow.pop %v2272
        %v2274 = vmul.f32 %v2231, 1.442695
        %v2275 = vpow.pop %v2274
        %v2276 = vmul.f32 %v2232, 1.442695
        %v2277 = vpow.pop %v2276
        %v2278 = vmul.f32 %v2233, 1.442695
        %v2279 = vpow.pop %v2278
        %v2280 = vmul.f32 %v2234, 1.442695
        %v2281 = vpow.pop %v2280
        %v2282 = vmul.f32 %v2235, 1.442695
        %v2283 = vpow.pop %v2282
        %v2284 = vmul.f32 %v2236, 1.442695
        %v2285 = vpow.pop %v2284
        %v2286 = vmul.f32 %v2237, 1.442695
        %v2287 = vpow.pop %v2286
        %v2288 = vmul.f32 %v2238, 1.442695
        %v2289 = vpow.pop %v2288
        %v2290 = vmul.f32 %v2239, 1.442695
        %v2291 = vpow.pop %v2290
        %v2292 = vmul.f32 %v2240, 1.442695
        %v2293 = vpow.pop %v2292
        %v2294 = vmul.f32 %v2241, 1.442695
        %v2295 = vpow.pop %v2294
        %v2296 = vmul.f32 %v2242, 1.442695
        %v2297 = vpow.pop %v2296
        %v2298 = vmul.f32 %v2243, 1.442695
        %v2299 = vpow.pop %v2298
        %v2300 = vmul.f32 %v2244, 1.442695
        %v2301 = vpow.pop %v2300
        %v2302 = vmul.f32 %v2245, 1.442695
        %v2303 = vpow.pop %v2302
        %v2304 = vmul.f32 %v2246, 1.442695
        %v2305 = vpow.pop %v2304
        %v2306 = vmul.f32 %v2247, 1.442695
        %v2307 = vpow.pop %v2306
        %v2308 = vmul.f32 %v2248, 1.442695
        %v2309 = vpow.pop %v2308
        %v2310 = vmul.f32 %v2249, 1.442695
        %v2311 = vpow.pop %v2310
        %v2312 = vmul.f32 %v2250, 1.442695
        %v2313 = vpow.pop %v2312
        %v2314 = vmul.f32 %v2251, 1.442695
        %v2315 = vpow.pop %v2314
        %v2316 = vld [vmem:[#allocation4] sm:$0x3]
        %v2317 = vld [vmem:[#allocation4 + $0x2] sm:$0x3]
        %v2318 = vld [vmem:[#allocation4 + $0x4] sm:$0x3]
        %v2319 = vld [vmem:[#allocation4 + $0x6] sm:$0x3]
        %v2320 = vmul.f32 %v2213, %v2316
        %v2321 = vmul.f32 %v2215, %v2317
        %v2322 = vmul.f32 %v2217, %v2318
        %v2323 = vmul.f32 %v2219, %v2319
        %v2324 = vsel %vm2139, %v2253, 0.0
        %v2325 = vsel %vm2139, %v2261, 0.0
        %v2326 = vadd.f32 %v2324, %v2325
        %v2327 = vsel %vm2139, %v2269, 0.0
        %v2328 = vadd.f32 %v2326, %v2327
        %v2329 = vsel %vm2139, %v2277, 0.0
        %v2330 = vadd.f32 %v2328, %v2329
        %v2331 = vsel %vm2139, %v2285, 0.0
        %v2332 = vadd.f32 %v2330, %v2331
        %v2333 = vsel %vm2139, %v2293, 0.0
        %v2334 = vadd.f32 %v2332, %v2333
        %v2335 = vsel %vm2139, %v2301, 0.0
        %v2336 = vadd.f32 %v2334, %v2335
        %v2337 = vsel %vm2139, %v2309, 0.0
        %v2338 = vadd.f32 %v2336, %v2337
        %v2339 = vsel %vm2139, %v2255, 0.0
        %v2340 = vsel %vm2139, %v2263, 0.0
        %v2341 = vadd.f32 %v2339, %v2340
        %v2342 = vsel %vm2139, %v2271, 0.0
        %v2343 = vadd.f32 %v2341, %v2342
        %v2344 = vsel %vm2139, %v2279, 0.0
        %v2345 = vadd.f32 %v2343, %v2344
        %v2346 = vsel %vm2139, %v2287, 0.0
        %v2347 = vadd.f32 %v2345, %v2346
        %v2348 = vsel %vm2139, %v2295, 0.0
        %v2349 = vadd.f32 %v2347, %v2348
        %v2350 = vsel %vm2139, %v2303, 0.0
        %v2351 = vadd.f32 %v2349, %v2350
        %v2352 = vsel %vm2139, %v2311, 0.0
        %v2353 = vadd.f32 %v2351, %v2352
        %v2354 = vsel %vm2139, %v2257, 0.0
        %v2355 = vsel %vm2139, %v2265, 0.0
        %v2356 = vadd.f32 %v2354, %v2355
        %v2357 = vsel %vm2139, %v2273, 0.0
        %v2358 = vadd.f32 %v2356, %v2357
        %v2359 = vsel %vm2139, %v2281, 0.0
        %v2360 = vadd.f32 %v2358, %v2359
        %v2361 = vsel %vm2139, %v2289, 0.0
        %v2362 = vadd.f32 %v2360, %v2361
        %v2363 = vsel %vm2139, %v2297, 0.0
        %v2364 = vadd.f32 %v2362, %v2363
        %v2365 = vsel %vm2139, %v2305, 0.0
        %v2366 = vadd.f32 %v2364, %v2365
        %v2367 = vsel %vm2139, %v2313, 0.0
        %v2368 = vadd.f32 %v2366, %v2367
        %v2369 = vsel %vm2139, %v2259, 0.0
        %v2370 = vsel %vm2139, %v2267, 0.0
        %v2371 = vadd.f32 %v2369, %v2370
        %v2372 = vsel %vm2139, %v2275, 0.0
        %v2373 = vadd.f32 %v2371, %v2372
        %v2374 = vsel %vm2139, %v2283, 0.0
        %v2375 = vadd.f32 %v2373, %v2374
        %v2376 = vsel %vm2139, %v2291, 0.0
        %v2377 = vadd.f32 %v2375, %v2376
        %v2378 = vsel %vm2139, %v2299, 0.0
        %v2379 = vadd.f32 %v2377, %v2378
        %v2380 = vsel %vm2139, %v2307, 0.0
        %v2381 = vadd.f32 %v2379, %v2380
        %v2382 = vsel %vm2139, %v2315, 0.0
        %v2383 = vadd.f32 %v2381, %v2382
        %v2384 = vadd.f32 %v2320, %v2338
        %v2385 = vadd.f32 %v2321, %v2353
        %v2386 = vadd.f32 %v2322, %v2368
        %v2387 = vadd.f32 %v2323, %v2383
        %2388 = vst.msk [vmem:[#allocation4] sm:$0x3] %vm2139, %v2384
        %2389 = vst.msk [vmem:[#allocation4 + $0x2] sm:$0x3] %vm2139, %v2385
        %2390 = vst.msk [vmem:[#allocation4 + $0x4] sm:$0x3] %vm2139, %v2386
        %2391 = vst.msk [vmem:[#allocation4 + $0x6] sm:$0x3] %vm2139, %v2387
        %2392 = vrot.lane.b32.xlu0 %v1475, 96
        %v2393 = vpop.permute.xlu0 %2392
        %2394 = vrot.lane.b32.xlu0 %v1483, 96
        %v2395 = vpop.permute.xlu0 %2394
        %2396 = vrot.lane.b32.xlu0 %v1482, 96
        %v2397 = vpop.permute.xlu0 %2396
        %2398 = vrot.lane.b32.xlu0 %v1484, 96
        %v2399 = vpop.permute.xlu0 %2398
        %2400 = vrot.lane.b32.xlu0 %v1492, 96
        %v2401 = vpop.permute.xlu0 %2400
        %2402 = vrot.lane.b32.xlu0 %v1500, 96
        %v2403 = vpop.permute.xlu0 %2402
        %2404 = vrot.lane.b32.xlu0 %v1499, 96
        %v2405 = vpop.permute.xlu0 %2404
        %2406 = vrot.lane.b32.xlu0 %v1501, 96
        %v2407 = vpop.permute.xlu0 %2406
        %v2416 = vmul.f32 %v2253, %v2393
        %v2417 = vmul.f32 %v2255, %v2393
        %v2418 = vmul.f32 %v2257, %v2393
        %v2419 = vmul.f32 %v2259, %v2393
        %v2420 = vmul.f32 %v2261, %v2395
        %v2421 = vmul.f32 %v2263, %v2395
        %v2422 = vmul.f32 %v2265, %v2395
        %v2423 = vmul.f32 %v2267, %v2395
        %v2424 = vmul.f32 %v2269, %v2397
        %v2425 = vmul.f32 %v2271, %v2397
        %v2426 = vmul.f32 %v2273, %v2397
        %v2427 = vmul.f32 %v2275, %v2397
        %v2428 = vmul.f32 %v2277, %v2399
        %v2429 = vmul.f32 %v2279, %v2399
        %v2430 = vmul.f32 %v2281, %v2399
        %v2431 = vmul.f32 %v2283, %v2399
        %v2432 = vmul.f32 %v2285, %v2401
        %v2433 = vmul.f32 %v2287, %v2401
        %v2434 = vmul.f32 %v2289, %v2401
        %v2435 = vmul.f32 %v2291, %v2401
        %v2436 = vmul.f32 %v2293, %v2403
        %v2437 = vmul.f32 %v2295, %v2403
        %v2438 = vmul.f32 %v2297, %v2403
        %v2439 = vmul.f32 %v2299, %v2403
        %v2440 = vmul.f32 %v2301, %v2405
        %v2441 = vmul.f32 %v2303, %v2405
        %v2442 = vmul.f32 %v2305, %v2405
        %v2443 = vmul.f32 %v2307, %v2405
        %v2444 = vmul.f32 %v2309, %v2407
        %v2445 = vmul.f32 %v2311, %v2407
        %v2446 = vmul.f32 %v2313, %v2407
        %v2447 = vmul.f32 %v2315, %v2407
        %v2448 = vsel %vm2139, %v2416, 0.0
        %v2449 = vsel %vm2139, %v2420, 0.0
        %v2450 = vadd.f32 %v2448, %v2449
        %v2451 = vsel %vm2139, %v2424, 0.0
        %v2452 = vadd.f32 %v2450, %v2451
        %v2453 = vsel %vm2139, %v2428, 0.0
        %v2454 = vadd.f32 %v2452, %v2453
        %v2455 = vsel %vm2139, %v2432, 0.0
        %v2456 = vadd.f32 %v2454, %v2455
        %v2457 = vsel %vm2139, %v2436, 0.0
        %v2458 = vadd.f32 %v2456, %v2457
        %v2459 = vsel %vm2139, %v2440, 0.0
        %v2460 = vadd.f32 %v2458, %v2459
        %v2461 = vsel %vm2139, %v2444, 0.0
        %v2462 = vadd.f32 %v2460, %v2461
        %v2463 = vsel %vm2139, %v2417, 0.0
        %v2464 = vsel %vm2139, %v2421, 0.0
        %v2465 = vadd.f32 %v2463, %v2464
        %v2466 = vsel %vm2139, %v2425, 0.0
        %v2467 = vadd.f32 %v2465, %v2466
        %v2468 = vsel %vm2139, %v2429, 0.0
        %v2469 = vadd.f32 %v2467, %v2468
        %v2470 = vsel %vm2139, %v2433, 0.0
        %v2471 = vadd.f32 %v2469, %v2470
        %v2472 = vsel %vm2139, %v2437, 0.0
        %v2473 = vadd.f32 %v2471, %v2472
        %v2474 = vsel %vm2139, %v2441, 0.0
        %v2475 = vadd.f32 %v2473, %v2474
        %v2476 = vsel %vm2139, %v2445, 0.0
        %v2477 = vadd.f32 %v2475, %v2476
        %v2478 = vsel %vm2139, %v2418, 0.0
        %v2479 = vsel %vm2139, %v2422, 0.0
        %v2480 = vadd.f32 %v2478, %v2479
        %v2481 = vsel %vm2139, %v2426, 0.0
        %v2482 = vadd.f32 %v2480, %v2481
        %v2483 = vsel %vm2139, %v2430, 0.0
        %v2484 = vadd.f32 %v2482, %v2483
        %v2485 = vsel %vm2139, %v2434, 0.0
        %v2486 = vadd.f32 %v2484, %v2485
        %v2487 = vsel %vm2139, %v2438, 0.0
        %v2488 = vadd.f32 %v2486, %v2487
        %v2489 = vsel %vm2139, %v2442, 0.0
        %v2490 = vadd.f32 %v2488, %v2489
        %v2491 = vsel %vm2139, %v2446, 0.0
        %v2492 = vadd.f32 %v2490, %v2491
        %v2493 = vsel %vm2139, %v2419, 0.0
        %v2494 = vsel %vm2139, %v2423, 0.0
        %v2495 = vadd.f32 %v2493, %v2494
        %v2496 = vsel %vm2139, %v2427, 0.0
        %v2497 = vadd.f32 %v2495, %v2496
        %v2498 = vsel %vm2139, %v2431, 0.0
        %v2499 = vadd.f32 %v2497, %v2498
        %v2500 = vsel %vm2139, %v2435, 0.0
        %v2501 = vadd.f32 %v2499, %v2500
        %v2502 = vsel %vm2139, %v2439, 0.0
        %v2503 = vadd.f32 %v2501, %v2502
        %v2504 = vsel %vm2139, %v2443, 0.0
        %v2505 = vadd.f32 %v2503, %v2504
        %v2506 = vsel %vm2139, %v2447, 0.0
        %v2507 = vadd.f32 %v2505, %v2506
        %v2508 = vld [vmem:[#allocation5] sm:$0x3]
        %v2509 = vld [vmem:[#allocation5 + $0x2] sm:$0x3]
        %v2510 = vld [vmem:[#allocation5 + $0x4] sm:$0x3]
        %v2511 = vld [vmem:[#allocation5 + $0x6] sm:$0x3]
        %v2512 = vmul.f32 %v2213, %v2508
        %v2513 = vmul.f32 %v2215, %v2509
        %v2514 = vmul.f32 %v2217, %v2510
        %v2515 = vmul.f32 %v2219, %v2511
        %v2516 = vadd.f32 %v2512, %v2462
        %v2517 = vadd.f32 %v2513, %v2477
        %v2518 = vadd.f32 %v2514, %v2492
        %v2519 = vadd.f32 %v2515, %v2507
        %2520 = vst.msk [vmem:[#allocation5] sm:$0x3] %vm2139, %v2516
        %2521 = vst.msk [vmem:[#allocation5 + $0x2] sm:$0x3] %vm2139, %v2517
        %2522 = vst.msk [vmem:[#allocation5 + $0x4] sm:$0x3] %vm2139, %v2518
        %2523 = vst.msk [vmem:[#allocation5 + $0x6] sm:$0x3] %vm2139, %v2519
        %2524 = vst.msk [vmem:[#allocation3] sm:$0x3] %vm2139, %v2204
        %2525 = vst.msk [vmem:[#allocation3 + $0x2] sm:$0x3] %vm2139, %v2205
        %2526 = vst.msk [vmem:[#allocation3 + $0x4] sm:$0x3] %vm2139, %v2206
        %2527 = vst.msk [vmem:[#allocation3 + $0x6] sm:$0x3] %vm2139, %v2207
        // Predicated region
        $region105: #{tpu_custom_call.1} parent=75 // pred_check
          %p2528 = pneg %p636
        $region106: #{tpu_custom_call.1} parent=75 // pred_check_branch
          %2530 = sbr.rel (%p2528) target = $region108
        $region107: #{tpu_custom_call.1} parent=75 // pred_region
          %v2531 = vld [vmem:[%s13] sm:$0x1]
          %v2532 = vld [vmem:[%s13 + $0x1] sm:$0x1]
          %v2533 = vld [vmem:[%s13 + $0x2] sm:$0x1]
          %v2534 = vld [vmem:[%s13 + $0x3] sm:$0x1]
          %v2535 = vld [vmem:[%s13 + $0x4] sm:$0x1]
          %v2536 = vld [vmem:[%s13 + $0x5] sm:$0x1]
          %v2537 = vld [vmem:[#allocation5] sm:$0x3]
          %v2538 = vld [vmem:[#allocation5 + $0x2] sm:$0x3]
          %v2539 = vld [vmem:[#allocation5 + $0x4] sm:$0x3]
          %v2540 = vld [vmem:[#allocation5 + $0x6] sm:$0x3]
          %v2541 = vld [vmem:[#allocation4] sm:$0x3]
          %v2542 = vld [vmem:[#allocation4 + $0x2] sm:$0x3]
          %v2543 = vld [vmem:[#allocation4 + $0x4] sm:$0x3]
          %v2544 = vld [vmem:[#allocation4 + $0x6] sm:$0x3]
          %v2545 = vrcp.pop %v2541
          %v2546 = vrcp.pop %v2542
          %v2547 = vrcp.pop %v2543
          %v2548 = vrcp.pop %v2544
          %v2549 = vmul.f32 %v2537, %v2545
          %v2550 = vmul.f32 %v2538, %v2546
          %v2551 = vmul.f32 %v2539, %v2547
          %v2552 = vmul.f32 %v2540, %v2548
          %v2553 = vld [vmem:[#allocation13] sm:$0xff]
          %v2554 = vld [vmem:[#allocation13 + $0x8] sm:$0xff]
          %v2555 = vld [vmem:[#allocation13 + $0x10] sm:$0xff]
          %v2556 = vld [vmem:[#allocation13 + $0x18] sm:$0xff]
          %v2557 = vlaneseq
          %v2558 = vshrl.u32 %v2557, 7
          %v2559 = vsub.s32 0, %v2558
          %v2560 = vrot.slane %v2531, %v2559
          %v2565 = vcombine.low %v2549, %v2550
          %v2566 = vcombine.low %v2551, %v2552
          %v2568 = vunpack.c.l.s4 1983009808
          %v2569 = vunpack.c.0.s8 %v2568
          %v2570 = vlaneseq
          %v2571 = vshrl.u32 %v2570, 7
          %v2572 = vsub.s32 %v2569, %v2571
          %v2573 = vrot.slane %v2565, %v2572
          %v2575 = vunpack.c.l.s4 1983009808
          %v2576 = vunpack.c.0.s8 %v2575
          %v2577 = vlaneseq
          %v2578 = vshrl.u32 %v2577, 7
          %v2579 = vsub.s32 %v2576, %v2578
          %v2580 = vrot.slane %v2566, %v2579
          %v2581 = vcombine.low %v2573, %v2580
          %v2582 = vsel %vm849, %v2581, 0
          %2584 = vmatprep.subr.mxu0 0.0
          %2585 = vmatpush1.msra.mxu0 %v2553
          %2586 = vmatprep.subr.mxu0 0.0
          %2587 = vmatpush1.msra.mxu0 %v2554
          %2588 = vmatprep.subr.mxu0 0.0
          %2589 = vmatpush1.msra.mxu0 %v2555
          %2590 = vmatprep.subr.mxu0 0.0
          %2591 = vmatpush1.msra.mxu0 %v2556
          %2592 = vmatprep.subr.mxu0 0.0
          %2593 = vmatpush1.msra.mxu0 0.0
          %2594 = vmatprep.subr.mxu0 0.0
          %2595 = vmatpush1.msra.mxu0 0.0
          %2596 = vmatprep.subr.mxu0 0.0
          %2597 = vmatpush1.msra.mxu0 0.0
          %2598 = vmatprep.subr.mxu0 0.0
          %2599 = vmatpush1.msra.mxu0 0.0
          %2600 = vmatprep.subr.mxu0 0.0
          %2601 = vmatpush1.msra.mxu0 0.0
          %2602 = vmatprep.subr.mxu0 0.0
          %2603 = vmatpush1.msra.mxu0 0.0
          %2604 = vmatprep.subr.mxu0 0.0
          %2605 = vmatpush1.msra.mxu0 0.0
          %2606 = vmatprep.subr.mxu0 0.0
          %2607 = vmatpush1.msra.mxu0 0.0
          %2608 = vmatprep.subr.mxu0 0.0
          %2609 = vmatpush1.msra.mxu0 0.0
          %2610 = vmatprep.subr.mxu0 0.0
          %2611 = vmatpush1.msra.mxu0 0.0
          %2612 = vmatprep.subr.mxu0 0.0
          %2613 = vmatpush1.msra.mxu0 0.0
          %2614 = vmatprep.subr.mxu0 0.0
          %2615 = vmatpush1.msra.mxu0 0.0
          %2616 = vmatprep.subr.mxu0 0.0
          %2617 = vmatpush1.msra.mxu0 0.0
          %2618 = vmatprep.subr.mxu0 0.0
          %2619 = vmatpush1.msra.mxu0 0.0
          %2620 = vmatprep.subr.mxu0 0.0
          %2621 = vmatpush1.msra.mxu0 0.0
          %2622 = vmatprep.subr.mxu0 0.0
          %2623 = vmatpush1.msra.mxu0 0.0
          %2624 = vmatprep.subr.mxu0 0.0
          %2625 = vmatpush1.msra.mxu0 0.0
          %2626 = vmatprep.subr.mxu0 0.0
          %2627 = vmatpush1.msra.mxu0 0.0
          %2628 = vmatprep.subr.mxu0 0.0
          %2629 = vmatpush1.msra.mxu0 0.0
          %2630 = vmatprep.subr.mxu0 0.0
          %2631 = vmatpush1.msra.mxu0 0.0
          %2632 = vmatprep.subr.mxu0 0.0
          %2633 = vmatpush1.msra.mxu0 0.0
          %2634 = vmatprep.subr.mxu0 0.0
          %2635 = vmatpush1.msra.mxu0 0.0
          %2636 = vmatprep.subr.mxu0 0.0
          %2637 = vmatpush1.msra.mxu0 0.0
          %2638 = vmatprep.subr.mxu0 0.0
          %2639 = vmatpush1.msra.mxu0 0.0
          %2640 = vmatprep.subr.mxu0 0.0
          %2641 = vmatpush1.msra.mxu0 0.0
          %2642 = vmatprep.subr.mxu0 0.0
          %2643 = vmatpush1.msra.mxu0 0.0
          %2644 = vmatprep.subr.mxu0 0.0
          %2645 = vmatpush1.msra.mxu0 0.0
          %2646 = vmatprep.subr.mxu0 0.0
          %2647 = vmatpush1.msra.mxu0 0.0
          %2648 = vmatprep.mubr.f32.mxu0 0.0
          %2649 = vmatmul.mubr.f32.gmra.mrb[0].mxu0 %v2582
          %v2650 = vpop.f32.mrb[0].mxu0
          %v2651 = vadd.f32 %v2560, %v2650
          %v2652 = vpop.f32.mrb[0].mxu0
          %2653 = vdwg.mxu0
          %v2654 = vld [vmem:[%s556] sm:$0x3]
          %v2655 = vld [vmem:[%s556 + $0x2] sm:$0x3]
          %v2656 = vld [vmem:[%s556 + $0x4] sm:$0x3]
          %v2657 = vld [vmem:[%s556 + $0x6] sm:$0x3]
          %v2659 = vcombine.high %v2651, %v2651
          %v2661 = vunpack.c.l.s4 1983009808
          %v2662 = vunpack.c.0.s8 %v2661
          %v2663 = vlaneseq
          %v2664 = vshrl.u32 %v2663, 7
          %v2665 = vsub.s32 %v2662, %v2664
          %v2666 = vrot.slane %v2651, %v2665
          %v2668 = vunpack.c.l.s4 1983009808
          %v2669 = vunpack.c.0.s8 %v2668
          %v2670 = vlaneseq
          %v2671 = vshrl.u32 %v2670, 7
          %v2672 = vsub.s32 %v2669, %v2671
          %v2673 = vrot.slane %v2659, %v2672
          %v2674 = vcombine.high %v2666, %v2666
          %v2675 = vcombine.high %v2673, %v2673
          %v2680 = vadd.f32 %v2654, %v2666
          %v2681 = vadd.f32 %v2655, %v2674
          %v2682 = vadd.f32 %v2656, %v2673
          %v2683 = vadd.f32 %v2657, %v2675
          %v2688 = vcombine.low %v2680, %v2681
          %v2689 = vcombine.low %v2682, %v2683
          %v2691 = vunpack.c.l.s4 1983009808
          %v2692 = vunpack.c.0.s8 %v2691
          %v2693 = vlaneseq
          %v2694 = vshrl.u32 %v2693, 7
          %v2695 = vsub.s32 %v2692, %v2694
          %v2696 = vrot.slane %v2688, %v2695
          %v2698 = vunpack.c.l.s4 1983009808
          %v2699 = vunpack.c.0.s8 %v2698
          %v2700 = vlaneseq
          %v2701 = vshrl.u32 %v2700, 7
          %v2702 = vsub.s32 %v2699, %v2701
          %v2703 = vrot.slane %v2689, %v2702
          %v2704 = vcombine.low %v2696, %v2703
          %v2706 = vsel %vm849, %v2704, 0.0
          %2707 = vadd.xlane.f32.xlu0 %v2706
          %v2708 = vpop.xlane.xlu0 %2707
          %v2709 = vrcp.pop 32.0
          %v2710 = vmul.f32 %v2708, %v2709
          %v2713 = vunpack.c.l.s4 269488144
          %v2714 = vunpack.c.0.s8 %v2713
          %v2715 = vlaneseq
          %v2716 = vshrl.u32 %v2715, 7
          %v2717 = vsub.s32 %v2714, %v2716
          %v2718 = vrot.slane %v2710, %v2717
          %v2720 = vunpack.c.l.s4 842150450
          %v2721 = vunpack.c.0.s8 %v2720
          %v2722 = vlaneseq
          %v2723 = vshrl.u32 %v2722, 7
          %v2724 = vsub.s32 %v2721, %v2723
          %v2725 = vrot.slane %v2710, %v2724
          %v2727 = vunpack.c.l.s4 1414812756
          %v2728 = vunpack.c.0.s8 %v2727
          %v2729 = vlaneseq
          %v2730 = vshrl.u32 %v2729, 7
          %v2731 = vsub.s32 %v2728, %v2730
          %v2732 = vrot.slane %v2710, %v2731
          %v2734 = vunpack.c.l.s4 1987475062
          %v2735 = vunpack.c.0.s8 %v2734
          %v2736 = vlaneseq
          %v2737 = vshrl.u32 %v2736, 7
          %v2738 = vsub.s32 %v2735, %v2737
          %v2739 = vrot.slane %v2710, %v2738
          %v2744 = vsub.f32 %v2680, %v2718
          %v2745 = vsub.f32 %v2681, %v2725
          %v2746 = vsub.f32 %v2682, %v2732
          %v2747 = vsub.f32 %v2683, %v2739
          %v2748 = vmul.f32 %v2744, %v2744
          %v2749 = vmul.f32 %v2745, %v2745
          %v2750 = vmul.f32 %v2746, %v2746
          %v2751 = vmul.f32 %v2747, %v2747
          %v2756 = vcombine.low %v2748, %v2749
          %v2757 = vcombine.low %v2750, %v2751
          %v2759 = vunpack.c.l.s4 1983009808
          %v2760 = vunpack.c.0.s8 %v2759
          %v2761 = vlaneseq
          %v2762 = vshrl.u32 %v2761, 7
          %v2763 = vsub.s32 %v2760, %v2762
          %v2764 = vrot.slane %v2756, %v2763
          %v2766 = vunpack.c.l.s4 1983009808
          %v2767 = vunpack.c.0.s8 %v2766
          %v2768 = vlaneseq
          %v2769 = vshrl.u32 %v2768, 7
          %v2770 = vsub.s32 %v2767, %v2769
          %v2771 = vrot.slane %v2757, %v2770
          %v2772 = vcombine.low %v2764, %v2771
          %v2774 = vsel %vm849, %v2772, 0.0
          %2775 = vadd.xlane.f32.xlu0 %v2774
          %v2776 = vpop.xlane.xlu0 %2775
          %v2777 = vmul.f32 %v2776, %v2709
          %v2778 = vadd.f32 %v2777, 1e-05
          %v2779 = vrsqrt.pop %v2778
          %v2782 = vunpack.c.l.s4 269488144
          %v2783 = vunpack.c.0.s8 %v2782
          %v2784 = vlaneseq
          %v2785 = vshrl.u32 %v2784, 7
          %v2786 = vsub.s32 %v2783, %v2785
          %v2787 = vrot.slane %v2779, %v2786
          %v2789 = vunpack.c.l.s4 842150450
          %v2790 = vunpack.c.0.s8 %v2789
          %v2791 = vlaneseq
          %v2792 = vshrl.u32 %v2791, 7
          %v2793 = vsub.s32 %v2790, %v2792
          %v2794 = vrot.slane %v2779, %v2793
          %v2796 = vunpack.c.l.s4 1414812756
          %v2797 = vunpack.c.0.s8 %v2796
          %v2798 = vlaneseq
          %v2799 = vshrl.u32 %v2798, 7
          %v2800 = vsub.s32 %v2797, %v2799
          %v2801 = vrot.slane %v2779, %v2800
          %v2803 = vunpack.c.l.s4 1987475062
          %v2804 = vunpack.c.0.s8 %v2803
          %v2805 = vlaneseq
          %v2806 = vshrl.u32 %v2805, 7
          %v2807 = vsub.s32 %v2804, %v2806
          %v2808 = vrot.slane %v2779, %v2807
          %v2813 = vmul.f32 %v2744, %v2787
          %v2814 = vmul.f32 %v2745, %v2794
          %v2815 = vmul.f32 %v2746, %v2801
          %v2816 = vmul.f32 %v2747, %v2808
          %v2817 = vlaneseq
          %v2818 = vshrl.u32 %v2817, 7
          %v2819 = vsub.s32 0, %v2818
          %v2820 = vrot.slane %v2533, %v2819
          %v2822 = vcombine.high %v2820, %v2820
          %v2824 = vunpack.c.l.s4 1983009808
          %v2825 = vunpack.c.0.s8 %v2824
          %v2826 = vlaneseq
          %v2827 = vshrl.u32 %v2826, 7
          %v2828 = vsub.s32 %v2825, %v2827
          %v2829 = vrot.slane %v2820, %v2828
          %v2831 = vunpack.c.l.s4 1983009808
          %v2832 = vunpack.c.0.s8 %v2831
          %v2833 = vlaneseq
          %v2834 = vshrl.u32 %v2833, 7
          %v2835 = vsub.s32 %v2832, %v2834
          %v2836 = vrot.slane %v2822, %v2835
          %v2837 = vcombine.high %v2829, %v2829
          %v2838 = vcombine.high %v2836, %v2836
          %v2843 = vmul.f32 %v2813, %v2829
          %v2844 = vmul.f32 %v2814, %v2837
          %v2845 = vmul.f32 %v2815, %v2836
          %v2846 = vmul.f32 %v2816, %v2838
          %v2847 = vlaneseq
          %v2848 = vshrl.u32 %v2847, 7
          %v2849 = vsub.s32 0, %v2848
          %v2850 = vrot.slane %v2534, %v2849
          %v2852 = vcombine.high %v2850, %v2850
          %v2854 = vunpack.c.l.s4 1983009808
          %v2855 = vunpack.c.0.s8 %v2854
          %v2856 = vlaneseq
          %v2857 = vshrl.u32 %v2856, 7
          %v2858 = vsub.s32 %v2855, %v2857
          %v2859 = vrot.slane %v2850, %v2858
          %v2861 = vunpack.c.l.s4 1983009808
          %v2862 = vunpack.c.0.s8 %v2861
          %v2863 = vlaneseq
          %v2864 = vshrl.u32 %v2863, 7
          %v2865 = vsub.s32 %v2862, %v2864
          %v2866 = vrot.slane %v2852, %v2865
          %v2867 = vcombine.high %v2859, %v2859
          %v2868 = vcombine.high %v2866, %v2866
          %v2873 = vadd.f32 %v2843, %v2859
          %v2874 = vadd.f32 %v2844, %v2867
          %v2875 = vadd.f32 %v2845, %v2866
          %v2876 = vadd.f32 %v2846, %v2868
          %v2877 = vld [vmem:[#allocation15] sm:$0xff]
          %v2878 = vld [vmem:[#allocation15 + $0x8] sm:$0xff]
          %v2879 = vld [vmem:[#allocation15 + $0x10] sm:$0xff]
          %v2880 = vld [vmem:[#allocation15 + $0x18] sm:$0xff]
          %v2881 = vld [vmem:[%s11] sm:$0x1]
          %v2883 = vlaneseq
          %v2884 = vshrl.u32 %v2883, 7
          %v2885 = vsub.s32 0, %v2884
          %v2886 = vrot.slane %v2881, %v2885
          %v2892 = vcombine.low %v2873, %v2874
          %v2893 = vcombine.low %v2875, %v2876
          %v2895 = vunpack.c.l.s4 1983009808
          %v2896 = vunpack.c.0.s8 %v2895
          %v2897 = vlaneseq
          %v2898 = vshrl.u32 %v2897, 7
          %v2899 = vsub.s32 %v2896, %v2898
          %v2900 = vrot.slane %v2892, %v2899
          %v2902 = vunpack.c.l.s4 1983009808
          %v2903 = vunpack.c.0.s8 %v2902
          %v2904 = vlaneseq
          %v2905 = vshrl.u32 %v2904, 7
          %v2906 = vsub.s32 %v2903, %v2905
          %v2907 = vrot.slane %v2893, %v2906
          %v2908 = vcombine.low %v2900, %v2907
          %v2909 = vsel %vm849, %v2908, 0
          %2911 = vmatprep.subr.mxu0 0.0
          %2912 = vmatpush1.msra.mxu0 %v2877
          %2913 = vmatprep.subr.mxu0 0.0
          %2914 = vmatpush1.msra.mxu0 %v2878
          %2915 = vmatprep.subr.mxu0 0.0
          %2916 = vmatpush1.msra.mxu0 %v2879
          %2917 = vmatprep.subr.mxu0 0.0
          %2918 = vmatpush1.msra.mxu0 %v2880
          %2919 = vmatprep.subr.mxu0 0.0
          %2920 = vmatpush1.msra.mxu0 0.0
          %2921 = vmatprep.subr.mxu0 0.0
          %2922 = vmatpush1.msra.mxu0 0.0
          %2923 = vmatprep.subr.mxu0 0.0
          %2924 = vmatpush1.msra.mxu0 0.0
          %2925 = vmatprep.subr.mxu0 0.0
          %2926 = vmatpush1.msra.mxu0 0.0
          %2927 = vmatprep.subr.mxu0 0.0
          %2928 = vmatpush1.msra.mxu0 0.0
          %2929 = vmatprep.subr.mxu0 0.0
          %2930 = vmatpush1.msra.mxu0 0.0
          %2931 = vmatprep.subr.mxu0 0.0
          %2932 = vmatpush1.msra.mxu0 0.0
          %2933 = vmatprep.subr.mxu0 0.0
          %2934 = vmatpush1.msra.mxu0 0.0
          %2935 = vmatprep.subr.mxu0 0.0
          %2936 = vmatpush1.msra.mxu0 0.0
          %2937 = vmatprep.subr.mxu0 0.0
          %2938 = vmatpush1.msra.mxu0 0.0
          %2939 = vmatprep.subr.mxu0 0.0
          %2940 = vmatpush1.msra.mxu0 0.0
          %2941 = vmatprep.subr.mxu0 0.0
          %2942 = vmatpush1.msra.mxu0 0.0
          %2943 = vmatprep.subr.mxu0 0.0
          %2944 = vmatpush1.msra.mxu0 0.0
          %2945 = vmatprep.subr.mxu0 0.0
          %2946 = vmatpush1.msra.mxu0 0.0
          %2947 = vmatprep.subr.mxu0 0.0
          %2948 = vmatpush1.msra.mxu0 0.0
          %2949 = vmatprep.subr.mxu0 0.0
          %2950 = vmatpush1.msra.mxu0 0.0
          %2951 = vmatprep.subr.mxu0 0.0
          %2952 = vmatpush1.msra.mxu0 0.0
          %2953 = vmatprep.subr.mxu0 0.0
          %2954 = vmatpush1.msra.mxu0 0.0
          %2955 = vmatprep.subr.mxu0 0.0
          %2956 = vmatpush1.msra.mxu0 0.0
          %2957 = vmatprep.subr.mxu0 0.0
          %2958 = vmatpush1.msra.mxu0 0.0
          %2959 = vmatprep.subr.mxu0 0.0
          %2960 = vmatpush1.msra.mxu0 0.0
          %2961 = vmatprep.subr.mxu0 0.0
          %2962 = vmatpush1.msra.mxu0 0.0
          %2963 = vmatprep.subr.mxu0 0.0
          %2964 = vmatpush1.msra.mxu0 0.0
          %2965 = vmatprep.subr.mxu0 0.0
          %2966 = vmatpush1.msra.mxu0 0.0
          %2967 = vmatprep.subr.mxu0 0.0
          %2968 = vmatpush1.msra.mxu0 0.0
          %2969 = vmatprep.subr.mxu0 0.0
          %2970 = vmatpush1.msra.mxu0 0.0
          %2971 = vmatprep.subr.mxu0 0.0
          %2972 = vmatpush1.msra.mxu0 0.0
          %2973 = vmatprep.subr.mxu0 0.0
          %2974 = vmatpush1.msra.mxu0 0.0
          %2975 = vmatprep.mubr.f32.mxu0 0.0
          %2976 = vmatmul.mubr.f32.gmra.mrb[0].mxu0 %v2909
          %v2977 = vpop.f32.mrb[0].mxu0
          %v2978 = vadd.f32 %v2886, %v2977
          %v2979 = vpop.f32.mrb[0].mxu0
          %2980 = vdwg.mxu0
          %v2981 = vmax.f32 %v2978, 0.0
          %v2982 = vld [vmem:[%s12] sm:$0xff]
          %v2983 = vld [vmem:[%s12 + $0x8] sm:$0xff]
          %v2984 = vld [vmem:[%s12 + $0x10] sm:$0xff]
          %v2985 = vld [vmem:[%s12 + $0x18] sm:$0xff]
          %v2986 = vld [vmem:[%s12 + $0x20] sm:$0xff]
          %v2987 = vld [vmem:[%s12 + $0x28] sm:$0xff]
          %v2988 = vld [vmem:[%s12 + $0x30] sm:$0xff]
          %v2989 = vld [vmem:[%s12 + $0x38] sm:$0xff]
          %v2990 = vlaneseq
          %v2991 = vshrl.u32 %v2990, 7
          %v2992 = vsub.s32 0, %v2991
          %v2993 = vrot.slane %v2532, %v2992
          %vm2994 = vcmask 523264
          %v2996 = vsel %vm2994, %v2981, 0
          %2998 = vmatprep.subr.mxu0 0.0
          %2999 = vmatpush1.msra.mxu0 %v2982
          %3000 = vmatprep.subr.mxu0 0.0
          %3001 = vmatpush1.msra.mxu0 %v2983
          %3002 = vmatprep.subr.mxu0 0.0
          %3003 = vmatpush1.msra.mxu0 %v2984
          %3004 = vmatprep.subr.mxu0 0.0
          %3005 = vmatpush1.msra.mxu0 %v2985
          %3006 = vmatprep.subr.mxu0 0.0
          %3007 = vmatpush1.msra.mxu0 %v2986
          %3008 = vmatprep.subr.mxu0 0.0
          %3009 = vmatpush1.msra.mxu0 %v2987
          %3010 = vmatprep.subr.mxu0 0.0
          %3011 = vmatpush1.msra.mxu0 %v2988
          %3012 = vmatprep.subr.mxu0 0.0
          %3013 = vmatpush1.msra.mxu0 %v2989
          %3014 = vmatprep.subr.mxu0 0.0
          %3015 = vmatpush1.msra.mxu0 0.0
          %3016 = vmatprep.subr.mxu0 0.0
          %3017 = vmatpush1.msra.mxu0 0.0
          %3018 = vmatprep.subr.mxu0 0.0
          %3019 = vmatpush1.msra.mxu0 0.0
          %3020 = vmatprep.subr.mxu0 0.0
          %3021 = vmatpush1.msra.mxu0 0.0
          %3022 = vmatprep.subr.mxu0 0.0
          %3023 = vmatpush1.msra.mxu0 0.0
          %3024 = vmatprep.subr.mxu0 0.0
          %3025 = vmatpush1.msra.mxu0 0.0
          %3026 = vmatprep.subr.mxu0 0.0
          %3027 = vmatpush1.msra.mxu0 0.0
          %3028 = vmatprep.subr.mxu0 0.0
          %3029 = vmatpush1.msra.mxu0 0.0
          %3030 = vmatprep.subr.mxu0 0.0
          %3031 = vmatpush1.msra.mxu0 0.0
          %3032 = vmatprep.subr.mxu0 0.0
          %3033 = vmatpush1.msra.mxu0 0.0
          %3034 = vmatprep.subr.mxu0 0.0
          %3035 = vmatpush1.msra.mxu0 0.0
          %3036 = vmatprep.subr.mxu0 0.0
          %3037 = vmatpush1.msra.mxu0 0.0
          %3038 = vmatprep.subr.mxu0 0.0
          %3039 = vmatpush1.msra.mxu0 0.0
          %3040 = vmatprep.subr.mxu0 0.0
          %3041 = vmatpush1.msra.mxu0 0.0
          %3042 = vmatprep.subr.mxu0 0.0
          %3043 = vmatpush1.msra.mxu0 0.0
          %3044 = vmatprep.subr.mxu0 0.0
          %3045 = vmatpush1.msra.mxu0 0.0
          %3046 = vmatprep.subr.mxu0 0.0
          %3047 = vmatpush1.msra.mxu0 0.0
          %3048 = vmatprep.subr.mxu0 0.0
          %3049 = vmatpush1.msra.mxu0 0.0
          %3050 = vmatprep.subr.mxu0 0.0
          %3051 = vmatpush1.msra.mxu0 0.0
          %3052 = vmatprep.subr.mxu0 0.0
          %3053 = vmatpush1.msra.mxu0 0.0
          %3054 = vmatprep.subr.mxu0 0.0
          %3055 = vmatpush1.msra.mxu0 0.0
          %3056 = vmatprep.subr.mxu0 0.0
          %3057 = vmatpush1.msra.mxu0 0.0
          %3058 = vmatprep.subr.mxu0 0.0
          %3059 = vmatpush1.msra.mxu0 0.0
          %3060 = vmatprep.subr.mxu0 0.0
          %3061 = vmatpush1.msra.mxu0 0.0
          %3062 = vmatprep.mubr.f32.mxu0 0.0
          %3063 = vmatmul.mubr.f32.gmra.mrb[0].mxu0 %v2996
          %v3064 = vpop.f32.mrb[0].mxu0
          %v3065 = vadd.f32 %v2993, %v3064
          %v3066 = vpop.f32.mrb[0].mxu0
          %3067 = vdwg.mxu0
          %v3069 = vcombine.high %v3065, %v3065
          %v3071 = vunpack.c.l.s4 1983009808
          %v3072 = vunpack.c.0.s8 %v3071
          %v3073 = vlaneseq
          %v3074 = vshrl.u32 %v3073, 7
          %v3075 = vsub.s32 %v3072, %v3074
          %v3076 = vrot.slane %v3065, %v3075
          %v3078 = vunpack.c.l.s4 1983009808
          %v3079 = vunpack.c.0.s8 %v3078
          %v3080 = vlaneseq
          %v3081 = vshrl.u32 %v3080, 7
          %v3082 = vsub.s32 %v3079, %v3081
          %v3083 = vrot.slane %v3069, %v3082
          %v3084 = vcombine.high %v3076, %v3076
          %v3085 = vcombine.high %v3083, %v3083
          %v3090 = vadd.f32 %v2873, %v3076
          %v3091 = vadd.f32 %v2874, %v3084
          %v3092 = vadd.f32 %v2875, %v3083
          %v3093 = vadd.f32 %v2876, %v3085
          %v3098 = vcombine.low %v3090, %v3091
          %v3099 = vcombine.low %v3092, %v3093
          %v3101 = vunpack.c.l.s4 1983009808
          %v3102 = vunpack.c.0.s8 %v3101
          %v3103 = vlaneseq
          %v3104 = vshrl.u32 %v3103, 7
          %v3105 = vsub.s32 %v3102, %v3104
          %v3106 = vrot.slane %v3098, %v3105
          %v3108 = vunpack.c.l.s4 1983009808
          %v3109 = vunpack.c.0.s8 %v3108
          %v3110 = vlaneseq
          %v3111 = vshrl.u32 %v3110, 7
          %v3112 = vsub.s32 %v3109, %v3111
          %v3113 = vrot.slane %v3099, %v3112
          %v3114 = vcombine.low %v3106, %v3113
          %v3116 = vsel %vm849, %v3114, 0.0
          %3117 = vadd.xlane.f32.xlu0 %v3116
          %v3118 = vpop.xlane.xlu0 %3117
          %v3119 = vmul.f32 %v3118, %v2709
          %v3122 = vunpack.c.l.s4 269488144
          %v3123 = vunpack.c.0.s8 %v3122
          %v3124 = vlaneseq
          %v3125 = vshrl.u32 %v3124, 7
          %v3126 = vsub.s32 %v3123, %v3125
          %v3127 = vrot.slane %v3119, %v3126
          %v3129 = vunpack.c.l.s4 842150450
          %v3130 = vunpack.c.0.s8 %v3129
          %v3131 = vlaneseq
          %v3132 = vshrl.u32 %v3131, 7
          %v3133 = vsub.s32 %v3130, %v3132
          %v3134 = vrot.slane %v3119, %v3133
          %v3136 = vunpack.c.l.s4 1414812756
          %v3137 = vunpack.c.0.s8 %v3136
          %v3138 = vlaneseq
          %v3139 = vshrl.u32 %v3138, 7
          %v3140 = vsub.s32 %v3137, %v3139
          %v3141 = vrot.slane %v3119, %v3140
          %v3143 = vunpack.c.l.s4 1987475062
          %v3144 = vunpack.c.0.s8 %v3143
          %v3145 = vlaneseq
          %v3146 = vshrl.u32 %v3145, 7
          %v3147 = vsub.s32 %v3144, %v3146
          %v3148 = vrot.slane %v3119, %v3147
          %v3153 = vsub.f32 %v3090, %v3127
          %v3154 = vsub.f32 %v3091, %v3134
          %v3155 = vsub.f32 %v3092, %v3141
          %v3156 = vsub.f32 %v3093, %v3148
          %v3157 = vmul.f32 %v3153, %v3153
          %v3158 = vmul.f32 %v3154, %v3154
          %v3159 = vmul.f32 %v3155, %v3155
          %v3160 = vmul.f32 %v3156, %v3156
          %v3165 = vcombine.low %v3157, %v3158
          %v3166 = vcombine.low %v3159, %v3160
          %v3168 = vunpack.c.l.s4 1983009808
          %v3169 = vunpack.c.0.s8 %v3168
          %v3170 = vlaneseq
          %v3171 = vshrl.u32 %v3170, 7
          %v3172 = vsub.s32 %v3169, %v3171
          %v3173 = vrot.slane %v3165, %v3172
          %v3175 = vunpack.c.l.s4 1983009808
          %v3176 = vunpack.c.0.s8 %v3175
          %v3177 = vlaneseq
          %v3178 = vshrl.u32 %v3177, 7
          %v3179 = vsub.s32 %v3176, %v3178
          %v3180 = vrot.slane %v3166, %v3179
          %v3181 = vcombine.low %v3173, %v3180
          %v3183 = vsel %vm849, %v3181, 0.0
          %3184 = vadd.xlane.f32.xlu0 %v3183
          %v3185 = vpop.xlane.xlu0 %3184
          %v3186 = vmul.f32 %v3185, %v2709
          %v3187 = vadd.f32 %v3186, 1e-05
          %v3188 = vrsqrt.pop %v3187
          %v3191 = vunpack.c.l.s4 269488144
          %v3192 = vunpack.c.0.s8 %v3191
          %v3193 = vlaneseq
          %v3194 = vshrl.u32 %v3193, 7
          %v3195 = vsub.s32 %v3192, %v3194
          %v3196 = vrot.slane %v3188, %v3195
          %v3198 = vunpack.c.l.s4 842150450
          %v3199 = vunpack.c.0.s8 %v3198
          %v3200 = vlaneseq
          %v3201 = vshrl.u32 %v3200, 7
          %v3202 = vsub.s32 %v3199, %v3201
          %v3203 = vrot.slane %v3188, %v3202
          %v3205 = vunpack.c.l.s4 1414812756
          %v3206 = vunpack.c.0.s8 %v3205
          %v3207 = vlaneseq
          %v3208 = vshrl.u32 %v3207, 7
          %v3209 = vsub.s32 %v3206, %v3208
          %v3210 = vrot.slane %v3188, %v3209
          %v3212 = vunpack.c.l.s4 1987475062
          %v3213 = vunpack.c.0.s8 %v3212
          %v3214 = vlaneseq
          %v3215 = vshrl.u32 %v3214, 7
          %v3216 = vsub.s32 %v3213, %v3215
          %v3217 = vrot.slane %v3188, %v3216
          %v3222 = vmul.f32 %v3153, %v3196
          %v3223 = vmul.f32 %v3154, %v3203
          %v3224 = vmul.f32 %v3155, %v3210
          %v3225 = vmul.f32 %v3156, %v3217
          %v3226 = vlaneseq
          %v3227 = vshrl.u32 %v3226, 7
          %v3228 = vsub.s32 0, %v3227
          %v3229 = vrot.slane %v2535, %v3228
          %v3231 = vcombine.high %v3229, %v3229
          %v3233 = vunpack.c.l.s4 1983009808
          %v3234 = vunpack.c.0.s8 %v3233
          %v3235 = vlaneseq
          %v3236 = vshrl.u32 %v3235, 7
          %v3237 = vsub.s32 %v3234, %v3236
          %v3238 = vrot.slane %v3229, %v3237
          %v3240 = vunpack.c.l.s4 1983009808
          %v3241 = vunpack.c.0.s8 %v3240
          %v3242 = vlaneseq
          %v3243 = vshrl.u32 %v3242, 7
          %v3244 = vsub.s32 %v3241, %v3243
          %v3245 = vrot.slane %v3231, %v3244
          %v3246 = vcombine.high %v3238, %v3238
          %v3247 = vcombine.high %v3245, %v3245
          %v3252 = vmul.f32 %v3222, %v3238
          %v3253 = vmul.f32 %v3223, %v3246
          %v3254 = vmul.f32 %v3224, %v3245
          %v3255 = vmul.f32 %v3225, %v3247
          %v3256 = vlaneseq
          %v3257 = vshrl.u32 %v3256, 7
          %v3258 = vsub.s32 0, %v3257
          %v3259 = vrot.slane %v2536, %v3258
          %v3261 = vcombine.high %v3259, %v3259
          %v3263 = vunpack.c.l.s4 1983009808
          %v3264 = vunpack.c.0.s8 %v3263
          %v3265 = vlaneseq
          %v3266 = vshrl.u32 %v3265, 7
          %v3267 = vsub.s32 %v3264, %v3266
          %v3268 = vrot.slane %v3259, %v3267
          %v3270 = vunpack.c.l.s4 1983009808
          %v3271 = vunpack.c.0.s8 %v3270
          %v3272 = vlaneseq
          %v3273 = vshrl.u32 %v3272, 7
          %v3274 = vsub.s32 %v3271, %v3273
          %v3275 = vrot.slane %v3261, %v3274
          %v3276 = vcombine.high %v3268, %v3268
          %v3277 = vcombine.high %v3275, %v3275
          %v3282 = vadd.f32 %v3252, %v3268
          %v3283 = vadd.f32 %v3253, %v3276
          %v3284 = vadd.f32 %v3254, %v3275
          %v3285 = vadd.f32 %v3255, %v3277
          %3286 = vst.msk [vmem:[%s630] sm:$0x3] %vm2139, %v3282
          %3287 = vst.msk [vmem:[%s630 + $0x2] sm:$0x3] %vm2139, %v3283
          %3288 = vst.msk [vmem:[%s630 + $0x4] sm:$0x3] %vm2139, %v3284
          %3289 = vst.msk [vmem:[%s630 + $0x6] sm:$0x3] %vm2139, %v3285
        $region108: #{tpu_custom_call.1} parent=75 // pred_fallthru
          _
        %s3290 = sand.u32 %s364, 1
        %s3291 = scalar_lea.sflag [#allocation8], %s3290
        %s3292 = sand.u32 %s364, 1
        %s3293 = smul.addr %s3292, 8
        %s3294 = scalar_lea.vmem [#allocation16], %s3293
        // Predicated region
        $region109: #{tpu_custom_call.1} parent=75 // pred_check
          %p3295 = pneg %p374
        $region110: #{tpu_custom_call.1} parent=75 // pred_check_branch
          %3297 = sbr.rel (%p3295) target = $region112
        $region111: #{tpu_custom_call.1} parent=75 // pred_region
          %s3298 = smul.u32 4, %s37
          %s3300 = ssub.s32 128, 128
          %3301 = vsyncadd %s3291, %s3300
          %s3302 = smul.addr %s3298, 32
          %s3303 = scalar_lea.hbm %s14, %s3302
          %s3304 = sshll.u32 %s3294, 4
          %s3305 = int_to_ptr.vmem [resolvable:$true] %s3304
          %3310 = dma.vmem_to_hbm [thread:$0]  %s3305, 128, %s3303, %s3291, 32, 32, 2
        $region112: #{tpu_custom_call.1} parent=75 // pred_fallthru
          _
      $region76: #{tpu_custom_call.1} parent=5 // pred_fallthru
        _
      %p3311 = scmp.le.s32.totalorder 2, %s28
      // Predicated region
      $region113: #{tpu_custom_call.1} parent=5 // pred_check
        %p3312 = pneg %p3311
      $region114: #{tpu_custom_call.1} parent=5 // pred_check_branch
        %3314 = sbr.rel (%p3312) target = $region116
      $region115: #{tpu_custom_call.1} parent=5 // pred_region
        %s3315 = ssub.s32 %s28, 2
        // Predicated region
        $region117: #{tpu_custom_call.1} parent=115 // pred_check
          %p3316 = pneg %p380
        $region118: #{tpu_custom_call.1} parent=115 // pred_check_branch
          %3318 = sbr.rel (%p3316) target = $region120
        $region119: #{tpu_custom_call.1} parent=115 // pred_region
          %s3319 = sand.u32 %s365, 1
          %s3320 = scalar_lea.sflag [#allocation8], %s3319
          %s3321 = sand.u32 %s365, 1
          %s3322 = smul.addr %s3321, 8
          %s3323 = scalar_lea.vmem [#allocation16], %s3322
          %3324 = dma.done %s3320, 128
        $region120: #{tpu_custom_call.1} parent=115 // pred_fallthru
          _
      $region116: #{tpu_custom_call.1} parent=5 // pred_fallthru
        _
    $region6: #{tpu_custom_call.1} parent=1 // loop_footer
      %s32 = sadd.s32 1, %s28
    $region7: #{tpu_custom_call.1} parent=1 // loop_footer_branch
      %27 = sbr.rel target = $region3
    $region8: #{tpu_custom_call.1} parent=1 // loop_exit
      _
    %3325 = vsyncpa [#allocation7], 1
    %s3326 = scalar_lea.sflag [#allocation7], 1
    %3327 = vsyncpa %s3326, 1
    %3328 = vsyncpa [#allocation10], 1
    %3329 = vsyncpa [#allocation14], 1
    %3330 = vsyncpa [#allocation8], 1
    %s3331 = scalar_lea.sflag [#allocation8], 1
    %3332 = vsyncpa %s3331, 1

</llo_original>
